<compile_context>
chip_gen: v7x
topology: tpu7x:2x2x1
jax: 0.10.0
libtpu: 0.0.40
codegen_flags: <defaults>
</compile_context>

<pallas_src>
import jax
import jax.numpy as jnp
import numpy as np
from jax import lax
from jax.experimental import pallas as pl
from jax.experimental.pallas import tpu as pltpu


# ----------------------------- fused Pallas kernel ---------------------------

def _make_bilstm_kernel(*, T, B, H, num_layers):
    """Fused BiLSTM(+head) kernel for static (T, B, H, num_layers)."""
    G2 = 2 * H          # fused (fwd|bwd) gate width

    def kernel(*refs):
        # refs = (x, [w_in_f, w_in_b, w_rec, b] * num_layers, w_out, b_out, out)
        x_ref = refs[0]
        layer_refs = [refs[1 + 4 * l: 1 + 4 * l + 4] for l in range(num_layers)]
        w_out_ref = refs[1 + 4 * num_layers]
        b_out_ref = refs[2 + 4 * num_layers]
        out_ref = refs[-1]

        # ---- layer-0 input projection: D == 1 -> VPU broadcast, no MXU ----
        wf0 = layer_refs[0][0][...]                         # (1, 8H)
        wb0 = layer_refs[0][1][...]                         # (1, 8H)
        b0 = layer_refs[0][3][...]                          # (1, 8H)
        xs = [x_ref[t] for t in range(T)]                   # (B, 1) each
        # pre[s] already pairs fwd(time s) with bwd(time T-1-s).
        pre = [xs[t] * wf0 + xs[T - 1 - t] * wb0 + b0 for t in range(T)]

        h = None
        for l in range(num_layers):
            w_rec = layer_refs[l][2][...]                   # (2H, 8H)

            # ---- recurrence: one matmul per step advances both directions ----
            h = jnp.zeros((B, G2), jnp.float32)
            c = jnp.zeros((B, G2), jnp.float32)
            h_seq = []
            for t in range(T):
                g = pre[t] + jnp.dot(h, w_rec,
                                     preferred_element_type=jnp.float32)
                i_g = jax.nn.sigmoid(g[:, 0 * G2:1 * G2])
                f_g = jax.nn.sigmoid(g[:, 1 * G2:2 * G2])
                g_g = jnp.tanh(g[:, 2 * G2:3 * G2])
                o_g = jax.nn.sigmoid(g[:, 3 * G2:4 * G2])
                c = f_g * c + i_g * g_g
                h = o_g * jnp.tanh(c)
                h_seq.append(h)

            if l + 1 < num_layers:
                # Next layer's hoisted input projection with the time
                # re-alignment folded into (A, B):
                #   pre[s] = h_seq[s] @ A + h_seq[T-1-s] @ B + bias
                A = layer_refs[l + 1][0][...]               # (2H, 8H)
                Bm = layer_refs[l + 1][1][...]              # (2H, 8H)
                bl = layer_refs[l + 1][3][...]              # (1, 8H)
                pre = [jnp.dot(h_seq[t], A,
                               preferred_element_type=jnp.float32)
                       + jnp.dot(h_seq[T - 1 - t], Bm,
                                 preferred_element_type=jnp.float32)
                       + bl
                       for t in range(T)]

        # features = cat(h_n[-2], h_n[-1]) == final stacked h of the last layer.
        logits = (jnp.dot(h, w_out_ref[...],
                          preferred_element_type=jnp.float32)
                  + b_out_ref[...])
        out_ref[...] = logits.astype(out_ref.dtype)

    return kernel


# ------------------------------- wrappers ------------------------------------

def prepare_params(params, hidden_size):
    """One-time host-side re-layout of PyTorch-style params into kernel layout."""
    H = hidden_size

    def interleave_cols(w_t, direction):
        """(D, 4H) [i|f|g|o] -> (D, 8H) gate-major, direction-interleaved."""
        D = w_t.shape[0]
        out = jnp.zeros((D, 8 * H), jnp.float32)
        off = H if direction == "bwd" else 0
        for k in range(4):
            out = out.at[:, 2 * k * H + off: 2 * k * H + off + H].set(
                w_t[:, k * H:(k + 1) * H])
        return out

    layers = []
    for li, lp in enumerate(params["layers"]):
        pf, pb = lp["fwd"], lp["bwd"]
        wf = interleave_cols(pf["w_ih"].T, "fwd")           # (D, 8H)
        wb = interleave_cols(pb["w_ih"].T, "bwd")           # (D, 8H)
        if li == 0:
            in_f, in_b = wf, wb                             # (1, 8H)
        else:
            # Fold the fwd(t)/bwd(T-1-t) alignment of the fused recurrence into
            # the weights: pre[s] = h_seq[s] @ A + h_seq[T-1-s] @ B + bias.
            in_f = jnp.concatenate([wf[:H], wb[H:]], axis=0)   # A  (2H, 8H)
            in_b = jnp.concatenate([wb[:H], wf[H:]], axis=0)   # B  (2H, 8H)
        w_rec = jnp.concatenate([interleave_cols(pf["w_hh"].T, "fwd"),
                                 interleave_cols(pb["w_hh"].T, "bwd")],
                                axis=0)                     # (2H, 8H)
        bias = (interleave_cols((pf["b_ih"] + pf["b_hh"]).reshape(1, 4 * H),
                                "fwd")
                + interleave_cols((pb["b_ih"] + pb["b_hh"]).reshape(1, 4 * H),
                                  "bwd"))                   # (1, 8H)
        layers.append(dict(w_in_f=in_f, w_in_b=in_b, w_rec=w_rec, b=bias))

    return dict(layers=layers,
                w_out=params["out_w"].T,                    # (2H, n_class)
                b_out=params["out_b"].reshape(1, -1))       # (1, n_class)


@jax.jit
def bilstm_forward(kparams, x):
    """x: (B, T, 1) batch-first like PyTorch. Returns (B, n_class)."""
    B, T, _ = x.shape
    num_layers = len(kparams["layers"])
    H = kparams["layers"][0]["w_rec"].shape[0] // 2
    n_class = kparams["w_out"].shape[1]

    x_tb1 = jnp.transpose(x, (1, 0, 2)).astype(jnp.float32)    # (T, B, 1)

    args = [x_tb1]
    for lp in kparams["layers"]:
        args.extend([lp["w_in_f"], lp["w_in_b"], lp["w_rec"], lp["b"]])
    args.extend([kparams["w_out"], kparams["b_out"]])

    kernel = _make_bilstm_kernel(T=T, B=B, H=H, num_layers=num_layers)
    vmem = pl.BlockSpec(memory_space=pltpu.MemorySpace.VMEM)

    return pl.pallas_call(
        kernel,
        out_shape=jax.ShapeDtypeStruct((B, n_class), jnp.float32),
        in_specs=[vmem] * len(args),
        out_specs=vmem,
    )(*args)


# --------------------------- parameter init ----------------------------------

def _xavier_normal(key, shape):
    fan_out, fan_in = shape   # torch 2D: (out_features, in_features)
    std = (2.0 / (fan_in + fan_out)) ** 0.5
    return std * jax.random.normal(key, shape, dtype=jnp.float32)


def init_params(key, hidden_size, num_layers, n_class):
    params = {"layers": []}
    for layer in range(num_layers):
        d_in = 1 if layer == 0 else 2 * hidden_size
        layer_p = {}
        for direction in ("fwd", "bwd"):
            key, k1, k2 = jax.random.split(key, 3)
            layer_p[direction] = dict(
                w_ih=_xavier_normal(k1, (4 * hidden_size, d_in)),
                w_hh=_xavier_normal(k2, (4 * hidden_size, hidden_size)),
                b_ih=jnp.zeros((4 * hidden_size,), jnp.float32),
                b_hh=jnp.zeros((4 * hidden_size,), jnp.float32),
            )
        params["layers"].append(layer_p)
    key, k1 = jax.random.split(key)
    params["out_w"] = _xavier_normal(k1, (n_class, 2 * hidden_size))
    params["out_b"] = jnp.zeros((n_class,), jnp.float32)
    return params


# --------------------------- pure-JAX reference -------------------------------

_HI = lax.Precision.HIGHEST


def _lstm_dir_ref(x_tbd, w_ih, w_hh, bias):
    T, B, D = x_tbd.shape
    H = w_hh.shape[1]

    def step(carry, x_t):
        h, c = carry
        gates = (jnp.dot(x_t, w_ih.T, precision=_HI)
                 + jnp.dot(h, w_hh.T, precision=_HI) + bias)
        i = jax.nn.sigmoid(gates[:, 0 * H:1 * H])
        f = jax.nn.sigmoid(gates[:, 1 * H:2 * H])
        g = jnp.tanh(gates[:, 2 * H:3 * H])
        o = jax.nn.sigmoid(gates[:, 3 * H:4 * H])
        c = f * c + i * g
        h = o * jnp.tanh(c)
        return (h, c), h

    init = (jnp.zeros((B, H), jnp.float32), jnp.zeros((B, H), jnp.float32))
    (hT, _), hs = lax.scan(step, init, x_tbd)
    return hs, hT


def bilstm_forward_ref(params, x):
    inp = jnp.transpose(x, (1, 0, 2)).astype(jnp.float32)
    h_f = h_b = None
    for layer_p in params["layers"]:
        pf, pb = layer_p["fwd"], layer_p["bwd"]
        out_f, h_f = _lstm_dir_ref(inp, pf["w_ih"], pf["w_hh"],
                                   pf["b_ih"] + pf["b_hh"])
        out_b_rev, h_b = _lstm_dir_ref(inp[::-1], pb["w_ih"], pb["w_hh"],
                                       pb["b_ih"] + pb["b_hh"])
        inp = jnp.concatenate([out_f, out_b_rev[::-1]], axis=-1)
    feats = jnp.concatenate([h_f, h_b], axis=-1)
    return jnp.dot(feats, params["out_w"].T, precision=_HI) + params["out_b"]


# ----------------------------------- main -------------------------------------

if __name__ == "__main__":
    hidden_size = 32
    num_layers = 2
    n_class = 5
    B, T = 4, 8

    key = jax.random.PRNGKey(0)
    key, pkey, xkey = jax.random.split(key, 3)
    params = init_params(pkey, hidden_size, num_layers, n_class)
    kparams = prepare_params(params, hidden_size)          # one-time re-layout
    x = jax.random.normal(xkey, (B, T, 1), dtype=jnp.float32)

    out = jax.block_until_ready(bilstm_forward(kparams, x))
    assert out.shape == (B, n_class) and out.dtype == jnp.float32

    ref = jax.block_until_ready(bilstm_forward_ref(params, x))
    np.testing.assert_allclose(np.asarray(out), np.asarray(ref),
                               rtol=1e-3, atol=1e-4)

    print("KERNEL_OK")
</pallas_src>

<mosaic_0001>
module attributes {stable_mosaic.version = 11 : i64} {
  func.func @kernel(%arg0: memref<8x4x1xf32, #tpu.memory_space<vmem>>, %arg1: memref<1x256xf32, #tpu.memory_space<vmem>>, %arg2: memref<1x256xf32, #tpu.memory_space<vmem>>, %arg3: memref<64x256xf32, #tpu.memory_space<vmem>>, %arg4: memref<1x256xf32, #tpu.memory_space<vmem>>, %arg5: memref<64x256xf32, #tpu.memory_space<vmem>>, %arg6: memref<64x256xf32, #tpu.memory_space<vmem>>, %arg7: memref<64x256xf32, #tpu.memory_space<vmem>>, %arg8: memref<1x256xf32, #tpu.memory_space<vmem>>, %arg9: memref<64x5xf32, #tpu.memory_space<vmem>>, %arg10: memref<1x5xf32, #tpu.memory_space<vmem>>, %arg11: memref<4x5xf32, #tpu.memory_space<vmem>>) attributes {dimension_semantics = [], scalar_prefetch = 0 : i64, scratch_operands = 0 : i64, tpu.core_type = #tpu.core_type<tc>} {
    %c0 = arith.constant 0 : index
    %c0_0 = arith.constant 0 : index
    %0 = vector.load %arg1[%c0, %c0_0] : memref<1x256xf32, #tpu.memory_space<vmem>>, vector<1x256xf32>
    %c0_1 = arith.constant 0 : index
    %c0_2 = arith.constant 0 : index
    %1 = vector.load %arg2[%c0_1, %c0_2] : memref<1x256xf32, #tpu.memory_space<vmem>>, vector<1x256xf32>
    %c0_3 = arith.constant 0 : index
    %c0_4 = arith.constant 0 : index
    %2 = vector.load %arg4[%c0_3, %c0_4] : memref<1x256xf32, #tpu.memory_space<vmem>>, vector<1x256xf32>
    %c0_5 = arith.constant 0 : index
    %c0_6 = arith.constant 0 : index
    %c0_7 = arith.constant 0 : index
    %3 = vector.load %arg0[%c0_5, %c0_6, %c0_7] : memref<8x4x1xf32, #tpu.memory_space<vmem>>, vector<1x4x1xf32>
    %4 = vector.shape_cast %3 : vector<1x4x1xf32> to vector<4x1xf32>
    %c1 = arith.constant 1 : index
    %c0_8 = arith.constant 0 : index
    %c0_9 = arith.constant 0 : index
    %5 = vector.load %arg0[%c1, %c0_8, %c0_9] : memref<8x4x1xf32, #tpu.memory_space<vmem>>, vector<1x4x1xf32>
    %6 = vector.shape_cast %5 : vector<1x4x1xf32> to vector<4x1xf32>
    %c2 = arith.constant 2 : index
    %c0_10 = arith.constant 0 : index
    %c0_11 = arith.constant 0 : index
    %7 = vector.load %arg0[%c2, %c0_10, %c0_11] : memref<8x4x1xf32, #tpu.memory_space<vmem>>, vector<1x4x1xf32>
    %8 = vector.shape_cast %7 : vector<1x4x1xf32> to vector<4x1xf32>
    %c3 = arith.constant 3 : index
    %c0_12 = arith.constant 0 : index
    %c0_13 = arith.constant 0 : index
    %9 = vector.load %arg0[%c3, %c0_12, %c0_13] : memref<8x4x1xf32, #tpu.memory_space<vmem>>, vector<1x4x1xf32>
    %10 = vector.shape_cast %9 : vector<1x4x1xf32> to vector<4x1xf32>
    %c4 = arith.constant 4 : index
    %c0_14 = arith.constant 0 : index
    %c0_15 = arith.constant 0 : index
    %11 = vector.load %arg0[%c4, %c0_14, %c0_15] : memref<8x4x1xf32, #tpu.memory_space<vmem>>, vector<1x4x1xf32>
    %12 = vector.shape_cast %11 : vector<1x4x1xf32> to vector<4x1xf32>
    %c5 = arith.constant 5 : index
    %c0_16 = arith.constant 0 : index
    %c0_17 = arith.constant 0 : index
    %13 = vector.load %arg0[%c5, %c0_16, %c0_17] : memref<8x4x1xf32, #tpu.memory_space<vmem>>, vector<1x4x1xf32>
    %14 = vector.shape_cast %13 : vector<1x4x1xf32> to vector<4x1xf32>
    %c6 = arith.constant 6 : index
    %c0_18 = arith.constant 0 : index
    %c0_19 = arith.constant 0 : index
    %15 = vector.load %arg0[%c6, %c0_18, %c0_19] : memref<8x4x1xf32, #tpu.memory_space<vmem>>, vector<1x4x1xf32>
    %16 = vector.shape_cast %15 : vector<1x4x1xf32> to vector<4x1xf32>
    %c7 = arith.constant 7 : index
    %c0_20 = arith.constant 0 : index
    %c0_21 = arith.constant 0 : index
    %17 = vector.load %arg0[%c7, %c0_20, %c0_21] : memref<8x4x1xf32, #tpu.memory_space<vmem>>, vector<1x4x1xf32>
    %18 = vector.shape_cast %17 : vector<1x4x1xf32> to vector<4x1xf32>
    %19 = vector.broadcast %4 : vector<4x1xf32> to vector<4x256xf32>
    %20 = vector.broadcast %0 : vector<1x256xf32> to vector<4x256xf32>
    %21 = arith.mulf %19, %20 : vector<4x256xf32>
    %22 = vector.broadcast %18 : vector<4x1xf32> to vector<4x256xf32>
    %23 = vector.broadcast %1 : vector<1x256xf32> to vector<4x256xf32>
    %24 = arith.mulf %22, %23 : vector<4x256xf32>
    %25 = arith.addf %21, %24 : vector<4x256xf32>
    %26 = vector.broadcast %2 : vector<1x256xf32> to vector<4x256xf32>
    %27 = arith.addf %25, %26 : vector<4x256xf32>
    %28 = vector.broadcast %6 : vector<4x1xf32> to vector<4x256xf32>
    %29 = vector.broadcast %0 : vector<1x256xf32> to vector<4x256xf32>
    %30 = arith.mulf %28, %29 : vector<4x256xf32>
    %31 = vector.broadcast %16 : vector<4x1xf32> to vector<4x256xf32>
    %32 = vector.broadcast %1 : vector<1x256xf32> to vector<4x256xf32>
    %33 = arith.mulf %31, %32 : vector<4x256xf32>
    %34 = arith.addf %30, %33 : vector<4x256xf32>
    %35 = vector.broadcast %2 : vector<1x256xf32> to vector<4x256xf32>
    %36 = arith.addf %34, %35 : vector<4x256xf32>
    %37 = vector.broadcast %8 : vector<4x1xf32> to vector<4x256xf32>
    %38 = vector.broadcast %0 : vector<1x256xf32> to vector<4x256xf32>
    %39 = arith.mulf %37, %38 : vector<4x256xf32>
    %40 = vector.broadcast %14 : vector<4x1xf32> to vector<4x256xf32>
    %41 = vector.broadcast %1 : vector<1x256xf32> to vector<4x256xf32>
    %42 = arith.mulf %40, %41 : vector<4x256xf32>
    %43 = arith.addf %39, %42 : vector<4x256xf32>
    %44 = vector.broadcast %2 : vector<1x256xf32> to vector<4x256xf32>
    %45 = arith.addf %43, %44 : vector<4x256xf32>
    %46 = vector.broadcast %10 : vector<4x1xf32> to vector<4x256xf32>
    %47 = vector.broadcast %0 : vector<1x256xf32> to vector<4x256xf32>
    %48 = arith.mulf %46, %47 : vector<4x256xf32>
    %49 = vector.broadcast %12 : vector<4x1xf32> to vector<4x256xf32>
    %50 = vector.broadcast %1 : vector<1x256xf32> to vector<4x256xf32>
    %51 = arith.mulf %49, %50 : vector<4x256xf32>
    %52 = arith.addf %48, %51 : vector<4x256xf32>
    %53 = vector.broadcast %2 : vector<1x256xf32> to vector<4x256xf32>
    %54 = arith.addf %52, %53 : vector<4x256xf32>
    %55 = vector.broadcast %12 : vector<4x1xf32> to vector<4x256xf32>
    %56 = vector.broadcast %0 : vector<1x256xf32> to vector<4x256xf32>
    %57 = arith.mulf %55, %56 : vector<4x256xf32>
    %58 = vector.broadcast %10 : vector<4x1xf32> to vector<4x256xf32>
    %59 = vector.broadcast %1 : vector<1x256xf32> to vector<4x256xf32>
    %60 = arith.mulf %58, %59 : vector<4x256xf32>
    %61 = arith.addf %57, %60 : vector<4x256xf32>
    %62 = vector.broadcast %2 : vector<1x256xf32> to vector<4x256xf32>
    %63 = arith.addf %61, %62 : vector<4x256xf32>
    %64 = vector.broadcast %14 : vector<4x1xf32> to vector<4x256xf32>
    %65 = vector.broadcast %0 : vector<1x256xf32> to vector<4x256xf32>
    %66 = arith.mulf %64, %65 : vector<4x256xf32>
    %67 = vector.broadcast %8 : vector<4x1xf32> to vector<4x256xf32>
    %68 = vector.broadcast %1 : vector<1x256xf32> to vector<4x256xf32>
    %69 = arith.mulf %67, %68 : vector<4x256xf32>
    %70 = arith.addf %66, %69 : vector<4x256xf32>
    %71 = vector.broadcast %2 : vector<1x256xf32> to vector<4x256xf32>
    %72 = arith.addf %70, %71 : vector<4x256xf32>
    %73 = vector.broadcast %16 : vector<4x1xf32> to vector<4x256xf32>
    %74 = vector.broadcast %0 : vector<1x256xf32> to vector<4x256xf32>
    %75 = arith.mulf %73, %74 : vector<4x256xf32>
    %76 = vector.broadcast %6 : vector<4x1xf32> to vector<4x256xf32>
    %77 = vector.broadcast %1 : vector<1x256xf32> to vector<4x256xf32>
    %78 = arith.mulf %76, %77 : vector<4x256xf32>
    %79 = arith.addf %75, %78 : vector<4x256xf32>
    %80 = vector.broadcast %2 : vector<1x256xf32> to vector<4x256xf32>
    %81 = arith.addf %79, %80 : vector<4x256xf32>
    %82 = vector.broadcast %18 : vector<4x1xf32> to vector<4x256xf32>
    %83 = vector.broadcast %0 : vector<1x256xf32> to vector<4x256xf32>
    %84 = arith.mulf %82, %83 : vector<4x256xf32>
    %85 = vector.broadcast %4 : vector<4x1xf32> to vector<4x256xf32>
    %86 = vector.broadcast %1 : vector<1x256xf32> to vector<4x256xf32>
    %87 = arith.mulf %85, %86 : vector<4x256xf32>
    %88 = arith.addf %84, %87 : vector<4x256xf32>
    %89 = vector.broadcast %2 : vector<1x256xf32> to vector<4x256xf32>
    %90 = arith.addf %88, %89 : vector<4x256xf32>
    %c0_22 = arith.constant 0 : index
    %c0_23 = arith.constant 0 : index
    %91 = vector.load %arg3[%c0_22, %c0_23] : memref<64x256xf32, #tpu.memory_space<vmem>>, vector<64x256xf32>
    %cst = arith.constant 0.000000e+00 : f32
    %92 = vector.broadcast %cst : f32 to vector<4x64xf32>
    %cst_24 = arith.constant 0.000000e+00 : f32
    %93 = vector.broadcast %cst_24 : f32 to vector<4x64xf32>
    %cst_25 = arith.constant dense<0.000000e+00> : vector<4x256xf32>
    %94 = tpu.matmul %92, %91, %cst_25 {dimension_numbers = #tpu.dot_dimension_numbers<[1], [0], [0], [1], [0, 0, 1, 1], [], []>} : vector<4x64xf32>, vector<64x256xf32>, vector<4x256xf32> -> vector<4x256xf32>
    %95 = arith.addf %27, %94 : vector<4x256xf32>
    %96 = vector.extract_strided_slice %95 {offsets = [0, 0], sizes = [4, 64], strides = [1, 1]} : vector<4x256xf32> to vector<4x64xf32>
    %97 = arith.negf %96 : vector<4x64xf32>
    %98 = math.exp %97 : vector<4x64xf32>
    %cst_26 = arith.constant 1.000000e+00 : f32
    %99 = vector.broadcast %cst_26 : f32 to vector<4x64xf32>
    %100 = arith.addf %99, %98 : vector<4x64xf32>
    %101 = arith.divf %99, %100 : vector<4x64xf32>
    %102 = vector.extract_strided_slice %95 {offsets = [0, 64], sizes = [4, 64], strides = [1, 1]} : vector<4x256xf32> to vector<4x64xf32>
    %103 = arith.negf %102 : vector<4x64xf32>
    %104 = math.exp %103 : vector<4x64xf32>
    %cst_27 = arith.constant 1.000000e+00 : f32
    %105 = vector.broadcast %cst_27 : f32 to vector<4x64xf32>
    %106 = arith.addf %105, %104 : vector<4x64xf32>
    %107 = arith.divf %105, %106 : vector<4x64xf32>
    %108 = vector.extract_strided_slice %95 {offsets = [0, 128], sizes = [4, 64], strides = [1, 1]} : vector<4x256xf32> to vector<4x64xf32>
    %109 = math.tanh %108 : vector<4x64xf32>
    %110 = vector.extract_strided_slice %95 {offsets = [0, 192], sizes = [4, 64], strides = [1, 1]} : vector<4x256xf32> to vector<4x64xf32>
    %111 = arith.negf %110 : vector<4x64xf32>
    %112 = math.exp %111 : vector<4x64xf32>
    %cst_28 = arith.constant 1.000000e+00 : f32
    %113 = vector.broadcast %cst_28 : f32 to vector<4x64xf32>
    %114 = arith.addf %113, %112 : vector<4x64xf32>
    %115 = arith.divf %113, %114 : vector<4x64xf32>
    %116 = arith.mulf %107, %93 : vector<4x64xf32>
    %117 = arith.mulf %101, %109 : vector<4x64xf32>
    %118 = arith.addf %116, %117 : vector<4x64xf32>
    %119 = math.tanh %118 : vector<4x64xf32>
    %120 = arith.mulf %115, %119 : vector<4x64xf32>
    %cst_29 = arith.constant dense<0.000000e+00> : vector<4x256xf32>
    %121 = tpu.matmul %120, %91, %cst_29 {dimension_numbers = #tpu.dot_dimension_numbers<[1], [0], [0], [1], [0, 0, 1, 1], [], []>} : vector<4x64xf32>, vector<64x256xf32>, vector<4x256xf32> -> vector<4x256xf32>
    %122 = arith.addf %36, %121 : vector<4x256xf32>
    %123 = vector.extract_strided_slice %122 {offsets = [0, 0], sizes = [4, 64], strides = [1, 1]} : vector<4x256xf32> to vector<4x64xf32>
    %124 = arith.negf %123 : vector<4x64xf32>
    %125 = math.exp %124 : vector<4x64xf32>
    %cst_30 = arith.constant 1.000000e+00 : f32
    %126 = vector.broadcast %cst_30 : f32 to vector<4x64xf32>
    %127 = arith.addf %126, %125 : vector<4x64xf32>
    %128 = arith.divf %126, %127 : vector<4x64xf32>
    %129 = vector.extract_strided_slice %122 {offsets = [0, 64], sizes = [4, 64], strides = [1, 1]} : vector<4x256xf32> to vector<4x64xf32>
    %130 = arith.negf %129 : vector<4x64xf32>
    %131 = math.exp %130 : vector<4x64xf32>
    %cst_31 = arith.constant 1.000000e+00 : f32
    %132 = vector.broadcast %cst_31 : f32 to vector<4x64xf32>
    %133 = arith.addf %132, %131 : vector<4x64xf32>
    %134 = arith.divf %132, %133 : vector<4x64xf32>
    %135 = vector.extract_strided_slice %122 {offsets = [0, 128], sizes = [4, 64], strides = [1, 1]} : vector<4x256xf32> to vector<4x64xf32>
    %136 = math.tanh %135 : vector<4x64xf32>
    %137 = vector.extract_strided_slice %122 {offsets = [0, 192], sizes = [4, 64], strides = [1, 1]} : vector<4x256xf32> to vector<4x64xf32>
    %138 = arith.negf %137 : vector<4x64xf32>
    %139 = math.exp %138 : vector<4x64xf32>
    %cst_32 = arith.constant 1.000000e+00 : f32
    %140 = vector.broadcast %cst_32 : f32 to vector<4x64xf32>
    %141 = arith.addf %140, %139 : vector<4x64xf32>
    %142 = arith.divf %140, %141 : vector<4x64xf32>
    %143 = arith.mulf %134, %118 : vector<4x64xf32>
    %144 = arith.mulf %128, %136 : vector<4x64xf32>
    %145 = arith.addf %143, %144 : vector<4x64xf32>
    %146 = math.tanh %145 : vector<4x64xf32>
    %147 = arith.mulf %142, %146 : vector<4x64xf32>
    %cst_33 = arith.constant dense<0.000000e+00> : vector<4x256xf32>
    %148 = tpu.matmul %147, %91, %cst_33 {dimension_numbers = #tpu.dot_dimension_numbers<[1], [0], [0], [1], [0, 0, 1, 1], [], []>} : vector<4x64xf32>, vector<64x256xf32>, vector<4x256xf32> -> vector<4x256xf32>
    %149 = arith.addf %45, %148 : vector<4x256xf32>
    %150 = vector.extract_strided_slice %149 {offsets = [0, 0], sizes = [4, 64], strides = [1, 1]} : vector<4x256xf32> to vector<4x64xf32>
    %151 = arith.negf %150 : vector<4x64xf32>
    %152 = math.exp %151 : vector<4x64xf32>
    %cst_34 = arith.constant 1.000000e+00 : f32
    %153 = vector.broadcast %cst_34 : f32 to vector<4x64xf32>
    %154 = arith.addf %153, %152 : vector<4x64xf32>
    %155 = arith.divf %153, %154 : vector<4x64xf32>
    %156 = vector.extract_strided_slice %149 {offsets = [0, 64], sizes = [4, 64], strides = [1, 1]} : vector<4x256xf32> to vector<4x64xf32>
    %157 = arith.negf %156 : vector<4x64xf32>
    %158 = math.exp %157 : vector<4x64xf32>
    %cst_35 = arith.constant 1.000000e+00 : f32
    %159 = vector.broadcast %cst_35 : f32 to vector<4x64xf32>
    %160 = arith.addf %159, %158 : vector<4x64xf32>
    %161 = arith.divf %159, %160 : vector<4x64xf32>
    %162 = vector.extract_strided_slice %149 {offsets = [0, 128], sizes = [4, 64], strides = [1, 1]} : vector<4x256xf32> to vector<4x64xf32>
    %163 = math.tanh %162 : vector<4x64xf32>
    %164 = vector.extract_strided_slice %149 {offsets = [0, 192], sizes = [4, 64], strides = [1, 1]} : vector<4x256xf32> to vector<4x64xf32>
    %165 = arith.negf %164 : vector<4x64xf32>
    %166 = math.exp %165 : vector<4x64xf32>
    %cst_36 = arith.constant 1.000000e+00 : f32
    %167 = vector.broadcast %cst_36 : f32 to vector<4x64xf32>
    %168 = arith.addf %167, %166 : vector<4x64xf32>
    %169 = arith.divf %167, %168 : vector<4x64xf32>
    %170 = arith.mulf %161, %145 : vector<4x64xf32>
    %171 = arith.mulf %155, %163 : vector<4x64xf32>
    %172 = arith.addf %170, %171 : vector<4x64xf32>
    %173 = math.tanh %172 : vector<4x64xf32>
    %174 = arith.mulf %169, %173 : vector<4x64xf32>
    %cst_37 = arith.constant dense<0.000000e+00> : vector<4x256xf32>
    %175 = tpu.matmul %174, %91, %cst_37 {dimension_numbers = #tpu.dot_dimension_numbers<[1], [0], [0], [1], [0, 0, 1, 1], [], []>} : vector<4x64xf32>, vector<64x256xf32>, vector<4x256xf32> -> vector<4x256xf32>
    %176 = arith.addf %54, %175 : vector<4x256xf32>
    %177 = vector.extract_strided_slice %176 {offsets = [0, 0], sizes = [4, 64], strides = [1, 1]} : vector<4x256xf32> to vector<4x64xf32>
    %178 = arith.negf %177 : vector<4x64xf32>
    %179 = math.exp %178 : vector<4x64xf32>
    %cst_38 = arith.constant 1.000000e+00 : f32
    %180 = vector.broadcast %cst_38 : f32 to vector<4x64xf32>
    %181 = arith.addf %180, %179 : vector<4x64xf32>
    %182 = arith.divf %180, %181 : vector<4x64xf32>
    %183 = vector.extract_strided_slice %176 {offsets = [0, 64], sizes = [4, 64], strides = [1, 1]} : vector<4x256xf32> to vector<4x64xf32>
    %184 = arith.negf %183 : vector<4x64xf32>
    %185 = math.exp %184 : vector<4x64xf32>
    %cst_39 = arith.constant 1.000000e+00 : f32
    %186 = vector.broadcast %cst_39 : f32 to vector<4x64xf32>
    %187 = arith.addf %186, %185 : vector<4x64xf32>
    %188 = arith.divf %186, %187 : vector<4x64xf32>
    %189 = vector.extract_strided_slice %176 {offsets = [0, 128], sizes = [4, 64], strides = [1, 1]} : vector<4x256xf32> to vector<4x64xf32>
    %190 = math.tanh %189 : vector<4x64xf32>
    %191 = vector.extract_strided_slice %176 {offsets = [0, 192], sizes = [4, 64], strides = [1, 1]} : vector<4x256xf32> to vector<4x64xf32>
    %192 = arith.negf %191 : vector<4x64xf32>
    %193 = math.exp %192 : vector<4x64xf32>
    %cst_40 = arith.constant 1.000000e+00 : f32
    %194 = vector.broadcast %cst_40 : f32 to vector<4x64xf32>
    %195 = arith.addf %194, %193 : vector<4x64xf32>
    %196 = arith.divf %194, %195 : vector<4x64xf32>
    %197 = arith.mulf %188, %172 : vector<4x64xf32>
    %198 = arith.mulf %182, %190 : vector<4x64xf32>
    %199 = arith.addf %197, %198 : vector<4x64xf32>
    %200 = math.tanh %199 : vector<4x64xf32>
    %201 = arith.mulf %196, %200 : vector<4x64xf32>
    %cst_41 = arith.constant dense<0.000000e+00> : vector<4x256xf32>
    %202 = tpu.matmul %201, %91, %cst_41 {dimension_numbers = #tpu.dot_dimension_numbers<[1], [0], [0], [1], [0, 0, 1, 1], [], []>} : vector<4x64xf32>, vector<64x256xf32>, vector<4x256xf32> -> vector<4x256xf32>
    %203 = arith.addf %63, %202 : vector<4x256xf32>
    %204 = vector.extract_strided_slice %203 {offsets = [0, 0], sizes = [4, 64], strides = [1, 1]} : vector<4x256xf32> to vector<4x64xf32>
    %205 = arith.negf %204 : vector<4x64xf32>
    %206 = math.exp %205 : vector<4x64xf32>
    %cst_42 = arith.constant 1.000000e+00 : f32
    %207 = vector.broadcast %cst_42 : f32 to vector<4x64xf32>
    %208 = arith.addf %207, %206 : vector<4x64xf32>
    %209 = arith.divf %207, %208 : vector<4x64xf32>
    %210 = vector.extract_strided_slice %203 {offsets = [0, 64], sizes = [4, 64], strides = [1, 1]} : vector<4x256xf32> to vector<4x64xf32>
    %211 = arith.negf %210 : vector<4x64xf32>
    %212 = math.exp %211 : vector<4x64xf32>
    %cst_43 = arith.constant 1.000000e+00 : f32
    %213 = vector.broadcast %cst_43 : f32 to vector<4x64xf32>
    %214 = arith.addf %213, %212 : vector<4x64xf32>
    %215 = arith.divf %213, %214 : vector<4x64xf32>
    %216 = vector.extract_strided_slice %203 {offsets = [0, 128], sizes = [4, 64], strides = [1, 1]} : vector<4x256xf32> to vector<4x64xf32>
    %217 = math.tanh %216 : vector<4x64xf32>
    %218 = vector.extract_strided_slice %203 {offsets = [0, 192], sizes = [4, 64], strides = [1, 1]} : vector<4x256xf32> to vector<4x64xf32>
    %219 = arith.negf %218 : vector<4x64xf32>
    %220 = math.exp %219 : vector<4x64xf32>
    %cst_44 = arith.constant 1.000000e+00 : f32
    %221 = vector.broadcast %cst_44 : f32 to vector<4x64xf32>
    %222 = arith.addf %221, %220 : vector<4x64xf32>
    %223 = arith.divf %221, %222 : vector<4x64xf32>
    %224 = arith.mulf %215, %199 : vector<4x64xf32>
    %225 = arith.mulf %209, %217 : vector<4x64xf32>
    %226 = arith.addf %224, %225 : vector<4x64xf32>
    %227 = math.tanh %226 : vector<4x64xf32>
    %228 = arith.mulf %223, %227 : vector<4x64xf32>
    %cst_45 = arith.constant dense<0.000000e+00> : vector<4x256xf32>
    %229 = tpu.matmul %228, %91, %cst_45 {dimension_numbers = #tpu.dot_dimension_numbers<[1], [0], [0], [1], [0, 0, 1, 1], [], []>} : vector<4x64xf32>, vector<64x256xf32>, vector<4x256xf32> -> vector<4x256xf32>
    %230 = arith.addf %72, %229 : vector<4x256xf32>
    %231 = vector.extract_strided_slice %230 {offsets = [0, 0], sizes = [4, 64], strides = [1, 1]} : vector<4x256xf32> to vector<4x64xf32>
    %232 = arith.negf %231 : vector<4x64xf32>
    %233 = math.exp %232 : vector<4x64xf32>
    %cst_46 = arith.constant 1.000000e+00 : f32
    %234 = vector.broadcast %cst_46 : f32 to vector<4x64xf32>
    %235 = arith.addf %234, %233 : vector<4x64xf32>
    %236 = arith.divf %234, %235 : vector<4x64xf32>
    %237 = vector.extract_strided_slice %230 {offsets = [0, 64], sizes = [4, 64], strides = [1, 1]} : vector<4x256xf32> to vector<4x64xf32>
    %238 = arith.negf %237 : vector<4x64xf32>
    %239 = math.exp %238 : vector<4x64xf32>
    %cst_47 = arith.constant 1.000000e+00 : f32
    %240 = vector.broadcast %cst_47 : f32 to vector<4x64xf32>
    %241 = arith.addf %240, %239 : vector<4x64xf32>
    %242 = arith.divf %240, %241 : vector<4x64xf32>
    %243 = vector.extract_strided_slice %230 {offsets = [0, 128], sizes = [4, 64], strides = [1, 1]} : vector<4x256xf32> to vector<4x64xf32>
    %244 = math.tanh %243 : vector<4x64xf32>
    %245 = vector.extract_strided_slice %230 {offsets = [0, 192], sizes = [4, 64], strides = [1, 1]} : vector<4x256xf32> to vector<4x64xf32>
    %246 = arith.negf %245 : vector<4x64xf32>
    %247 = math.exp %246 : vector<4x64xf32>
    %cst_48 = arith.constant 1.000000e+00 : f32
    %248 = vector.broadcast %cst_48 : f32 to vector<4x64xf32>
    %249 = arith.addf %248, %247 : vector<4x64xf32>
    %250 = arith.divf %248, %249 : vector<4x64xf32>
    %251 = arith.mulf %242, %226 : vector<4x64xf32>
    %252 = arith.mulf %236, %244 : vector<4x64xf32>
    %253 = arith.addf %251, %252 : vector<4x64xf32>
    %254 = math.tanh %253 : vector<4x64xf32>
    %255 = arith.mulf %250, %254 : vector<4x64xf32>
    %cst_49 = arith.constant dense<0.000000e+00> : vector<4x256xf32>
    %256 = tpu.matmul %255, %91, %cst_49 {dimension_numbers = #tpu.dot_dimension_numbers<[1], [0], [0], [1], [0, 0, 1, 1], [], []>} : vector<4x64xf32>, vector<64x256xf32>, vector<4x256xf32> -> vector<4x256xf32>
    %257 = arith.addf %81, %256 : vector<4x256xf32>
    %258 = vector.extract_strided_slice %257 {offsets = [0, 0], sizes = [4, 64], strides = [1, 1]} : vector<4x256xf32> to vector<4x64xf32>
    %259 = arith.negf %258 : vector<4x64xf32>
    %260 = math.exp %259 : vector<4x64xf32>
    %cst_50 = arith.constant 1.000000e+00 : f32
    %261 = vector.broadcast %cst_50 : f32 to vector<4x64xf32>
    %262 = arith.addf %261, %260 : vector<4x64xf32>
    %263 = arith.divf %261, %262 : vector<4x64xf32>
    %264 = vector.extract_strided_slice %257 {offsets = [0, 64], sizes = [4, 64], strides = [1, 1]} : vector<4x256xf32> to vector<4x64xf32>
    %265 = arith.negf %264 : vector<4x64xf32>
    %266 = math.exp %265 : vector<4x64xf32>
    %cst_51 = arith.constant 1.000000e+00 : f32
    %267 = vector.broadcast %cst_51 : f32 to vector<4x64xf32>
    %268 = arith.addf %267, %266 : vector<4x64xf32>
    %269 = arith.divf %267, %268 : vector<4x64xf32>
    %270 = vector.extract_strided_slice %257 {offsets = [0, 128], sizes = [4, 64], strides = [1, 1]} : vector<4x256xf32> to vector<4x64xf32>
    %271 = math.tanh %270 : vector<4x64xf32>
    %272 = vector.extract_strided_slice %257 {offsets = [0, 192], sizes = [4, 64], strides = [1, 1]} : vector<4x256xf32> to vector<4x64xf32>
    %273 = arith.negf %272 : vector<4x64xf32>
    %274 = math.exp %273 : vector<4x64xf32>
    %cst_52 = arith.constant 1.000000e+00 : f32
    %275 = vector.broadcast %cst_52 : f32 to vector<4x64xf32>
    %276 = arith.addf %275, %274 : vector<4x64xf32>
    %277 = arith.divf %275, %276 : vector<4x64xf32>
    %278 = arith.mulf %269, %253 : vector<4x64xf32>
    %279 = arith.mulf %263, %271 : vector<4x64xf32>
    %280 = arith.addf %278, %279 : vector<4x64xf32>
    %281 = math.tanh %280 : vector<4x64xf32>
    %282 = arith.mulf %277, %281 : vector<4x64xf32>
    %cst_53 = arith.constant dense<0.000000e+00> : vector<4x256xf32>
    %283 = tpu.matmul %282, %91, %cst_53 {dimension_numbers = #tpu.dot_dimension_numbers<[1], [0], [0], [1], [0, 0, 1, 1], [], []>} : vector<4x64xf32>, vector<64x256xf32>, vector<4x256xf32> -> vector<4x256xf32>
    %284 = arith.addf %90, %283 : vector<4x256xf32>
    %285 = vector.extract_strided_slice %284 {offsets = [0, 0], sizes = [4, 64], strides = [1, 1]} : vector<4x256xf32> to vector<4x64xf32>
    %286 = arith.negf %285 : vector<4x64xf32>
    %287 = math.exp %286 : vector<4x64xf32>
    %cst_54 = arith.constant 1.000000e+00 : f32
    %288 = vector.broadcast %cst_54 : f32 to vector<4x64xf32>
    %289 = arith.addf %288, %287 : vector<4x64xf32>
    %290 = arith.divf %288, %289 : vector<4x64xf32>
    %291 = vector.extract_strided_slice %284 {offsets = [0, 64], sizes = [4, 64], strides = [1, 1]} : vector<4x256xf32> to vector<4x64xf32>
    %292 = arith.negf %291 : vector<4x64xf32>
    %293 = math.exp %292 : vector<4x64xf32>
    %cst_55 = arith.constant 1.000000e+00 : f32
    %294 = vector.broadcast %cst_55 : f32 to vector<4x64xf32>
    %295 = arith.addf %294, %293 : vector<4x64xf32>
    %296 = arith.divf %294, %295 : vector<4x64xf32>
    %297 = vector.extract_strided_slice %284 {offsets = [0, 128], sizes = [4, 64], strides = [1, 1]} : vector<4x256xf32> to vector<4x64xf32>
    %298 = math.tanh %297 : vector<4x64xf32>
    %299 = vector.extract_strided_slice %284 {offsets = [0, 192], sizes = [4, 64], strides = [1, 1]} : vector<4x256xf32> to vector<4x64xf32>
    %300 = arith.negf %299 : vector<4x64xf32>
    %301 = math.exp %300 : vector<4x64xf32>
    %cst_56 = arith.constant 1.000000e+00 : f32
    %302 = vector.broadcast %cst_56 : f32 to vector<4x64xf32>
    %303 = arith.addf %302, %301 : vector<4x64xf32>
    %304 = arith.divf %302, %303 : vector<4x64xf32>
    %305 = arith.mulf %296, %280 : vector<4x64xf32>
    %306 = arith.mulf %290, %298 : vector<4x64xf32>
    %307 = arith.addf %305, %306 : vector<4x64xf32>
    %308 = math.tanh %307 : vector<4x64xf32>
    %309 = arith.mulf %304, %308 : vector<4x64xf32>
    %c0_57 = arith.constant 0 : index
    %c0_58 = arith.constant 0 : index
    %310 = vector.load %arg5[%c0_57, %c0_58] : memref<64x256xf32, #tpu.memory_space<vmem>>, vector<64x256xf32>
    %c0_59 = arith.constant 0 : index
    %c0_60 = arith.constant 0 : index
    %311 = vector.load %arg6[%c0_59, %c0_60] : memref<64x256xf32, #tpu.memory_space<vmem>>, vector<64x256xf32>
    %c0_61 = arith.constant 0 : index
    %c0_62 = arith.constant 0 : index
    %312 = vector.load %arg8[%c0_61, %c0_62] : memref<1x256xf32, #tpu.memory_space<vmem>>, vector<1x256xf32>
    %cst_63 = arith.constant dense<0.000000e+00> : vector<4x256xf32>
    %313 = tpu.matmul %120, %310, %cst_63 {dimension_numbers = #tpu.dot_dimension_numbers<[1], [0], [0], [1], [0, 0, 1, 1], [], []>} : vector<4x64xf32>, vector<64x256xf32>, vector<4x256xf32> -> vector<4x256xf32>
    %cst_64 = arith.constant dense<0.000000e+00> : vector<4x256xf32>
    %314 = tpu.matmul %309, %311, %cst_64 {dimension_numbers = #tpu.dot_dimension_numbers<[1], [0], [0], [1], [0, 0, 1, 1], [], []>} : vector<4x64xf32>, vector<64x256xf32>, vector<4x256xf32> -> vector<4x256xf32>
    %315 = arith.addf %313, %314 : vector<4x256xf32>
    %316 = vector.broadcast %312 : vector<1x256xf32> to vector<4x256xf32>
    %317 = arith.addf %315, %316 : vector<4x256xf32>
    %cst_65 = arith.constant dense<0.000000e+00> : vector<4x256xf32>
    %318 = tpu.matmul %147, %310, %cst_65 {dimension_numbers = #tpu.dot_dimension_numbers<[1], [0], [0], [1], [0, 0, 1, 1], [], []>} : vector<4x64xf32>, vector<64x256xf32>, vector<4x256xf32> -> vector<4x256xf32>
    %cst_66 = arith.constant dense<0.000000e+00> : vector<4x256xf32>
    %319 = tpu.matmul %282, %311, %cst_66 {dimension_numbers = #tpu.dot_dimension_numbers<[1], [0], [0], [1], [0, 0, 1, 1], [], []>} : vector<4x64xf32>, vector<64x256xf32>, vector<4x256xf32> -> vector<4x256xf32>
    %320 = arith.addf %318, %319 : vector<4x256xf32>
    %321 = vector.broadcast %312 : vector<1x256xf32> to vector<4x256xf32>
    %322 = arith.addf %320, %321 : vector<4x256xf32>
    %cst_67 = arith.constant dense<0.000000e+00> : vector<4x256xf32>
    %323 = tpu.matmul %174, %310, %cst_67 {dimension_numbers = #tpu.dot_dimension_numbers<[1], [0], [0], [1], [0, 0, 1, 1], [], []>} : vector<4x64xf32>, vector<64x256xf32>, vector<4x256xf32> -> vector<4x256xf32>
    %cst_68 = arith.constant dense<0.000000e+00> : vector<4x256xf32>
    %324 = tpu.matmul %255, %311, %cst_68 {dimension_numbers = #tpu.dot_dimension_numbers<[1], [0], [0], [1], [0, 0, 1, 1], [], []>} : vector<4x64xf32>, vector<64x256xf32>, vector<4x256xf32> -> vector<4x256xf32>
    %325 = arith.addf %323, %324 : vector<4x256xf32>
    %326 = vector.broadcast %312 : vector<1x256xf32> to vector<4x256xf32>
    %327 = arith.addf %325, %326 : vector<4x256xf32>
    %cst_69 = arith.constant dense<0.000000e+00> : vector<4x256xf32>
    %328 = tpu.matmul %201, %310, %cst_69 {dimension_numbers = #tpu.dot_dimension_numbers<[1], [0], [0], [1], [0, 0, 1, 1], [], []>} : vector<4x64xf32>, vector<64x256xf32>, vector<4x256xf32> -> vector<4x256xf32>
    %cst_70 = arith.constant dense<0.000000e+00> : vector<4x256xf32>
    %329 = tpu.matmul %228, %311, %cst_70 {dimension_numbers = #tpu.dot_dimension_numbers<[1], [0], [0], [1], [0, 0, 1, 1], [], []>} : vector<4x64xf32>, vector<64x256xf32>, vector<4x256xf32> -> vector<4x256xf32>
    %330 = arith.addf %328, %329 : vector<4x256xf32>
    %331 = vector.broadcast %312 : vector<1x256xf32> to vector<4x256xf32>
    %332 = arith.addf %330, %331 : vector<4x256xf32>
    %cst_71 = arith.constant dense<0.000000e+00> : vector<4x256xf32>
    %333 = tpu.matmul %228, %310, %cst_71 {dimension_numbers = #tpu.dot_dimension_numbers<[1], [0], [0], [1], [0, 0, 1, 1], [], []>} : vector<4x64xf32>, vector<64x256xf32>, vector<4x256xf32> -> vector<4x256xf32>
    %cst_72 = arith.constant dense<0.000000e+00> : vector<4x256xf32>
    %334 = tpu.matmul %201, %311, %cst_72 {dimension_numbers = #tpu.dot_dimension_numbers<[1], [0], [0], [1], [0, 0, 1, 1], [], []>} : vector<4x64xf32>, vector<64x256xf32>, vector<4x256xf32> -> vector<4x256xf32>
    %335 = arith.addf %333, %334 : vector<4x256xf32>
    %336 = vector.broadcast %312 : vector<1x256xf32> to vector<4x256xf32>
    %337 = arith.addf %335, %336 : vector<4x256xf32>
    %cst_73 = arith.constant dense<0.000000e+00> : vector<4x256xf32>
    %338 = tpu.matmul %255, %310, %cst_73 {dimension_numbers = #tpu.dot_dimension_numbers<[1], [0], [0], [1], [0, 0, 1, 1], [], []>} : vector<4x64xf32>, vector<64x256xf32>, vector<4x256xf32> -> vector<4x256xf32>
    %cst_74 = arith.constant dense<0.000000e+00> : vector<4x256xf32>
    %339 = tpu.matmul %174, %311, %cst_74 {dimension_numbers = #tpu.dot_dimension_numbers<[1], [0], [0], [1], [0, 0, 1, 1], [], []>} : vector<4x64xf32>, vector<64x256xf32>, vector<4x256xf32> -> vector<4x256xf32>
    %340 = arith.addf %338, %339 : vector<4x256xf32>
    %341 = vector.broadcast %312 : vector<1x256xf32> to vector<4x256xf32>
    %342 = arith.addf %340, %341 : vector<4x256xf32>
    %cst_75 = arith.constant dense<0.000000e+00> : vector<4x256xf32>
    %343 = tpu.matmul %282, %310, %cst_75 {dimension_numbers = #tpu.dot_dimension_numbers<[1], [0], [0], [1], [0, 0, 1, 1], [], []>} : vector<4x64xf32>, vector<64x256xf32>, vector<4x256xf32> -> vector<4x256xf32>
    %cst_76 = arith.constant dense<0.000000e+00> : vector<4x256xf32>
    %344 = tpu.matmul %147, %311, %cst_76 {dimension_numbers = #tpu.dot_dimension_numbers<[1], [0], [0], [1], [0, 0, 1, 1], [], []>} : vector<4x64xf32>, vector<64x256xf32>, vector<4x256xf32> -> vector<4x256xf32>
    %345 = arith.addf %343, %344 : vector<4x256xf32>
    %346 = vector.broadcast %312 : vector<1x256xf32> to vector<4x256xf32>
    %347 = arith.addf %345, %346 : vector<4x256xf32>
    %cst_77 = arith.constant dense<0.000000e+00> : vector<4x256xf32>
    %348 = tpu.matmul %309, %310, %cst_77 {dimension_numbers = #tpu.dot_dimension_numbers<[1], [0], [0], [1], [0, 0, 1, 1], [], []>} : vector<4x64xf32>, vector<64x256xf32>, vector<4x256xf32> -> vector<4x256xf32>
    %cst_78 = arith.constant dense<0.000000e+00> : vector<4x256xf32>
    %349 = tpu.matmul %120, %311, %cst_78 {dimension_numbers = #tpu.dot_dimension_numbers<[1], [0], [0], [1], [0, 0, 1, 1], [], []>} : vector<4x64xf32>, vector<64x256xf32>, vector<4x256xf32> -> vector<4x256xf32>
    %350 = arith.addf %348, %349 : vector<4x256xf32>
    %351 = vector.broadcast %312 : vector<1x256xf32> to vector<4x256xf32>
    %352 = arith.addf %350, %351 : vector<4x256xf32>
    %c0_79 = arith.constant 0 : index
    %c0_80 = arith.constant 0 : index
    %353 = vector.load %arg7[%c0_79, %c0_80] : memref<64x256xf32, #tpu.memory_space<vmem>>, vector<64x256xf32>
    %cst_81 = arith.constant 0.000000e+00 : f32
    %354 = vector.broadcast %cst_81 : f32 to vector<4x64xf32>
    %cst_82 = arith.constant 0.000000e+00 : f32
    %355 = vector.broadcast %cst_82 : f32 to vector<4x64xf32>
    %cst_83 = arith.constant dense<0.000000e+00> : vector<4x256xf32>
    %356 = tpu.matmul %354, %353, %cst_83 {dimension_numbers = #tpu.dot_dimension_numbers<[1], [0], [0], [1], [0, 0, 1, 1], [], []>} : vector<4x64xf32>, vector<64x256xf32>, vector<4x256xf32> -> vector<4x256xf32>
    %357 = arith.addf %317, %356 : vector<4x256xf32>
    %358 = vector.extract_strided_slice %357 {offsets = [0, 0], sizes = [4, 64], strides = [1, 1]} : vector<4x256xf32> to vector<4x64xf32>
    %359 = arith.negf %358 : vector<4x64xf32>
    %360 = math.exp %359 : vector<4x64xf32>
    %cst_84 = arith.constant 1.000000e+00 : f32
    %361 = vector.broadcast %cst_84 : f32 to vector<4x64xf32>
    %362 = arith.addf %361, %360 : vector<4x64xf32>
    %363 = arith.divf %361, %362 : vector<4x64xf32>
    %364 = vector.extract_strided_slice %357 {offsets = [0, 64], sizes = [4, 64], strides = [1, 1]} : vector<4x256xf32> to vector<4x64xf32>
    %365 = arith.negf %364 : vector<4x64xf32>
    %366 = math.exp %365 : vector<4x64xf32>
    %cst_85 = arith.constant 1.000000e+00 : f32
    %367 = vector.broadcast %cst_85 : f32 to vector<4x64xf32>
    %368 = arith.addf %367, %366 : vector<4x64xf32>
    %369 = arith.divf %367, %368 : vector<4x64xf32>
    %370 = vector.extract_strided_slice %357 {offsets = [0, 128], sizes = [4, 64], strides = [1, 1]} : vector<4x256xf32> to vector<4x64xf32>
    %371 = math.tanh %370 : vector<4x64xf32>
    %372 = vector.extract_strided_slice %357 {offsets = [0, 192], sizes = [4, 64], strides = [1, 1]} : vector<4x256xf32> to vector<4x64xf32>
    %373 = arith.negf %372 : vector<4x64xf32>
    %374 = math.exp %373 : vector<4x64xf32>
    %cst_86 = arith.constant 1.000000e+00 : f32
    %375 = vector.broadcast %cst_86 : f32 to vector<4x64xf32>
    %376 = arith.addf %375, %374 : vector<4x64xf32>
    %377 = arith.divf %375, %376 : vector<4x64xf32>
    %378 = arith.mulf %369, %355 : vector<4x64xf32>
    %379 = arith.mulf %363, %371 : vector<4x64xf32>
    %380 = arith.addf %378, %379 : vector<4x64xf32>
    %381 = math.tanh %380 : vector<4x64xf32>
    %382 = arith.mulf %377, %381 : vector<4x64xf32>
    %cst_87 = arith.constant dense<0.000000e+00> : vector<4x256xf32>
    %383 = tpu.matmul %382, %353, %cst_87 {dimension_numbers = #tpu.dot_dimension_numbers<[1], [0], [0], [1], [0, 0, 1, 1], [], []>} : vector<4x64xf32>, vector<64x256xf32>, vector<4x256xf32> -> vector<4x256xf32>
    %384 = arith.addf %322, %383 : vector<4x256xf32>
    %385 = vector.extract_strided_slice %384 {offsets = [0, 0], sizes = [4, 64], strides = [1, 1]} : vector<4x256xf32> to vector<4x64xf32>
    %386 = arith.negf %385 : vector<4x64xf32>
    %387 = math.exp %386 : vector<4x64xf32>
    %cst_88 = arith.constant 1.000000e+00 : f32
    %388 = vector.broadcast %cst_88 : f32 to vector<4x64xf32>
    %389 = arith.addf %388, %387 : vector<4x64xf32>
    %390 = arith.divf %388, %389 : vector<4x64xf32>
    %391 = vector.extract_strided_slice %384 {offsets = [0, 64], sizes = [4, 64], strides = [1, 1]} : vector<4x256xf32> to vector<4x64xf32>
    %392 = arith.negf %391 : vector<4x64xf32>
    %393 = math.exp %392 : vector<4x64xf32>
    %cst_89 = arith.constant 1.000000e+00 : f32
    %394 = vector.broadcast %cst_89 : f32 to vector<4x64xf32>
    %395 = arith.addf %394, %393 : vector<4x64xf32>
    %396 = arith.divf %394, %395 : vector<4x64xf32>
    %397 = vector.extract_strided_slice %384 {offsets = [0, 128], sizes = [4, 64], strides = [1, 1]} : vector<4x256xf32> to vector<4x64xf32>
    %398 = math.tanh %397 : vector<4x64xf32>
    %399 = vector.extract_strided_slice %384 {offsets = [0, 192], sizes = [4, 64], strides = [1, 1]} : vector<4x256xf32> to vector<4x64xf32>
    %400 = arith.negf %399 : vector<4x64xf32>
    %401 = math.exp %400 : vector<4x64xf32>
    %cst_90 = arith.constant 1.000000e+00 : f32
    %402 = vector.broadcast %cst_90 : f32 to vector<4x64xf32>
    %403 = arith.addf %402, %401 : vector<4x64xf32>
    %404 = arith.divf %402, %403 : vector<4x64xf32>
    %405 = arith.mulf %396, %380 : vector<4x64xf32>
    %406 = arith.mulf %390, %398 : vector<4x64xf32>
    %407 = arith.addf %405, %406 : vector<4x64xf32>
    %408 = math.tanh %407 : vector<4x64xf32>
    %409 = arith.mulf %404, %408 : vector<4x64xf32>
    %cst_91 = arith.constant dense<0.000000e+00> : vector<4x256xf32>
    %410 = tpu.matmul %409, %353, %cst_91 {dimension_numbers = #tpu.dot_dimension_numbers<[1], [0], [0], [1], [0, 0, 1, 1], [], []>} : vector<4x64xf32>, vector<64x256xf32>, vector<4x256xf32> -> vector<4x256xf32>
    %411 = arith.addf %327, %410 : vector<4x256xf32>
    %412 = vector.extract_strided_slice %411 {offsets = [0, 0], sizes = [4, 64], strides = [1, 1]} : vector<4x256xf32> to vector<4x64xf32>
    %413 = arith.negf %412 : vector<4x64xf32>
    %414 = math.exp %413 : vector<4x64xf32>
    %cst_92 = arith.constant 1.000000e+00 : f32
    %415 = vector.broadcast %cst_92 : f32 to vector<4x64xf32>
    %416 = arith.addf %415, %414 : vector<4x64xf32>
    %417 = arith.divf %415, %416 : vector<4x64xf32>
    %418 = vector.extract_strided_slice %411 {offsets = [0, 64], sizes = [4, 64], strides = [1, 1]} : vector<4x256xf32> to vector<4x64xf32>
    %419 = arith.negf %418 : vector<4x64xf32>
    %420 = math.exp %419 : vector<4x64xf32>
    %cst_93 = arith.constant 1.000000e+00 : f32
    %421 = vector.broadcast %cst_93 : f32 to vector<4x64xf32>
    %422 = arith.addf %421, %420 : vector<4x64xf32>
    %423 = arith.divf %421, %422 : vector<4x64xf32>
    %424 = vector.extract_strided_slice %411 {offsets = [0, 128], sizes = [4, 64], strides = [1, 1]} : vector<4x256xf32> to vector<4x64xf32>
    %425 = math.tanh %424 : vector<4x64xf32>
    %426 = vector.extract_strided_slice %411 {offsets = [0, 192], sizes = [4, 64], strides = [1, 1]} : vector<4x256xf32> to vector<4x64xf32>
    %427 = arith.negf %426 : vector<4x64xf32>
    %428 = math.exp %427 : vector<4x64xf32>
    %cst_94 = arith.constant 1.000000e+00 : f32
    %429 = vector.broadcast %cst_94 : f32 to vector<4x64xf32>
    %430 = arith.addf %429, %428 : vector<4x64xf32>
    %431 = arith.divf %429, %430 : vector<4x64xf32>
    %432 = arith.mulf %423, %407 : vector<4x64xf32>
    %433 = arith.mulf %417, %425 : vector<4x64xf32>
    %434 = arith.addf %432, %433 : vector<4x64xf32>
    %435 = math.tanh %434 : vector<4x64xf32>
    %436 = arith.mulf %431, %435 : vector<4x64xf32>
    %cst_95 = arith.constant dense<0.000000e+00> : vector<4x256xf32>
    %437 = tpu.matmul %436, %353, %cst_95 {dimension_numbers = #tpu.dot_dimension_numbers<[1], [0], [0], [1], [0, 0, 1, 1], [], []>} : vector<4x64xf32>, vector<64x256xf32>, vector<4x256xf32> -> vector<4x256xf32>
    %438 = arith.addf %332, %437 : vector<4x256xf32>
    %439 = vector.extract_strided_slice %438 {offsets = [0, 0], sizes = [4, 64], strides = [1, 1]} : vector<4x256xf32> to vector<4x64xf32>
    %440 = arith.negf %439 : vector<4x64xf32>
    %441 = math.exp %440 : vector<4x64xf32>
    %cst_96 = arith.constant 1.000000e+00 : f32
    %442 = vector.broadcast %cst_96 : f32 to vector<4x64xf32>
    %443 = arith.addf %442, %441 : vector<4x64xf32>
    %444 = arith.divf %442, %443 : vector<4x64xf32>
    %445 = vector.extract_strided_slice %438 {offsets = [0, 64], sizes = [4, 64], strides = [1, 1]} : vector<4x256xf32> to vector<4x64xf32>
    %446 = arith.negf %445 : vector<4x64xf32>
    %447 = math.exp %446 : vector<4x64xf32>
    %cst_97 = arith.constant 1.000000e+00 : f32
    %448 = vector.broadcast %cst_97 : f32 to vector<4x64xf32>
    %449 = arith.addf %448, %447 : vector<4x64xf32>
    %450 = arith.divf %448, %449 : vector<4x64xf32>
    %451 = vector.extract_strided_slice %438 {offsets = [0, 128], sizes = [4, 64], strides = [1, 1]} : vector<4x256xf32> to vector<4x64xf32>
    %452 = math.tanh %451 : vector<4x64xf32>
    %453 = vector.extract_strided_slice %438 {offsets = [0, 192], sizes = [4, 64], strides = [1, 1]} : vector<4x256xf32> to vector<4x64xf32>
    %454 = arith.negf %453 : vector<4x64xf32>
    %455 = math.exp %454 : vector<4x64xf32>
    %cst_98 = arith.constant 1.000000e+00 : f32
    %456 = vector.broadcast %cst_98 : f32 to vector<4x64xf32>
    %457 = arith.addf %456, %455 : vector<4x64xf32>
    %458 = arith.divf %456, %457 : vector<4x64xf32>
    %459 = arith.mulf %450, %434 : vector<4x64xf32>
    %460 = arith.mulf %444, %452 : vector<4x64xf32>
    %461 = arith.addf %459, %460 : vector<4x64xf32>
    %462 = math.tanh %461 : vector<4x64xf32>
    %463 = arith.mulf %458, %462 : vector<4x64xf32>
    %cst_99 = arith.constant dense<0.000000e+00> : vector<4x256xf32>
    %464 = tpu.matmul %463, %353, %cst_99 {dimension_numbers = #tpu.dot_dimension_numbers<[1], [0], [0], [1], [0, 0, 1, 1], [], []>} : vector<4x64xf32>, vector<64x256xf32>, vector<4x256xf32> -> vector<4x256xf32>
    %465 = arith.addf %337, %464 : vector<4x256xf32>
    %466 = vector.extract_strided_slice %465 {offsets = [0, 0], sizes = [4, 64], strides = [1, 1]} : vector<4x256xf32> to vector<4x64xf32>
    %467 = arith.negf %466 : vector<4x64xf32>
    %468 = math.exp %467 : vector<4x64xf32>
    %cst_100 = arith.constant 1.000000e+00 : f32
    %469 = vector.broadcast %cst_100 : f32 to vector<4x64xf32>
    %470 = arith.addf %469, %468 : vector<4x64xf32>
    %471 = arith.divf %469, %470 : vector<4x64xf32>
    %472 = vector.extract_strided_slice %465 {offsets = [0, 64], sizes = [4, 64], strides = [1, 1]} : vector<4x256xf32> to vector<4x64xf32>
    %473 = arith.negf %472 : vector<4x64xf32>
    %474 = math.exp %473 : vector<4x64xf32>
    %cst_101 = arith.constant 1.000000e+00 : f32
    %475 = vector.broadcast %cst_101 : f32 to vector<4x64xf32>
    %476 = arith.addf %475, %474 : vector<4x64xf32>
    %477 = arith.divf %475, %476 : vector<4x64xf32>
    %478 = vector.extract_strided_slice %465 {offsets = [0, 128], sizes = [4, 64], strides = [1, 1]} : vector<4x256xf32> to vector<4x64xf32>
    %479 = math.tanh %478 : vector<4x64xf32>
    %480 = vector.extract_strided_slice %465 {offsets = [0, 192], sizes = [4, 64], strides = [1, 1]} : vector<4x256xf32> to vector<4x64xf32>
    %481 = arith.negf %480 : vector<4x64xf32>
    %482 = math.exp %481 : vector<4x64xf32>
    %cst_102 = arith.constant 1.000000e+00 : f32
    %483 = vector.broadcast %cst_102 : f32 to vector<4x64xf32>
    %484 = arith.addf %483, %482 : vector<4x64xf32>
    %485 = arith.divf %483, %484 : vector<4x64xf32>
    %486 = arith.mulf %477, %461 : vector<4x64xf32>
    %487 = arith.mulf %471, %479 : vector<4x64xf32>
    %488 = arith.addf %486, %487 : vector<4x64xf32>
    %489 = math.tanh %488 : vector<4x64xf32>
    %490 = arith.mulf %485, %489 : vector<4x64xf32>
    %cst_103 = arith.constant dense<0.000000e+00> : vector<4x256xf32>
    %491 = tpu.matmul %490, %353, %cst_103 {dimension_numbers = #tpu.dot_dimension_numbers<[1], [0], [0], [1], [0, 0, 1, 1], [], []>} : vector<4x64xf32>, vector<64x256xf32>, vector<4x256xf32> -> vector<4x256xf32>
    %492 = arith.addf %342, %491 : vector<4x256xf32>
    %493 = vector.extract_strided_slice %492 {offsets = [0, 0], sizes = [4, 64], strides = [1, 1]} : vector<4x256xf32> to vector<4x64xf32>
    %494 = arith.negf %493 : vector<4x64xf32>
    %495 = math.exp %494 : vector<4x64xf32>
    %cst_104 = arith.constant 1.000000e+00 : f32
    %496 = vector.broadcast %cst_104 : f32 to vector<4x64xf32>
    %497 = arith.addf %496, %495 : vector<4x64xf32>
    %498 = arith.divf %496, %497 : vector<4x64xf32>
    %499 = vector.extract_strided_slice %492 {offsets = [0, 64], sizes = [4, 64], strides = [1, 1]} : vector<4x256xf32> to vector<4x64xf32>
    %500 = arith.negf %499 : vector<4x64xf32>
    %501 = math.exp %500 : vector<4x64xf32>
    %cst_105 = arith.constant 1.000000e+00 : f32
    %502 = vector.broadcast %cst_105 : f32 to vector<4x64xf32>
    %503 = arith.addf %502, %501 : vector<4x64xf32>
    %504 = arith.divf %502, %503 : vector<4x64xf32>
    %505 = vector.extract_strided_slice %492 {offsets = [0, 128], sizes = [4, 64], strides = [1, 1]} : vector<4x256xf32> to vector<4x64xf32>
    %506 = math.tanh %505 : vector<4x64xf32>
    %507 = vector.extract_strided_slice %492 {offsets = [0, 192], sizes = [4, 64], strides = [1, 1]} : vector<4x256xf32> to vector<4x64xf32>
    %508 = arith.negf %507 : vector<4x64xf32>
    %509 = math.exp %508 : vector<4x64xf32>
    %cst_106 = arith.constant 1.000000e+00 : f32
    %510 = vector.broadcast %cst_106 : f32 to vector<4x64xf32>
    %511 = arith.addf %510, %509 : vector<4x64xf32>
    %512 = arith.divf %510, %511 : vector<4x64xf32>
    %513 = arith.mulf %504, %488 : vector<4x64xf32>
    %514 = arith.mulf %498, %506 : vector<4x64xf32>
    %515 = arith.addf %513, %514 : vector<4x64xf32>
    %516 = math.tanh %515 : vector<4x64xf32>
    %517 = arith.mulf %512, %516 : vector<4x64xf32>
    %cst_107 = arith.constant dense<0.000000e+00> : vector<4x256xf32>
    %518 = tpu.matmul %517, %353, %cst_107 {dimension_numbers = #tpu.dot_dimension_numbers<[1], [0], [0], [1], [0, 0, 1, 1], [], []>} : vector<4x64xf32>, vector<64x256xf32>, vector<4x256xf32> -> vector<4x256xf32>
    %519 = arith.addf %347, %518 : vector<4x256xf32>
    %520 = vector.extract_strided_slice %519 {offsets = [0, 0], sizes = [4, 64], strides = [1, 1]} : vector<4x256xf32> to vector<4x64xf32>
    %521 = arith.negf %520 : vector<4x64xf32>
    %522 = math.exp %521 : vector<4x64xf32>
    %cst_108 = arith.constant 1.000000e+00 : f32
    %523 = vector.broadcast %cst_108 : f32 to vector<4x64xf32>
    %524 = arith.addf %523, %522 : vector<4x64xf32>
    %525 = arith.divf %523, %524 : vector<4x64xf32>
    %526 = vector.extract_strided_slice %519 {offsets = [0, 64], sizes = [4, 64], strides = [1, 1]} : vector<4x256xf32> to vector<4x64xf32>
    %527 = arith.negf %526 : vector<4x64xf32>
    %528 = math.exp %527 : vector<4x64xf32>
    %cst_109 = arith.constant 1.000000e+00 : f32
    %529 = vector.broadcast %cst_109 : f32 to vector<4x64xf32>
    %530 = arith.addf %529, %528 : vector<4x64xf32>
    %531 = arith.divf %529, %530 : vector<4x64xf32>
    %532 = vector.extract_strided_slice %519 {offsets = [0, 128], sizes = [4, 64], strides = [1, 1]} : vector<4x256xf32> to vector<4x64xf32>
    %533 = math.tanh %532 : vector<4x64xf32>
    %534 = vector.extract_strided_slice %519 {offsets = [0, 192], sizes = [4, 64], strides = [1, 1]} : vector<4x256xf32> to vector<4x64xf32>
    %535 = arith.negf %534 : vector<4x64xf32>
    %536 = math.exp %535 : vector<4x64xf32>
    %cst_110 = arith.constant 1.000000e+00 : f32
    %537 = vector.broadcast %cst_110 : f32 to vector<4x64xf32>
    %538 = arith.addf %537, %536 : vector<4x64xf32>
    %539 = arith.divf %537, %538 : vector<4x64xf32>
    %540 = arith.mulf %531, %515 : vector<4x64xf32>
    %541 = arith.mulf %525, %533 : vector<4x64xf32>
    %542 = arith.addf %540, %541 : vector<4x64xf32>
    %543 = math.tanh %542 : vector<4x64xf32>
    %544 = arith.mulf %539, %543 : vector<4x64xf32>
    %cst_111 = arith.constant dense<0.000000e+00> : vector<4x256xf32>
    %545 = tpu.matmul %544, %353, %cst_111 {dimension_numbers = #tpu.dot_dimension_numbers<[1], [0], [0], [1], [0, 0, 1, 1], [], []>} : vector<4x64xf32>, vector<64x256xf32>, vector<4x256xf32> -> vector<4x256xf32>
    %546 = arith.addf %352, %545 : vector<4x256xf32>
    %547 = vector.extract_strided_slice %546 {offsets = [0, 0], sizes = [4, 64], strides = [1, 1]} : vector<4x256xf32> to vector<4x64xf32>
    %548 = arith.negf %547 : vector<4x64xf32>
    %549 = math.exp %548 : vector<4x64xf32>
    %cst_112 = arith.constant 1.000000e+00 : f32
    %550 = vector.broadcast %cst_112 : f32 to vector<4x64xf32>
    %551 = arith.addf %550, %549 : vector<4x64xf32>
    %552 = arith.divf %550, %551 : vector<4x64xf32>
    %553 = vector.extract_strided_slice %546 {offsets = [0, 64], sizes = [4, 64], strides = [1, 1]} : vector<4x256xf32> to vector<4x64xf32>
    %554 = arith.negf %553 : vector<4x64xf32>
    %555 = math.exp %554 : vector<4x64xf32>
    %cst_113 = arith.constant 1.000000e+00 : f32
    %556 = vector.broadcast %cst_113 : f32 to vector<4x64xf32>
    %557 = arith.addf %556, %555 : vector<4x64xf32>
    %558 = arith.divf %556, %557 : vector<4x64xf32>
    %559 = vector.extract_strided_slice %546 {offsets = [0, 128], sizes = [4, 64], strides = [1, 1]} : vector<4x256xf32> to vector<4x64xf32>
    %560 = math.tanh %559 : vector<4x64xf32>
    %561 = vector.extract_strided_slice %546 {offsets = [0, 192], sizes = [4, 64], strides = [1, 1]} : vector<4x256xf32> to vector<4x64xf32>
    %562 = arith.negf %561 : vector<4x64xf32>
    %563 = math.exp %562 : vector<4x64xf32>
    %cst_114 = arith.constant 1.000000e+00 : f32
    %564 = vector.broadcast %cst_114 : f32 to vector<4x64xf32>
    %565 = arith.addf %564, %563 : vector<4x64xf32>
    %566 = arith.divf %564, %565 : vector<4x64xf32>
    %567 = arith.mulf %558, %542 : vector<4x64xf32>
    %568 = arith.mulf %552, %560 : vector<4x64xf32>
    %569 = arith.addf %567, %568 : vector<4x64xf32>
    %570 = math.tanh %569 : vector<4x64xf32>
    %571 = arith.mulf %566, %570 : vector<4x64xf32>
    %c0_115 = arith.constant 0 : index
    %c0_116 = arith.constant 0 : index
    %572 = vector.load %arg9[%c0_115, %c0_116] : memref<64x5xf32, #tpu.memory_space<vmem>>, vector<64x5xf32>
    %cst_117 = arith.constant dense<0.000000e+00> : vector<4x5xf32>
    %573 = tpu.matmul %571, %572, %cst_117 {dimension_numbers = #tpu.dot_dimension_numbers<[1], [0], [0], [1], [0, 0, 1, 1], [], []>} : vector<4x64xf32>, vector<64x5xf32>, vector<4x5xf32> -> vector<4x5xf32>
    %c0_118 = arith.constant 0 : index
    %c0_119 = arith.constant 0 : index
    %574 = vector.load %arg10[%c0_118, %c0_119] : memref<1x5xf32, #tpu.memory_space<vmem>>, vector<1x5xf32>
    %575 = vector.broadcast %574 : vector<1x5xf32> to vector<4x5xf32>
    %576 = arith.addf %573, %575 : vector<4x5xf32>
    %c0_120 = arith.constant 0 : index
    %c0_121 = arith.constant 0 : index
    %577 = vector.load %arg11[%c0_120, %c0_121] : memref<4x5xf32, #tpu.memory_space<vmem>>, vector<4x5xf32>
    tpu.vector_store %arg11[%c0_120, %c0_121], %576 {strides = array<i32>} : memref<4x5xf32, #tpu.memory_space<vmem>>, vector<4x5xf32>,
    return
  }
}

</mosaic_0001>

<llo_original>
// kernel: bilstm_forward.1
$region0: #{bilstm_forward.1}
  #allocation0 [shape = 'u32[]', space=smem, size = 0x4, offset = 0x4, fixed_abs, tag = 'smem constant byte address 0x4 - core index']
  #allocation1 [shape = 'u32[144,128]{1,0:T(1,128)}', space=vmem, size = 0x12000, scoped, tag = 'internal scratch']
  %s0 = inlined_call_operand.vmem [shape: f32[8,4,1], index: 0, kind: input, shape index: {}]
  %s1 = inlined_call_operand.vmem [shape: f32[1,256], index: 1, kind: input, shape index: {}]
  %s2 = inlined_call_operand.hbm [shape: f32[1,256], index: 2, kind: input, shape index: {}]
  %s3 = inlined_call_operand.hbm [shape: f32[64,256], index: 3, kind: input, shape index: {}]
  %s4 = inlined_call_operand.hbm [shape: f32[1,256], index: 4, kind: input, shape index: {}]
  %s5 = inlined_call_operand.vmem [shape: f32[64,256], index: 5, kind: input, shape index: {}]
  %s6 = inlined_call_operand.hbm [shape: f32[64,256], index: 6, kind: input, shape index: {}]
  %s7 = inlined_call_operand.hbm [shape: f32[64,256], index: 7, kind: input, shape index: {}]
  %s8 = inlined_call_operand.hbm [shape: f32[1,256], index: 8, kind: input, shape index: {}]
  %s9 = inlined_call_operand.vmem [shape: f32[64,5], index: 9, kind: input, shape index: {}]
  %s10 = inlined_call_operand.hbm [shape: f32[1,5], index: 10, kind: input, shape index: {}]
  %s11 = inlined_call_operand.hbm [shape: f32[4,5], index: 11, kind: output, shape index: {}]
  %s12 = sld [smem:[#allocation0]]
  $region82: #{bilstm_forward.1} parent=0
    _
  %s14 = ssub.s32 1, %s12
  %s15 = scalar_select 0, %s14, %s12
  $region1: #{bilstm_forward.1} parent=0
    #allocation2 [shape = 'u8[1024]{0}', space=vmem, size = 0x400, scoped, tag = 'input window, operand 2, single buffered']
    #allocation3 [shape = 's32[1]{0}', space=sflag, size = 0x4, scoped, tag = 'scoped memory for bilstm_forward.1']
    #allocation4 [shape = 's32[1]{0}', space=sflag, size = 0x4, scoped, tag = 'scoped memory for bilstm_forward.1']
    #allocation5 [shape = 'u8[65536]{0}', space=vmem, size = 0x10000, scoped, tag = 'input window, operand 3, single buffered']
    #allocation6 [shape = 's32[1]{0}', space=sflag, size = 0x4, scoped, tag = 'scoped memory for bilstm_forward.1']
    #allocation7 [shape = 'u8[1024]{0}', space=vmem, size = 0x400, scoped, tag = 'input window, operand 4, single buffered']
    #allocation8 [shape = 'u8[65536]{0}', space=vmem, size = 0x10000, scoped, tag = 'input window, operand 6, single buffered']
    #allocation9 [shape = 's32[1]{0}', space=sflag, size = 0x4, scoped, tag = 'scoped memory for bilstm_forward.1']
    #allocation10 [shape = 'u8[65536]{0}', space=vmem, size = 0x10000, scoped, tag = 'input window, operand 7, single buffered']
    #allocation11 [shape = 'u8[1024]{0}', space=vmem, size = 0x400, scoped, tag = 'input window, operand 8, single buffered']
    #allocation12 [shape = 's32[1]{0}', space=sflag, size = 0x4, scoped, tag = 'scoped memory for bilstm_forward.1']
    #allocation13 [shape = 'u8[512]{0}', space=vmem, size = 0x400, scoped, tag = 'input window, operand 10, single buffered']
    #allocation14 [shape = 'u8[2048]{0}', space=vmem, size = 0x800, scoped, tag = 'output window, operand 0, single buffered']
    %16 = vsyncpa [#allocation3], 0
    %17 = vsyncpa [#allocation6], 0
    %18 = vsyncpa [#allocation9], 0
    %19 = vsyncpa [#allocation12], 0
    %20 = vsyncpa [#allocation4], 0
    // Predicated region
    $region2: #{bilstm_forward.1} parent=1 // pred_check
      _
    $region3: #{bilstm_forward.1} parent=1 // pred_check_branch
      %22 = sbr.rel (0) target = $region5
    $region4: #{bilstm_forward.1} parent=1 // pred_region
      _
    $region5: #{bilstm_forward.1} parent=1 // pred_fallthru
      _
    // Predicated region
    $region6: #{bilstm_forward.1} parent=1 // pred_check
      _
    $region7: #{bilstm_forward.1} parent=1 // pred_check_branch
      %24 = sbr.rel (0) target = $region9
    $region8: #{bilstm_forward.1} parent=1 // pred_region
      _
    $region9: #{bilstm_forward.1} parent=1 // pred_fallthru
      _
    // Predicated region
    $region10: #{bilstm_forward.1} parent=1 // pred_check
      _
    $region11: #{bilstm_forward.1} parent=1 // pred_check_branch
      %26 = sbr.rel (0) target = $region13
    $region12: #{bilstm_forward.1} parent=1 // pred_region
      %s28 = ssub.s32 32, 32
      %29 = vsyncadd [#allocation3], %s28
      %s31 = sshll.u32 [#allocation2], 4
      %s32 = int_to_ptr.vmem [resolvable:$true] %s31
      %34 = dma.hbm_to_vmem [thread:$0]  %s2, 32, %s32, [#allocation3]
    $region13: #{bilstm_forward.1} parent=1 // pred_fallthru
      _
    // Predicated region
    $region14: #{bilstm_forward.1} parent=1 // pred_check
      _
    $region15: #{bilstm_forward.1} parent=1 // pred_check_branch
      %36 = sbr.rel (0) target = $region17
    $region16: #{bilstm_forward.1} parent=1 // pred_region
      %s38 = ssub.s32 2048, 2048
      %39 = vsyncadd [#allocation6], %s38
      %s40 = sshll.u32 [#allocation5], 4
      %s41 = int_to_ptr.vmem [resolvable:$true] %s40
      %46 = dma.hbm_to_vmem [thread:$0]  %s3, 2048, %s41, [#allocation6], 256, 256, 16
    $region17: #{bilstm_forward.1} parent=1 // pred_fallthru
      _
    // Predicated region
    $region18: #{bilstm_forward.1} parent=1 // pred_check
      _
    $region19: #{bilstm_forward.1} parent=1 // pred_check_branch
      %48 = sbr.rel (0) target = $region21
    $region20: #{bilstm_forward.1} parent=1 // pred_region
      %s50 = ssub.s32 32, 32
      %51 = vsyncadd [#allocation6], %s50
      %s53 = sshll.u32 [#allocation7], 4
      %s54 = int_to_ptr.vmem [resolvable:$true] %s53
      %56 = dma.hbm_to_vmem [thread:$0]  %s4, 32, %s54, [#allocation6]
    $region21: #{bilstm_forward.1} parent=1 // pred_fallthru
      _
    // Predicated region
    $region22: #{bilstm_forward.1} parent=1 // pred_check
      _
    $region23: #{bilstm_forward.1} parent=1 // pred_check_branch
      %58 = sbr.rel (0) target = $region25
    $region24: #{bilstm_forward.1} parent=1 // pred_region
      _
    $region25: #{bilstm_forward.1} parent=1 // pred_fallthru
      _
    // Predicated region
    $region26: #{bilstm_forward.1} parent=1 // pred_check
      _
    $region27: #{bilstm_forward.1} parent=1 // pred_check_branch
      %60 = sbr.rel (0) target = $region29
    $region28: #{bilstm_forward.1} parent=1 // pred_region
      %s62 = ssub.s32 2048, 2048
      %63 = vsyncadd [#allocation9], %s62
      %s64 = sshll.u32 [#allocation8], 4
      %s65 = int_to_ptr.vmem [resolvable:$true] %s64
      %70 = dma.hbm_to_vmem [thread:$0]  %s6, 2048, %s65, [#allocation9], 256, 256, 16
    $region29: #{bilstm_forward.1} parent=1 // pred_fallthru
      _
    // Predicated region
    $region30: #{bilstm_forward.1} parent=1 // pred_check
      _
    $region31: #{bilstm_forward.1} parent=1 // pred_check_branch
      %72 = sbr.rel (0) target = $region33
    $region32: #{bilstm_forward.1} parent=1 // pred_region
      %s74 = ssub.s32 2048, 2048
      %75 = vsyncadd [#allocation9], %s74
      %s76 = sshll.u32 [#allocation10], 4
      %s77 = int_to_ptr.vmem [resolvable:$true] %s76
      %82 = dma.hbm_to_vmem [thread:$0]  %s7, 2048, %s77, [#allocation9], 256, 256, 16
    $region33: #{bilstm_forward.1} parent=1 // pred_fallthru
      _
    // Predicated region
    $region34: #{bilstm_forward.1} parent=1 // pred_check
      _
    $region35: #{bilstm_forward.1} parent=1 // pred_check_branch
      %84 = sbr.rel (0) target = $region37
    $region36: #{bilstm_forward.1} parent=1 // pred_region
      %s86 = ssub.s32 32, 32
      %87 = vsyncadd [#allocation12], %s86
      %s89 = sshll.u32 [#allocation11], 4
      %s90 = int_to_ptr.vmem [resolvable:$true] %s89
      %92 = dma.hbm_to_vmem [thread:$0]  %s8, 32, %s90, [#allocation12]
    $region37: #{bilstm_forward.1} parent=1 // pred_fallthru
      _
    // Predicated region
    $region38: #{bilstm_forward.1} parent=1 // pred_check
      _
    $region39: #{bilstm_forward.1} parent=1 // pred_check_branch
      %94 = sbr.rel (0) target = $region41
    $region40: #{bilstm_forward.1} parent=1 // pred_region
      _
    $region41: #{bilstm_forward.1} parent=1 // pred_fallthru
      _
    // Predicated region
    $region42: #{bilstm_forward.1} parent=1 // pred_check
      _
    $region43: #{bilstm_forward.1} parent=1 // pred_check_branch
      %96 = sbr.rel (0) target = $region45
    $region44: #{bilstm_forward.1} parent=1 // pred_region
      %s98 = ssub.s32 16, 16
      %99 = vsyncadd [#allocation12], %s98
      %s101 = sshll.u32 [#allocation13], 4
      %s102 = int_to_ptr.vmem [resolvable:$true] %s101
      %104 = dma.hbm_to_vmem [thread:$0]  %s10, 16, %s102, [#allocation12]
    $region45: #{bilstm_forward.1} parent=1 // pred_fallthru
      _
    // Predicated region
    $region46: #{bilstm_forward.1} parent=1 // pred_check
      _
    $region47: #{bilstm_forward.1} parent=1 // pred_check_branch
      %106 = sbr.rel (0) target = $region49
    $region48: #{bilstm_forward.1} parent=1 // pred_region
      %107 = dma.done [#allocation3], 32
    $region49: #{bilstm_forward.1} parent=1 // pred_fallthru
      _
    // Predicated region
    $region50: #{bilstm_forward.1} parent=1 // pred_check
      _
    $region51: #{bilstm_forward.1} parent=1 // pred_check_branch
      %109 = sbr.rel (0) target = $region53
    $region52: #{bilstm_forward.1} parent=1 // pred_region
      %110 = dma.done [#allocation6], 2048
    $region53: #{bilstm_forward.1} parent=1 // pred_fallthru
      _
    // Predicated region
    $region54: #{bilstm_forward.1} parent=1 // pred_check
      _
    $region55: #{bilstm_forward.1} parent=1 // pred_check_branch
      %112 = sbr.rel (0) target = $region57
    $region56: #{bilstm_forward.1} parent=1 // pred_region
      %113 = dma.done [#allocation6], 32
    $region57: #{bilstm_forward.1} parent=1 // pred_fallthru
      _
    // Predicated region
    $region58: #{bilstm_forward.1} parent=1 // pred_check
      _
    $region59: #{bilstm_forward.1} parent=1 // pred_check_branch
      %115 = sbr.rel (0) target = $region61
    $region60: #{bilstm_forward.1} parent=1 // pred_region
      %116 = dma.done [#allocation9], 2048
    $region61: #{bilstm_forward.1} parent=1 // pred_fallthru
      _
    // Predicated region
    $region62: #{bilstm_forward.1} parent=1 // pred_check
      _
    $region63: #{bilstm_forward.1} parent=1 // pred_check_branch
      %118 = sbr.rel (0) target = $region65
    $region64: #{bilstm_forward.1} parent=1 // pred_region
      %119 = dma.done [#allocation9], 2048
    $region65: #{bilstm_forward.1} parent=1 // pred_fallthru
      _
    // Predicated region
    $region66: #{bilstm_forward.1} parent=1 // pred_check
      _
    $region67: #{bilstm_forward.1} parent=1 // pred_check_branch
      %121 = sbr.rel (0) target = $region69
    $region68: #{bilstm_forward.1} parent=1 // pred_region
      %122 = dma.done [#allocation12], 32
    $region69: #{bilstm_forward.1} parent=1 // pred_fallthru
      _
    // Predicated region
    $region70: #{bilstm_forward.1} parent=1 // pred_check
      _
    $region71: #{bilstm_forward.1} parent=1 // pred_check_branch
      %124 = sbr.rel (0) target = $region73
    $region72: #{bilstm_forward.1} parent=1 // pred_region
      %125 = dma.done [#allocation12], 16
    $region73: #{bilstm_forward.1} parent=1 // pred_fallthru
      _
    %v126 = vld [vmem:[%s1] sm:$0x3]
    %v127 = vld [vmem:[#allocation2] sm:$0x3]
    %v128 = vld [vmem:[#allocation7] sm:$0x3]
    %v129 = vld [vmem:[%s0] sm:$0xf]
    %s130 = scalar_lea.vmem %s0, 4
    %v131 = vld [vmem:[%s130] sm:$0xf]
    %s132 = scalar_lea.vmem %s0, 8
    %v133 = vld [vmem:[%s132] sm:$0xf]
    %s134 = scalar_lea.vmem %s0, 12
    %v135 = vld [vmem:[%s134] sm:$0xf]
    %s136 = scalar_lea.vmem %s0, 16
    %v137 = vld [vmem:[%s136] sm:$0xf]
    %s138 = scalar_lea.vmem %s0, 20
    %v139 = vld [vmem:[%s138] sm:$0xf]
    %s140 = scalar_lea.vmem %s0, 24
    %v141 = vld [vmem:[%s140] sm:$0xf]
    %s142 = scalar_lea.vmem %s0, 28
    %v143 = vld [vmem:[%s142] sm:$0xf]
    %145 = vset.pattern.permute.xlu0 0
    %146 = vperm.xlu0 %145, %v129
    %v147 = vpop.permute.xlu0 %146
    %v150 = vlaneseq
    %v151 = vshrl.u32 %v150, 7
    %v152 = vsub.s32 0, %v151
    %v153 = vrot.slane %v126, %v152
    %v154 = vlaneseq
    %v155 = vshrl.u32 %v154, 7
    %v156 = vsub.s32 1, %v155
    %v157 = vrot.slane %v126, %v156
    %v160 = vmul.f32 %v147, %v153
    %v161 = vmul.f32 %v147, %v157
    %163 = vset.pattern.permute.xlu0 0
    %164 = vperm.xlu0 %163, %v143
    %v165 = vpop.permute.xlu0 %164
    %v168 = vlaneseq
    %v169 = vshrl.u32 %v168, 7
    %v170 = vsub.s32 0, %v169
    %v171 = vrot.slane %v127, %v170
    %v172 = vlaneseq
    %v173 = vshrl.u32 %v172, 7
    %v174 = vsub.s32 1, %v173
    %v175 = vrot.slane %v127, %v174
    %v178 = vmul.f32 %v165, %v171
    %v179 = vmul.f32 %v165, %v175
    %v180 = vadd.f32 %v160, %v178
    %v181 = vadd.f32 %v161, %v179
    %v183 = vlaneseq
    %v184 = vshrl.u32 %v183, 7
    %v185 = vsub.s32 0, %v184
    %v186 = vrot.slane %v128, %v185
    %v187 = vlaneseq
    %v188 = vshrl.u32 %v187, 7
    %v189 = vsub.s32 1, %v188
    %v190 = vrot.slane %v128, %v189
    %v193 = vadd.f32 %v180, %v186
    %v194 = vadd.f32 %v181, %v190
    %196 = vset.pattern.permute.xlu0 0
    %197 = vperm.xlu0 %196, %v131
    %v198 = vpop.permute.xlu0 %197
    %v200 = vmul.f32 %v198, %v153
    %v201 = vmul.f32 %v198, %v157
    %203 = vset.pattern.permute.xlu0 0
    %204 = vperm.xlu0 %203, %v141
    %v205 = vpop.permute.xlu0 %204
    %v207 = vmul.f32 %v205, %v171
    %v208 = vmul.f32 %v205, %v175
    %v209 = vadd.f32 %v200, %v207
    %v210 = vadd.f32 %v201, %v208
    %v211 = vadd.f32 %v209, %v186
    %v212 = vadd.f32 %v210, %v190
    %214 = vset.pattern.permute.xlu0 0
    %215 = vperm.xlu0 %214, %v133
    %v216 = vpop.permute.xlu0 %215
    %v218 = vmul.f32 %v216, %v153
    %v219 = vmul.f32 %v216, %v157
    %221 = vset.pattern.permute.xlu0 0
    %222 = vperm.xlu0 %221, %v139
    %v223 = vpop.permute.xlu0 %222
    %v225 = vmul.f32 %v223, %v171
    %v226 = vmul.f32 %v223, %v175
    %v227 = vadd.f32 %v218, %v225
    %v228 = vadd.f32 %v219, %v226
    %v229 = vadd.f32 %v227, %v186
    %v230 = vadd.f32 %v228, %v190
    %232 = vset.pattern.permute.xlu0 0
    %233 = vperm.xlu0 %232, %v135
    %v234 = vpop.permute.xlu0 %233
    %v236 = vmul.f32 %v234, %v153
    %v237 = vmul.f32 %v234, %v157
    %239 = vset.pattern.permute.xlu0 0
    %240 = vperm.xlu0 %239, %v137
    %v241 = vpop.permute.xlu0 %240
    %v243 = vmul.f32 %v241, %v171
    %v244 = vmul.f32 %v241, %v175
    %v245 = vadd.f32 %v236, %v243
    %v246 = vadd.f32 %v237, %v244
    %v247 = vadd.f32 %v245, %v186
    %v248 = vadd.f32 %v246, %v190
    %v249 = vmul.f32 %v241, %v153
    %v250 = vmul.f32 %v241, %v157
    %v251 = vmul.f32 %v234, %v171
    %v252 = vmul.f32 %v234, %v175
    %v253 = vadd.f32 %v249, %v251
    %v254 = vadd.f32 %v250, %v252
    %v255 = vadd.f32 %v253, %v186
    %v256 = vadd.f32 %v254, %v190
    %v257 = vmul.f32 %v223, %v153
    %v258 = vmul.f32 %v223, %v157
    %v259 = vmul.f32 %v216, %v171
    %v260 = vmul.f32 %v216, %v175
    %v261 = vadd.f32 %v257, %v259
    %v262 = vadd.f32 %v258, %v260
    %v263 = vadd.f32 %v261, %v186
    %v264 = vadd.f32 %v262, %v190
    %v265 = vmul.f32 %v205, %v153
    %v266 = vmul.f32 %v205, %v157
    %v267 = vmul.f32 %v198, %v171
    %v268 = vmul.f32 %v198, %v175
    %v269 = vadd.f32 %v265, %v267
    %v270 = vadd.f32 %v266, %v268
    %v271 = vadd.f32 %v269, %v186
    %v272 = vadd.f32 %v270, %v190
    %v273 = vmul.f32 %v165, %v153
    %v274 = vmul.f32 %v165, %v157
    %v275 = vmul.f32 %v147, %v171
    %v276 = vmul.f32 %v147, %v175
    %v277 = vadd.f32 %v273, %v275
    %v278 = vadd.f32 %v274, %v276
    %v279 = vadd.f32 %v277, %v186
    %v280 = vadd.f32 %v278, %v190
    %v281 = vld [vmem:[#allocation5] sm:$0xff]
    %v282 = vld [vmem:[#allocation5 + $0x8] sm:$0xff]
    %v283 = vld [vmem:[#allocation5 + $0x10] sm:$0xff]
    %v284 = vld [vmem:[#allocation5 + $0x18] sm:$0xff]
    %v285 = vld [vmem:[#allocation5 + $0x20] sm:$0xff]
    %v286 = vld [vmem:[#allocation5 + $0x28] sm:$0xff]
    %v287 = vld [vmem:[#allocation5 + $0x30] sm:$0xff]
    %v288 = vld [vmem:[#allocation5 + $0x38] sm:$0xff]
    %v289 = vld [vmem:[#allocation5 + $0x40] sm:$0xff]
    %v290 = vld [vmem:[#allocation5 + $0x48] sm:$0xff]
    %v291 = vld [vmem:[#allocation5 + $0x50] sm:$0xff]
    %v292 = vld [vmem:[#allocation5 + $0x58] sm:$0xff]
    %v293 = vld [vmem:[#allocation5 + $0x60] sm:$0xff]
    %v294 = vld [vmem:[#allocation5 + $0x68] sm:$0xff]
    %v295 = vld [vmem:[#allocation5 + $0x70] sm:$0xff]
    %v296 = vld [vmem:[#allocation5 + $0x78] sm:$0xff]
    %vm297 = vcmask 523264
    %v299 = vsel %vm297, 0.0, 0
    %301 = vmatprep.subr.mxu0 %v282
    %302 = vmatpush1.msra.mxu0 %v281
    %303 = vmatprep.subr.mxu0 %v284
    %304 = vmatpush1.msra.mxu0 %v283
    %305 = vmatprep.subr.mxu0 %v286
    %306 = vmatpush1.msra.mxu0 %v285
    %307 = vmatprep.subr.mxu0 %v288
    %308 = vmatpush1.msra.mxu0 %v287
    %309 = vmatprep.subr.mxu0 %v290
    %310 = vmatpush1.msra.mxu0 %v289
    %311 = vmatprep.subr.mxu0 %v292
    %312 = vmatpush1.msra.mxu0 %v291
    %313 = vmatprep.subr.mxu0 %v294
    %314 = vmatpush1.msra.mxu0 %v293
    %315 = vmatprep.subr.mxu0 %v296
    %316 = vmatpush1.msra.mxu0 %v295
    %317 = vmatprep.subr.mxu0 0.0
    %318 = vmatpush1.msra.mxu0 0.0
    %319 = vmatprep.subr.mxu0 0.0
    %320 = vmatpush1.msra.mxu0 0.0
    %321 = vmatprep.subr.mxu0 0.0
    %322 = vmatpush1.msra.mxu0 0.0
    %323 = vmatprep.subr.mxu0 0.0
    %324 = vmatpush1.msra.mxu0 0.0
    %325 = vmatprep.subr.mxu0 0.0
    %326 = vmatpush1.msra.mxu0 0.0
    %327 = vmatprep.subr.mxu0 0.0
    %328 = vmatpush1.msra.mxu0 0.0
    %329 = vmatprep.subr.mxu0 0.0
    %330 = vmatpush1.msra.mxu0 0.0
    %331 = vmatprep.subr.mxu0 0.0
    %332 = vmatpush1.msra.mxu0 0.0
    %333 = vmatprep.subr.mxu0 0.0
    %334 = vmatpush1.msra.mxu0 0.0
    %335 = vmatprep.subr.mxu0 0.0
    %336 = vmatpush1.msra.mxu0 0.0
    %337 = vmatprep.subr.mxu0 0.0
    %338 = vmatpush1.msra.mxu0 0.0
    %339 = vmatprep.subr.mxu0 0.0
    %340 = vmatpush1.msra.mxu0 0.0
    %341 = vmatprep.subr.mxu0 0.0
    %342 = vmatpush1.msra.mxu0 0.0
    %343 = vmatprep.subr.mxu0 0.0
    %344 = vmatpush1.msra.mxu0 0.0
    %345 = vmatprep.subr.mxu0 0.0
    %346 = vmatpush1.msra.mxu0 0.0
    %347 = vmatprep.subr.mxu0 0.0
    %348 = vmatpush1.msra.mxu0 0.0
    %349 = vmatprep.subr.mxu0 0.0
    %350 = vmatpush1.msra.mxu0 0.0
    %351 = vmatprep.subr.mxu0 0.0
    %352 = vmatpush1.msra.mxu0 0.0
    %353 = vmatprep.subr.mxu0 0.0
    %354 = vmatpush1.msra.mxu0 0.0
    %355 = vmatprep.subr.mxu0 0.0
    %356 = vmatpush1.msra.mxu0 0.0
    %357 = vmatprep.subr.mxu0 0.0
    %358 = vmatpush1.msra.mxu0 0.0
    %359 = vmatprep.subr.mxu0 0.0
    %360 = vmatpush1.msra.mxu0 0.0
    %361 = vmatprep.subr.mxu0 0.0
    %362 = vmatpush1.msra.mxu0 0.0
    %363 = vmatprep.subr.mxu0 0.0
    %364 = vmatpush1.msra.mxu0 0.0
    %365 = vmatprep.mubr.f32.mxu0 0.0
    %366 = vmatmul.mubr.f32.gmra.mrb[0].mxu0 %v299
    %v367 = vpop.f32.mrb[0].mxu0
    %v368 = vadd.f32 0.0, %v367
    %v369 = vpop.f32.mrb[0].mxu0
    %v370 = vadd.f32 0.0, %v369
    %371 = vdwg.mxu0
    %v372 = vadd.f32 %v193, %v368
    %v373 = vadd.f32 %v194, %v370
    %v374 = vxor.u32 %v372, 2147483648
    %v375 = vmul.f32 %v374, 1.442695
    %v376 = vpow.pop %v375
    %v377 = vadd.f32 %v376, 1.0
    %v378 = vrcp.pop %v377
    %v379 = vmul.f32 1.0, %v378
    %v380 = vtanh.pop %v373
    %v381 = vxor.u32 %v373, 2147483648
    %v382 = vmul.f32 %v381, 1.442695
    %v383 = vpow.pop %v382
    %v384 = vadd.f32 %v383, 1.0
    %v385 = vrcp.pop %v384
    %v386 = vmul.f32 1.0, %v385
    %v387 = vmul.f32 %v379, 0.0
    %v388 = vmul.f32 %v379, %v380
    %390 = vrot.lane.b32.xlu0 %v388, 64
    %v391 = vpop.permute.xlu0 %390
    %v393 = vadd.f32 %v387, %v391
    %v394 = vtanh.pop %v393
    %v395 = vmul.f32 %v386, %v394
    %397 = vrot.lane.b32.xlu0 %v395, 64
    %v398 = vpop.permute.xlu0 %397
    %v399 = vsel %vm297, %v398, 0
    %401 = vmatprep.subr.mxu0 %v282
    %402 = vmatpush1.msra.mxu0 %v281
    %403 = vmatprep.subr.mxu0 %v284
    %404 = vmatpush1.msra.mxu0 %v283
    %405 = vmatprep.subr.mxu0 %v286
    %406 = vmatpush1.msra.mxu0 %v285
    %407 = vmatprep.subr.mxu0 %v288
    %408 = vmatpush1.msra.mxu0 %v287
    %409 = vmatprep.subr.mxu0 %v290
    %410 = vmatpush1.msra.mxu0 %v289
    %411 = vmatprep.subr.mxu0 %v292
    %412 = vmatpush1.msra.mxu0 %v291
    %413 = vmatprep.subr.mxu0 %v294
    %414 = vmatpush1.msra.mxu0 %v293
    %415 = vmatprep.subr.mxu0 %v296
    %416 = vmatpush1.msra.mxu0 %v295
    %417 = vmatprep.subr.mxu0 0.0
    %418 = vmatpush1.msra.mxu0 0.0
    %419 = vmatprep.subr.mxu0 0.0
    %420 = vmatpush1.msra.mxu0 0.0
    %421 = vmatprep.subr.mxu0 0.0
    %422 = vmatpush1.msra.mxu0 0.0
    %423 = vmatprep.subr.mxu0 0.0
    %424 = vmatpush1.msra.mxu0 0.0
    %425 = vmatprep.subr.mxu0 0.0
    %426 = vmatpush1.msra.mxu0 0.0
    %427 = vmatprep.subr.mxu0 0.0
    %428 = vmatpush1.msra.mxu0 0.0
    %429 = vmatprep.subr.mxu0 0.0
    %430 = vmatpush1.msra.mxu0 0.0
    %431 = vmatprep.subr.mxu0 0.0
    %432 = vmatpush1.msra.mxu0 0.0
    %433 = vmatprep.subr.mxu0 0.0
    %434 = vmatpush1.msra.mxu0 0.0
    %435 = vmatprep.subr.mxu0 0.0
    %436 = vmatpush1.msra.mxu0 0.0
    %437 = vmatprep.subr.mxu0 0.0
    %438 = vmatpush1.msra.mxu0 0.0
    %439 = vmatprep.subr.mxu0 0.0
    %440 = vmatpush1.msra.mxu0 0.0
    %441 = vmatprep.subr.mxu0 0.0
    %442 = vmatpush1.msra.mxu0 0.0
    %443 = vmatprep.subr.mxu0 0.0
    %444 = vmatpush1.msra.mxu0 0.0
    %445 = vmatprep.subr.mxu0 0.0
    %446 = vmatpush1.msra.mxu0 0.0
    %447 = vmatprep.subr.mxu0 0.0
    %448 = vmatpush1.msra.mxu0 0.0
    %449 = vmatprep.subr.mxu0 0.0
    %450 = vmatpush1.msra.mxu0 0.0
    %451 = vmatprep.subr.mxu0 0.0
    %452 = vmatpush1.msra.mxu0 0.0
    %453 = vmatprep.subr.mxu0 0.0
    %454 = vmatpush1.msra.mxu0 0.0
    %455 = vmatprep.subr.mxu0 0.0
    %456 = vmatpush1.msra.mxu0 0.0
    %457 = vmatprep.subr.mxu0 0.0
    %458 = vmatpush1.msra.mxu0 0.0
    %459 = vmatprep.subr.mxu0 0.0
    %460 = vmatpush1.msra.mxu0 0.0
    %461 = vmatprep.subr.mxu0 0.0
    %462 = vmatpush1.msra.mxu0 0.0
    %463 = vmatprep.subr.mxu0 0.0
    %464 = vmatpush1.msra.mxu0 0.0
    %465 = vmatprep.mubr.f32.mxu0 0.0
    %466 = vmatmul.mubr.f32.gmra.mrb[0].mxu0 %v399
    %v467 = vpop.f32.mrb[0].mxu0
    %v468 = vadd.f32 0.0, %v467
    %v469 = vpop.f32.mrb[0].mxu0
    %v470 = vadd.f32 0.0, %v469
    %471 = vdwg.mxu0
    %v472 = vadd.f32 %v211, %v468
    %v473 = vadd.f32 %v212, %v470
    %v474 = vxor.u32 %v472, 2147483648
    %v475 = vmul.f32 %v474, 1.442695
    %v476 = vpow.pop %v475
    %v477 = vadd.f32 %v476, 1.0
    %v478 = vrcp.pop %v477
    %v479 = vmul.f32 1.0, %v478
    %v480 = vtanh.pop %v473
    %v481 = vxor.u32 %v473, 2147483648
    %v482 = vmul.f32 %v481, 1.442695
    %v483 = vpow.pop %v482
    %v484 = vadd.f32 %v483, 1.0
    %v485 = vrcp.pop %v484
    %v486 = vmul.f32 1.0, %v485
    %v487 = vmul.f32 %v479, %v393
    %v488 = vmul.f32 %v479, %v480
    %490 = vrot.lane.b32.xlu0 %v488, 64
    %v491 = vpop.permute.xlu0 %490
    %v493 = vadd.f32 %v487, %v491
    %v494 = vtanh.pop %v493
    %v495 = vmul.f32 %v486, %v494
    %497 = vrot.lane.b32.xlu0 %v495, 64
    %v498 = vpop.permute.xlu0 %497
    %v499 = vsel %vm297, %v498, 0
    %501 = vmatprep.subr.mxu0 %v282
    %502 = vmatpush1.msra.mxu0 %v281
    %503 = vmatprep.subr.mxu0 %v284
    %504 = vmatpush1.msra.mxu0 %v283
    %505 = vmatprep.subr.mxu0 %v286
    %506 = vmatpush1.msra.mxu0 %v285
    %507 = vmatprep.subr.mxu0 %v288
    %508 = vmatpush1.msra.mxu0 %v287
    %509 = vmatprep.subr.mxu0 %v290
    %510 = vmatpush1.msra.mxu0 %v289
    %511 = vmatprep.subr.mxu0 %v292
    %512 = vmatpush1.msra.mxu0 %v291
    %513 = vmatprep.subr.mxu0 %v294
    %514 = vmatpush1.msra.mxu0 %v293
    %515 = vmatprep.subr.mxu0 %v296
    %516 = vmatpush1.msra.mxu0 %v295
    %517 = vmatprep.subr.mxu0 0.0
    %518 = vmatpush1.msra.mxu0 0.0
    %519 = vmatprep.subr.mxu0 0.0
    %520 = vmatpush1.msra.mxu0 0.0
    %521 = vmatprep.subr.mxu0 0.0
    %522 = vmatpush1.msra.mxu0 0.0
    %523 = vmatprep.subr.mxu0 0.0
    %524 = vmatpush1.msra.mxu0 0.0
    %525 = vmatprep.subr.mxu0 0.0
    %526 = vmatpush1.msra.mxu0 0.0
    %527 = vmatprep.subr.mxu0 0.0
    %528 = vmatpush1.msra.mxu0 0.0
    %529 = vmatprep.subr.mxu0 0.0
    %530 = vmatpush1.msra.mxu0 0.0
    %531 = vmatprep.subr.mxu0 0.0
    %532 = vmatpush1.msra.mxu0 0.0
    %533 = vmatprep.subr.mxu0 0.0
    %534 = vmatpush1.msra.mxu0 0.0
    %535 = vmatprep.subr.mxu0 0.0
    %536 = vmatpush1.msra.mxu0 0.0
    %537 = vmatprep.subr.mxu0 0.0
    %538 = vmatpush1.msra.mxu0 0.0
    %539 = vmatprep.subr.mxu0 0.0
    %540 = vmatpush1.msra.mxu0 0.0
    %541 = vmatprep.subr.mxu0 0.0
    %542 = vmatpush1.msra.mxu0 0.0
    %543 = vmatprep.subr.mxu0 0.0
    %544 = vmatpush1.msra.mxu0 0.0
    %545 = vmatprep.subr.mxu0 0.0
    %546 = vmatpush1.msra.mxu0 0.0
    %547 = vmatprep.subr.mxu0 0.0
    %548 = vmatpush1.msra.mxu0 0.0
    %549 = vmatprep.subr.mxu0 0.0
    %550 = vmatpush1.msra.mxu0 0.0
    %551 = vmatprep.subr.mxu0 0.0
    %552 = vmatpush1.msra.mxu0 0.0
    %553 = vmatprep.subr.mxu0 0.0
    %554 = vmatpush1.msra.mxu0 0.0
    %555 = vmatprep.subr.mxu0 0.0
    %556 = vmatpush1.msra.mxu0 0.0
    %557 = vmatprep.subr.mxu0 0.0
    %558 = vmatpush1.msra.mxu0 0.0
    %559 = vmatprep.subr.mxu0 0.0
    %560 = vmatpush1.msra.mxu0 0.0
    %561 = vmatprep.subr.mxu0 0.0
    %562 = vmatpush1.msra.mxu0 0.0
    %563 = vmatprep.subr.mxu0 0.0
    %564 = vmatpush1.msra.mxu0 0.0
    %565 = vmatprep.mubr.f32.mxu0 0.0
    %566 = vmatmul.mubr.f32.gmra.mrb[0].mxu0 %v499
    %v567 = vpop.f32.mrb[0].mxu0
    %v568 = vadd.f32 0.0, %v567
    %v569 = vpop.f32.mrb[0].mxu0
    %v570 = vadd.f32 0.0, %v569
    %571 = vdwg.mxu0
    %v572 = vadd.f32 %v229, %v568
    %v573 = vadd.f32 %v230, %v570
    %v574 = vxor.u32 %v572, 2147483648
    %v575 = vmul.f32 %v574, 1.442695
    %v576 = vpow.pop %v575
    %v577 = vadd.f32 %v576, 1.0
    %v578 = vrcp.pop %v577
    %v579 = vmul.f32 1.0, %v578
    %v580 = vtanh.pop %v573
    %v581 = vxor.u32 %v573, 2147483648
    %v582 = vmul.f32 %v581, 1.442695
    %v583 = vpow.pop %v582
    %v584 = vadd.f32 %v583, 1.0
    %v585 = vrcp.pop %v584
    %v586 = vmul.f32 1.0, %v585
    %v587 = vmul.f32 %v579, %v493
    %v588 = vmul.f32 %v579, %v580
    %590 = vrot.lane.b32.xlu0 %v588, 64
    %v591 = vpop.permute.xlu0 %590
    %v593 = vadd.f32 %v587, %v591
    %v594 = vtanh.pop %v593
    %v595 = vmul.f32 %v586, %v594
    %597 = vrot.lane.b32.xlu0 %v595, 64
    %v598 = vpop.permute.xlu0 %597
    %v599 = vsel %vm297, %v598, 0
    %601 = vmatprep.subr.mxu0 %v282
    %602 = vmatpush1.msra.mxu0 %v281
    %603 = vmatprep.subr.mxu0 %v284
    %604 = vmatpush1.msra.mxu0 %v283
    %605 = vmatprep.subr.mxu0 %v286
    %606 = vmatpush1.msra.mxu0 %v285
    %607 = vmatprep.subr.mxu0 %v288
    %608 = vmatpush1.msra.mxu0 %v287
    %609 = vmatprep.subr.mxu0 %v290
    %610 = vmatpush1.msra.mxu0 %v289
    %611 = vmatprep.subr.mxu0 %v292
    %612 = vmatpush1.msra.mxu0 %v291
    %613 = vmatprep.subr.mxu0 %v294
    %614 = vmatpush1.msra.mxu0 %v293
    %615 = vmatprep.subr.mxu0 %v296
    %616 = vmatpush1.msra.mxu0 %v295
    %617 = vmatprep.subr.mxu0 0.0
    %618 = vmatpush1.msra.mxu0 0.0
    %619 = vmatprep.subr.mxu0 0.0
    %620 = vmatpush1.msra.mxu0 0.0
    %621 = vmatprep.subr.mxu0 0.0
    %622 = vmatpush1.msra.mxu0 0.0
    %623 = vmatprep.subr.mxu0 0.0
    %624 = vmatpush1.msra.mxu0 0.0
    %625 = vmatprep.subr.mxu0 0.0
    %626 = vmatpush1.msra.mxu0 0.0
    %627 = vmatprep.subr.mxu0 0.0
    %628 = vmatpush1.msra.mxu0 0.0
    %629 = vmatprep.subr.mxu0 0.0
    %630 = vmatpush1.msra.mxu0 0.0
    %631 = vmatprep.subr.mxu0 0.0
    %632 = vmatpush1.msra.mxu0 0.0
    %633 = vmatprep.subr.mxu0 0.0
    %634 = vmatpush1.msra.mxu0 0.0
    %635 = vmatprep.subr.mxu0 0.0
    %636 = vmatpush1.msra.mxu0 0.0
    %637 = vmatprep.subr.mxu0 0.0
    %638 = vmatpush1.msra.mxu0 0.0
    %639 = vmatprep.subr.mxu0 0.0
    %640 = vmatpush1.msra.mxu0 0.0
    %641 = vmatprep.subr.mxu0 0.0
    %642 = vmatpush1.msra.mxu0 0.0
    %643 = vmatprep.subr.mxu0 0.0
    %644 = vmatpush1.msra.mxu0 0.0
    %645 = vmatprep.subr.mxu0 0.0
    %646 = vmatpush1.msra.mxu0 0.0
    %647 = vmatprep.subr.mxu0 0.0
    %648 = vmatpush1.msra.mxu0 0.0
    %649 = vmatprep.subr.mxu0 0.0
    %650 = vmatpush1.msra.mxu0 0.0
    %651 = vmatprep.subr.mxu0 0.0
    %652 = vmatpush1.msra.mxu0 0.0
    %653 = vmatprep.subr.mxu0 0.0
    %654 = vmatpush1.msra.mxu0 0.0
    %655 = vmatprep.subr.mxu0 0.0
    %656 = vmatpush1.msra.mxu0 0.0
    %657 = vmatprep.subr.mxu0 0.0
    %658 = vmatpush1.msra.mxu0 0.0
    %659 = vmatprep.subr.mxu0 0.0
    %660 = vmatpush1.msra.mxu0 0.0
    %661 = vmatprep.subr.mxu0 0.0
    %662 = vmatpush1.msra.mxu0 0.0
    %663 = vmatprep.subr.mxu0 0.0
    %664 = vmatpush1.msra.mxu0 0.0
    %665 = vmatprep.mubr.f32.mxu0 0.0
    %666 = vmatmul.mubr.f32.gmra.mrb[0].mxu0 %v599
    %v667 = vpop.f32.mrb[0].mxu0
    %v668 = vadd.f32 0.0, %v667
    %v669 = vpop.f32.mrb[0].mxu0
    %v670 = vadd.f32 0.0, %v669
    %671 = vdwg.mxu0
    %v672 = vadd.f32 %v247, %v668
    %v673 = vadd.f32 %v248, %v670
    %v674 = vxor.u32 %v672, 2147483648
    %v675 = vmul.f32 %v674, 1.442695
    %v676 = vpow.pop %v675
    %v677 = vadd.f32 %v676, 1.0
    %v678 = vrcp.pop %v677
    %v679 = vmul.f32 1.0, %v678
    %v680 = vtanh.pop %v673
    %v681 = vxor.u32 %v673, 2147483648
    %v682 = vmul.f32 %v681, 1.442695
    %v683 = vpow.pop %v682
    %v684 = vadd.f32 %v683, 1.0
    %v685 = vrcp.pop %v684
    %v686 = vmul.f32 1.0, %v685
    %v687 = vmul.f32 %v679, %v593
    %v688 = vmul.f32 %v679, %v680
    %690 = vrot.lane.b32.xlu0 %v688, 64
    %v691 = vpop.permute.xlu0 %690
    %v693 = vadd.f32 %v687, %v691
    %v694 = vtanh.pop %v693
    %v695 = vmul.f32 %v686, %v694
    %697 = vrot.lane.b32.xlu0 %v695, 64
    %v698 = vpop.permute.xlu0 %697
    %v699 = vsel %vm297, %v698, 0
    %701 = vmatprep.subr.mxu0 %v282
    %702 = vmatpush1.msra.mxu0 %v281
    %703 = vmatprep.subr.mxu0 %v284
    %704 = vmatpush1.msra.mxu0 %v283
    %705 = vmatprep.subr.mxu0 %v286
    %706 = vmatpush1.msra.mxu0 %v285
    %707 = vmatprep.subr.mxu0 %v288
    %708 = vmatpush1.msra.mxu0 %v287
    %709 = vmatprep.subr.mxu0 %v290
    %710 = vmatpush1.msra.mxu0 %v289
    %711 = vmatprep.subr.mxu0 %v292
    %712 = vmatpush1.msra.mxu0 %v291
    %713 = vmatprep.subr.mxu0 %v294
    %714 = vmatpush1.msra.mxu0 %v293
    %715 = vmatprep.subr.mxu0 %v296
    %716 = vmatpush1.msra.mxu0 %v295
    %717 = vmatprep.subr.mxu0 0.0
    %718 = vmatpush1.msra.mxu0 0.0
    %719 = vmatprep.subr.mxu0 0.0
    %720 = vmatpush1.msra.mxu0 0.0
    %721 = vmatprep.subr.mxu0 0.0
    %722 = vmatpush1.msra.mxu0 0.0
    %723 = vmatprep.subr.mxu0 0.0
    %724 = vmatpush1.msra.mxu0 0.0
    %725 = vmatprep.subr.mxu0 0.0
    %726 = vmatpush1.msra.mxu0 0.0
    %727 = vmatprep.subr.mxu0 0.0
    %728 = vmatpush1.msra.mxu0 0.0
    %729 = vmatprep.subr.mxu0 0.0
    %730 = vmatpush1.msra.mxu0 0.0
    %731 = vmatprep.subr.mxu0 0.0
    %732 = vmatpush1.msra.mxu0 0.0
    %733 = vmatprep.subr.mxu0 0.0
    %734 = vmatpush1.msra.mxu0 0.0
    %735 = vmatprep.subr.mxu0 0.0
    %736 = vmatpush1.msra.mxu0 0.0
    %737 = vmatprep.subr.mxu0 0.0
    %738 = vmatpush1.msra.mxu0 0.0
    %739 = vmatprep.subr.mxu0 0.0
    %740 = vmatpush1.msra.mxu0 0.0
    %741 = vmatprep.subr.mxu0 0.0
    %742 = vmatpush1.msra.mxu0 0.0
    %743 = vmatprep.subr.mxu0 0.0
    %744 = vmatpush1.msra.mxu0 0.0
    %745 = vmatprep.subr.mxu0 0.0
    %746 = vmatpush1.msra.mxu0 0.0
    %747 = vmatprep.subr.mxu0 0.0
    %748 = vmatpush1.msra.mxu0 0.0
    %749 = vmatprep.subr.mxu0 0.0
    %750 = vmatpush1.msra.mxu0 0.0
    %751 = vmatprep.subr.mxu0 0.0
    %752 = vmatpush1.msra.mxu0 0.0
    %753 = vmatprep.subr.mxu0 0.0
    %754 = vmatpush1.msra.mxu0 0.0
    %755 = vmatprep.subr.mxu0 0.0
    %756 = vmatpush1.msra.mxu0 0.0
    %757 = vmatprep.subr.mxu0 0.0
    %758 = vmatpush1.msra.mxu0 0.0
    %759 = vmatprep.subr.mxu0 0.0
    %760 = vmatpush1.msra.mxu0 0.0
    %761 = vmatprep.subr.mxu0 0.0
    %762 = vmatpush1.msra.mxu0 0.0
    %763 = vmatprep.subr.mxu0 0.0
    %764 = vmatpush1.msra.mxu0 0.0
    %765 = vmatprep.mubr.f32.mxu0 0.0
    %766 = vmatmul.mubr.f32.gmra.mrb[0].mxu0 %v699
    %v767 = vpop.f32.mrb[0].mxu0
    %v768 = vadd.f32 0.0, %v767
    %v769 = vpop.f32.mrb[0].mxu0
    %v770 = vadd.f32 0.0, %v769
    %771 = vdwg.mxu0
    %v772 = vadd.f32 %v255, %v768
    %v773 = vadd.f32 %v256, %v770
    %v774 = vxor.u32 %v772, 2147483648
    %v775 = vmul.f32 %v774, 1.442695
    %v776 = vpow.pop %v775
    %v777 = vadd.f32 %v776, 1.0
    %v778 = vrcp.pop %v777
    %v779 = vmul.f32 1.0, %v778
    %v780 = vtanh.pop %v773
    %v781 = vxor.u32 %v773, 2147483648
    %v782 = vmul.f32 %v781, 1.442695
    %v783 = vpow.pop %v782
    %v784 = vadd.f32 %v783, 1.0
    %v785 = vrcp.pop %v784
    %v786 = vmul.f32 1.0, %v785
    %v787 = vmul.f32 %v779, %v693
    %v788 = vmul.f32 %v779, %v780
    %790 = vrot.lane.b32.xlu0 %v788, 64
    %v791 = vpop.permute.xlu0 %790
    %v793 = vadd.f32 %v787, %v791
    %v794 = vtanh.pop %v793
    %v795 = vmul.f32 %v786, %v794
    %797 = vrot.lane.b32.xlu0 %v795, 64
    %v798 = vpop.permute.xlu0 %797
    %v799 = vsel %vm297, %v798, 0
    %801 = vmatprep.subr.mxu0 %v282
    %802 = vmatpush1.msra.mxu0 %v281
    %803 = vmatprep.subr.mxu0 %v284
    %804 = vmatpush1.msra.mxu0 %v283
    %805 = vmatprep.subr.mxu0 %v286
    %806 = vmatpush1.msra.mxu0 %v285
    %807 = vmatprep.subr.mxu0 %v288
    %808 = vmatpush1.msra.mxu0 %v287
    %809 = vmatprep.subr.mxu0 %v290
    %810 = vmatpush1.msra.mxu0 %v289
    %811 = vmatprep.subr.mxu0 %v292
    %812 = vmatpush1.msra.mxu0 %v291
    %813 = vmatprep.subr.mxu0 %v294
    %814 = vmatpush1.msra.mxu0 %v293
    %815 = vmatprep.subr.mxu0 %v296
    %816 = vmatpush1.msra.mxu0 %v295
    %817 = vmatprep.subr.mxu0 0.0
    %818 = vmatpush1.msra.mxu0 0.0
    %819 = vmatprep.subr.mxu0 0.0
    %820 = vmatpush1.msra.mxu0 0.0
    %821 = vmatprep.subr.mxu0 0.0
    %822 = vmatpush1.msra.mxu0 0.0
    %823 = vmatprep.subr.mxu0 0.0
    %824 = vmatpush1.msra.mxu0 0.0
    %825 = vmatprep.subr.mxu0 0.0
    %826 = vmatpush1.msra.mxu0 0.0
    %827 = vmatprep.subr.mxu0 0.0
    %828 = vmatpush1.msra.mxu0 0.0
    %829 = vmatprep.subr.mxu0 0.0
    %830 = vmatpush1.msra.mxu0 0.0
    %831 = vmatprep.subr.mxu0 0.0
    %832 = vmatpush1.msra.mxu0 0.0
    %833 = vmatprep.subr.mxu0 0.0
    %834 = vmatpush1.msra.mxu0 0.0
    %835 = vmatprep.subr.mxu0 0.0
    %836 = vmatpush1.msra.mxu0 0.0
    %837 = vmatprep.subr.mxu0 0.0
    %838 = vmatpush1.msra.mxu0 0.0
    %839 = vmatprep.subr.mxu0 0.0
    %840 = vmatpush1.msra.mxu0 0.0
    %841 = vmatprep.subr.mxu0 0.0
    %842 = vmatpush1.msra.mxu0 0.0
    %843 = vmatprep.subr.mxu0 0.0
    %844 = vmatpush1.msra.mxu0 0.0
    %845 = vmatprep.subr.mxu0 0.0
    %846 = vmatpush1.msra.mxu0 0.0
    %847 = vmatprep.subr.mxu0 0.0
    %848 = vmatpush1.msra.mxu0 0.0
    %849 = vmatprep.subr.mxu0 0.0
    %850 = vmatpush1.msra.mxu0 0.0
    %851 = vmatprep.subr.mxu0 0.0
    %852 = vmatpush1.msra.mxu0 0.0
    %853 = vmatprep.subr.mxu0 0.0
    %854 = vmatpush1.msra.mxu0 0.0
    %855 = vmatprep.subr.mxu0 0.0
    %856 = vmatpush1.msra.mxu0 0.0
    %857 = vmatprep.subr.mxu0 0.0
    %858 = vmatpush1.msra.mxu0 0.0
    %859 = vmatprep.subr.mxu0 0.0
    %860 = vmatpush1.msra.mxu0 0.0
    %861 = vmatprep.subr.mxu0 0.0
    %862 = vmatpush1.msra.mxu0 0.0
    %863 = vmatprep.subr.mxu0 0.0
    %864 = vmatpush1.msra.mxu0 0.0
    %865 = vmatprep.mubr.f32.mxu0 0.0
    %866 = vmatmul.mubr.f32.gmra.mrb[0].mxu0 %v799
    %v867 = vpop.f32.mrb[0].mxu0
    %v868 = vadd.f32 0.0, %v867
    %v869 = vpop.f32.mrb[0].mxu0
    %v870 = vadd.f32 0.0, %v869
    %871 = vdwg.mxu0
    %v872 = vadd.f32 %v263, %v868
    %v873 = vadd.f32 %v264, %v870
    %v874 = vxor.u32 %v872, 2147483648
    %v875 = vmul.f32 %v874, 1.442695
    %v876 = vpow.pop %v875
    %v877 = vadd.f32 %v876, 1.0
    %v878 = vrcp.pop %v877
    %v879 = vmul.f32 1.0, %v878
    %v880 = vtanh.pop %v873
    %v881 = vxor.u32 %v873, 2147483648
    %v882 = vmul.f32 %v881, 1.442695
    %v883 = vpow.pop %v882
    %v884 = vadd.f32 %v883, 1.0
    %v885 = vrcp.pop %v884
    %v886 = vmul.f32 1.0, %v885
    %v887 = vmul.f32 %v879, %v793
    %v888 = vmul.f32 %v879, %v880
    %890 = vrot.lane.b32.xlu0 %v888, 64
    %v891 = vpop.permute.xlu0 %890
    %v893 = vadd.f32 %v887, %v891
    %v894 = vtanh.pop %v893
    %v895 = vmul.f32 %v886, %v894
    %897 = vrot.lane.b32.xlu0 %v895, 64
    %v898 = vpop.permute.xlu0 %897
    %v899 = vsel %vm297, %v898, 0
    %901 = vmatprep.subr.mxu0 %v282
    %902 = vmatpush1.msra.mxu0 %v281
    %903 = vmatprep.subr.mxu0 %v284
    %904 = vmatpush1.msra.mxu0 %v283
    %905 = vmatprep.subr.mxu0 %v286
    %906 = vmatpush1.msra.mxu0 %v285
    %907 = vmatprep.subr.mxu0 %v288
    %908 = vmatpush1.msra.mxu0 %v287
    %909 = vmatprep.subr.mxu0 %v290
    %910 = vmatpush1.msra.mxu0 %v289
    %911 = vmatprep.subr.mxu0 %v292
    %912 = vmatpush1.msra.mxu0 %v291
    %913 = vmatprep.subr.mxu0 %v294
    %914 = vmatpush1.msra.mxu0 %v293
    %915 = vmatprep.subr.mxu0 %v296
    %916 = vmatpush1.msra.mxu0 %v295
    %917 = vmatprep.subr.mxu0 0.0
    %918 = vmatpush1.msra.mxu0 0.0
    %919 = vmatprep.subr.mxu0 0.0
    %920 = vmatpush1.msra.mxu0 0.0
    %921 = vmatprep.subr.mxu0 0.0
    %922 = vmatpush1.msra.mxu0 0.0
    %923 = vmatprep.subr.mxu0 0.0
    %924 = vmatpush1.msra.mxu0 0.0
    %925 = vmatprep.subr.mxu0 0.0
    %926 = vmatpush1.msra.mxu0 0.0
    %927 = vmatprep.subr.mxu0 0.0
    %928 = vmatpush1.msra.mxu0 0.0
    %929 = vmatprep.subr.mxu0 0.0
    %930 = vmatpush1.msra.mxu0 0.0
    %931 = vmatprep.subr.mxu0 0.0
    %932 = vmatpush1.msra.mxu0 0.0
    %933 = vmatprep.subr.mxu0 0.0
    %934 = vmatpush1.msra.mxu0 0.0
    %935 = vmatprep.subr.mxu0 0.0
    %936 = vmatpush1.msra.mxu0 0.0
    %937 = vmatprep.subr.mxu0 0.0
    %938 = vmatpush1.msra.mxu0 0.0
    %939 = vmatprep.subr.mxu0 0.0
    %940 = vmatpush1.msra.mxu0 0.0
    %941 = vmatprep.subr.mxu0 0.0
    %942 = vmatpush1.msra.mxu0 0.0
    %943 = vmatprep.subr.mxu0 0.0
    %944 = vmatpush1.msra.mxu0 0.0
    %945 = vmatprep.subr.mxu0 0.0
    %946 = vmatpush1.msra.mxu0 0.0
    %947 = vmatprep.subr.mxu0 0.0
    %948 = vmatpush1.msra.mxu0 0.0
    %949 = vmatprep.subr.mxu0 0.0
    %950 = vmatpush1.msra.mxu0 0.0
    %951 = vmatprep.subr.mxu0 0.0
    %952 = vmatpush1.msra.mxu0 0.0
    %953 = vmatprep.subr.mxu0 0.0
    %954 = vmatpush1.msra.mxu0 0.0
    %955 = vmatprep.subr.mxu0 0.0
    %956 = vmatpush1.msra.mxu0 0.0
    %957 = vmatprep.subr.mxu0 0.0
    %958 = vmatpush1.msra.mxu0 0.0
    %959 = vmatprep.subr.mxu0 0.0
    %960 = vmatpush1.msra.mxu0 0.0
    %961 = vmatprep.subr.mxu0 0.0
    %962 = vmatpush1.msra.mxu0 0.0
    %963 = vmatprep.subr.mxu0 0.0
    %964 = vmatpush1.msra.mxu0 0.0
    %965 = vmatprep.mubr.f32.mxu0 0.0
    %966 = vmatmul.mubr.f32.gmra.mrb[0].mxu0 %v899
    %v967 = vpop.f32.mrb[0].mxu0
    %v968 = vadd.f32 0.0, %v967
    %v969 = vpop.f32.mrb[0].mxu0
    %v970 = vadd.f32 0.0, %v969
    %971 = vdwg.mxu0
    %v972 = vadd.f32 %v271, %v968
    %v973 = vadd.f32 %v272, %v970
    %v974 = vxor.u32 %v972, 2147483648
    %v975 = vmul.f32 %v974, 1.442695
    %v976 = vpow.pop %v975
    %v977 = vadd.f32 %v976, 1.0
    %v978 = vrcp.pop %v977
    %v979 = vmul.f32 1.0, %v978
    %v980 = vtanh.pop %v973
    %v981 = vxor.u32 %v973, 2147483648
    %v982 = vmul.f32 %v981, 1.442695
    %v983 = vpow.pop %v982
    %v984 = vadd.f32 %v983, 1.0
    %v985 = vrcp.pop %v984
    %v986 = vmul.f32 1.0, %v985
    %v987 = vmul.f32 %v979, %v893
    %v988 = vmul.f32 %v979, %v980
    %990 = vrot.lane.b32.xlu0 %v988, 64
    %v991 = vpop.permute.xlu0 %990
    %v993 = vadd.f32 %v987, %v991
    %v994 = vtanh.pop %v993
    %v995 = vmul.f32 %v986, %v994
    %997 = vrot.lane.b32.xlu0 %v995, 64
    %v998 = vpop.permute.xlu0 %997
    %v999 = vsel %vm297, %v998, 0
    %1001 = vmatprep.subr.mxu0 %v282
    %1002 = vmatpush1.msra.mxu0 %v281
    %1003 = vmatprep.subr.mxu0 %v284
    %1004 = vmatpush1.msra.mxu0 %v283
    %1005 = vmatprep.subr.mxu0 %v286
    %1006 = vmatpush1.msra.mxu0 %v285
    %1007 = vmatprep.subr.mxu0 %v288
    %1008 = vmatpush1.msra.mxu0 %v287
    %1009 = vmatprep.subr.mxu0 %v290
    %1010 = vmatpush1.msra.mxu0 %v289
    %1011 = vmatprep.subr.mxu0 %v292
    %1012 = vmatpush1.msra.mxu0 %v291
    %1013 = vmatprep.subr.mxu0 %v294
    %1014 = vmatpush1.msra.mxu0 %v293
    %1015 = vmatprep.subr.mxu0 %v296
    %1016 = vmatpush1.msra.mxu0 %v295
    %1017 = vmatprep.subr.mxu0 0.0
    %1018 = vmatpush1.msra.mxu0 0.0
    %1019 = vmatprep.subr.mxu0 0.0
    %1020 = vmatpush1.msra.mxu0 0.0
    %1021 = vmatprep.subr.mxu0 0.0
    %1022 = vmatpush1.msra.mxu0 0.0
    %1023 = vmatprep.subr.mxu0 0.0
    %1024 = vmatpush1.msra.mxu0 0.0
    %1025 = vmatprep.subr.mxu0 0.0
    %1026 = vmatpush1.msra.mxu0 0.0
    %1027 = vmatprep.subr.mxu0 0.0
    %1028 = vmatpush1.msra.mxu0 0.0
    %1029 = vmatprep.subr.mxu0 0.0
    %1030 = vmatpush1.msra.mxu0 0.0
    %1031 = vmatprep.subr.mxu0 0.0
    %1032 = vmatpush1.msra.mxu0 0.0
    %1033 = vmatprep.subr.mxu0 0.0
    %1034 = vmatpush1.msra.mxu0 0.0
    %1035 = vmatprep.subr.mxu0 0.0
    %1036 = vmatpush1.msra.mxu0 0.0
    %1037 = vmatprep.subr.mxu0 0.0
    %1038 = vmatpush1.msra.mxu0 0.0
    %1039 = vmatprep.subr.mxu0 0.0
    %1040 = vmatpush1.msra.mxu0 0.0
    %1041 = vmatprep.subr.mxu0 0.0
    %1042 = vmatpush1.msra.mxu0 0.0
    %1043 = vmatprep.subr.mxu0 0.0
    %1044 = vmatpush1.msra.mxu0 0.0
    %1045 = vmatprep.subr.mxu0 0.0
    %1046 = vmatpush1.msra.mxu0 0.0
    %1047 = vmatprep.subr.mxu0 0.0
    %1048 = vmatpush1.msra.mxu0 0.0
    %1049 = vmatprep.subr.mxu0 0.0
    %1050 = vmatpush1.msra.mxu0 0.0
    %1051 = vmatprep.subr.mxu0 0.0
    %1052 = vmatpush1.msra.mxu0 0.0
    %1053 = vmatprep.subr.mxu0 0.0
    %1054 = vmatpush1.msra.mxu0 0.0
    %1055 = vmatprep.subr.mxu0 0.0
    %1056 = vmatpush1.msra.mxu0 0.0
    %1057 = vmatprep.subr.mxu0 0.0
    %1058 = vmatpush1.msra.mxu0 0.0
    %1059 = vmatprep.subr.mxu0 0.0
    %1060 = vmatpush1.msra.mxu0 0.0
    %1061 = vmatprep.subr.mxu0 0.0
    %1062 = vmatpush1.msra.mxu0 0.0
    %1063 = vmatprep.subr.mxu0 0.0
    %1064 = vmatpush1.msra.mxu0 0.0
    %1065 = vmatprep.mubr.f32.mxu0 0.0
    %1066 = vmatmul.mubr.f32.gmra.mrb[0].mxu0 %v999
    %v1067 = vpop.f32.mrb[0].mxu0
    %v1068 = vadd.f32 0.0, %v1067
    %v1069 = vpop.f32.mrb[0].mxu0
    %v1070 = vadd.f32 0.0, %v1069
    %1071 = vdwg.mxu0
    %v1072 = vadd.f32 %v279, %v1068
    %v1073 = vadd.f32 %v280, %v1070
    %v1074 = vxor.u32 %v1072, 2147483648
    %v1075 = vmul.f32 %v1074, 1.442695
    %v1076 = vpow.pop %v1075
    %v1077 = vadd.f32 %v1076, 1.0
    %v1078 = vrcp.pop %v1077
    %v1079 = vmul.f32 1.0, %v1078
    %v1080 = vtanh.pop %v1073
    %v1081 = vxor.u32 %v1073, 2147483648
    %v1082 = vmul.f32 %v1081, 1.442695
    %v1083 = vpow.pop %v1082
    %v1084 = vadd.f32 %v1083, 1.0
    %v1085 = vrcp.pop %v1084
    %v1086 = vmul.f32 1.0, %v1085
    %v1087 = vmul.f32 %v1079, %v993
    %v1088 = vmul.f32 %v1079, %v1080
    %1090 = vrot.lane.b32.xlu0 %v1088, 64
    %v1091 = vpop.permute.xlu0 %1090
    %v1093 = vadd.f32 %v1087, %v1091
    %v1094 = vtanh.pop %v1093
    %v1095 = vmul.f32 %v1086, %v1094
    %v1096 = vld [vmem:[%s5] sm:$0xff]
    %v1097 = vld [vmem:[%s5 + $0x8] sm:$0xff]
    %v1098 = vld [vmem:[%s5 + $0x10] sm:$0xff]
    %v1099 = vld [vmem:[%s5 + $0x18] sm:$0xff]
    %v1100 = vld [vmem:[%s5 + $0x20] sm:$0xff]
    %v1101 = vld [vmem:[%s5 + $0x28] sm:$0xff]
    %v1102 = vld [vmem:[%s5 + $0x30] sm:$0xff]
    %v1103 = vld [vmem:[%s5 + $0x38] sm:$0xff]
    %v1104 = vld [vmem:[%s5 + $0x40] sm:$0xff]
    %v1105 = vld [vmem:[%s5 + $0x48] sm:$0xff]
    %v1106 = vld [vmem:[%s5 + $0x50] sm:$0xff]
    %v1107 = vld [vmem:[%s5 + $0x58] sm:$0xff]
    %v1108 = vld [vmem:[%s5 + $0x60] sm:$0xff]
    %v1109 = vld [vmem:[%s5 + $0x68] sm:$0xff]
    %v1110 = vld [vmem:[%s5 + $0x70] sm:$0xff]
    %v1111 = vld [vmem:[%s5 + $0x78] sm:$0xff]
    %v1112 = vld [vmem:[#allocation8] sm:$0xff]
    %v1113 = vld [vmem:[#allocation8 + $0x8] sm:$0xff]
    %v1114 = vld [vmem:[#allocation8 + $0x10] sm:$0xff]
    %v1115 = vld [vmem:[#allocation8 + $0x18] sm:$0xff]
    %v1116 = vld [vmem:[#allocation8 + $0x20] sm:$0xff]
    %v1117 = vld [vmem:[#allocation8 + $0x28] sm:$0xff]
    %v1118 = vld [vmem:[#allocation8 + $0x30] sm:$0xff]
    %v1119 = vld [vmem:[#allocation8 + $0x38] sm:$0xff]
    %v1120 = vld [vmem:[#allocation8 + $0x40] sm:$0xff]
    %v1121 = vld [vmem:[#allocation8 + $0x48] sm:$0xff]
    %v1122 = vld [vmem:[#allocation8 + $0x50] sm:$0xff]
    %v1123 = vld [vmem:[#allocation8 + $0x58] sm:$0xff]
    %v1124 = vld [vmem:[#allocation8 + $0x60] sm:$0xff]
    %v1125 = vld [vmem:[#allocation8 + $0x68] sm:$0xff]
    %v1126 = vld [vmem:[#allocation8 + $0x70] sm:$0xff]
    %v1127 = vld [vmem:[#allocation8 + $0x78] sm:$0xff]
    %v1128 = vld [vmem:[#allocation11] sm:$0x3]
    %1130 = vrot.lane.b32.xlu0 %v1095, 64
    %v1131 = vpop.permute.xlu0 %1130
    %v1132 = vsel %vm297, %v1131, 0
    %1134 = vmatprep.subr.mxu0 %v1113
    %1135 = vmatpush1.msra.mxu0 %v1112
    %1136 = vmatprep.subr.mxu0 %v1115
    %1137 = vmatpush1.msra.mxu0 %v1114
    %1138 = vmatprep.subr.mxu0 %v1117
    %1139 = vmatpush1.msra.mxu0 %v1116
    %1140 = vmatprep.subr.mxu0 %v1119
    %1141 = vmatpush1.msra.mxu0 %v1118
    %1142 = vmatprep.subr.mxu0 %v1121
    %1143 = vmatpush1.msra.mxu0 %v1120
    %1144 = vmatprep.subr.mxu0 %v1123
    %1145 = vmatpush1.msra.mxu0 %v1122
    %1146 = vmatprep.subr.mxu0 %v1125
    %1147 = vmatpush1.msra.mxu0 %v1124
    %1148 = vmatprep.subr.mxu0 %v1127
    %1149 = vmatpush1.msra.mxu0 %v1126
    %1150 = vmatprep.subr.mxu0 0.0
    %1151 = vmatpush1.msra.mxu0 0.0
    %1152 = vmatprep.subr.mxu0 0.0
    %1153 = vmatpush1.msra.mxu0 0.0
    %1154 = vmatprep.subr.mxu0 0.0
    %1155 = vmatpush1.msra.mxu0 0.0
    %1156 = vmatprep.subr.mxu0 0.0
    %1157 = vmatpush1.msra.mxu0 0.0
    %1158 = vmatprep.subr.mxu0 0.0
    %1159 = vmatpush1.msra.mxu0 0.0
    %1160 = vmatprep.subr.mxu0 0.0
    %1161 = vmatpush1.msra.mxu0 0.0
    %1162 = vmatprep.subr.mxu0 0.0
    %1163 = vmatpush1.msra.mxu0 0.0
    %1164 = vmatprep.subr.mxu0 0.0
    %1165 = vmatpush1.msra.mxu0 0.0
    %1166 = vmatprep.subr.mxu0 0.0
    %1167 = vmatpush1.msra.mxu0 0.0
    %1168 = vmatprep.subr.mxu0 0.0
    %1169 = vmatpush1.msra.mxu0 0.0
    %1170 = vmatprep.subr.mxu0 0.0
    %1171 = vmatpush1.msra.mxu0 0.0
    %1172 = vmatprep.subr.mxu0 0.0
    %1173 = vmatpush1.msra.mxu0 0.0
    %1174 = vmatprep.subr.mxu0 0.0
    %1175 = vmatpush1.msra.mxu0 0.0
    %1176 = vmatprep.subr.mxu0 0.0
    %1177 = vmatpush1.msra.mxu0 0.0
    %1178 = vmatprep.subr.mxu0 0.0
    %1179 = vmatpush1.msra.mxu0 0.0
    %1180 = vmatprep.subr.mxu0 0.0
    %1181 = vmatpush1.msra.mxu0 0.0
    %1182 = vmatprep.subr.mxu0 0.0
    %1183 = vmatpush1.msra.mxu0 0.0
    %1184 = vmatprep.subr.mxu0 0.0
    %1185 = vmatpush1.msra.mxu0 0.0
    %1186 = vmatprep.subr.mxu0 0.0
    %1187 = vmatpush1.msra.mxu0 0.0
    %1188 = vmatprep.subr.mxu0 0.0
    %1189 = vmatpush1.msra.mxu0 0.0
    %1190 = vmatprep.subr.mxu0 0.0
    %1191 = vmatpush1.msra.mxu0 0.0
    %1192 = vmatprep.subr.mxu0 0.0
    %1193 = vmatpush1.msra.mxu0 0.0
    %1194 = vmatprep.subr.mxu0 0.0
    %1195 = vmatpush1.msra.mxu0 0.0
    %1196 = vmatprep.subr.mxu0 0.0
    %1197 = vmatpush1.msra.mxu0 0.0
    %1198 = vmatprep.mubr.f32.mxu0 0.0
    %1199 = vmatmul.mubr.f32.gmra.mrb[0].mxu0 %v1132
    %v1200 = vpop.f32.mrb[0].mxu0
    %v1201 = vadd.f32 0.0, %v1200
    %v1202 = vpop.f32.mrb[0].mxu0
    %v1203 = vadd.f32 0.0, %v1202
    %1204 = vdwg.mxu0
    %1205 = vmatprep.subr.mxu0 %v1097
    %1206 = vmatpush1.msra.mxu0 %v1096
    %1207 = vmatprep.subr.mxu0 %v1099
    %1208 = vmatpush1.msra.mxu0 %v1098
    %1209 = vmatprep.subr.mxu0 %v1101
    %1210 = vmatpush1.msra.mxu0 %v1100
    %1211 = vmatprep.subr.mxu0 %v1103
    %1212 = vmatpush1.msra.mxu0 %v1102
    %1213 = vmatprep.subr.mxu0 %v1105
    %1214 = vmatpush1.msra.mxu0 %v1104
    %1215 = vmatprep.subr.mxu0 %v1107
    %1216 = vmatpush1.msra.mxu0 %v1106
    %1217 = vmatprep.subr.mxu0 %v1109
    %1218 = vmatpush1.msra.mxu0 %v1108
    %1219 = vmatprep.subr.mxu0 %v1111
    %1220 = vmatpush1.msra.mxu0 %v1110
    %1221 = vmatprep.subr.mxu0 0.0
    %1222 = vmatpush1.msra.mxu0 0.0
    %1223 = vmatprep.subr.mxu0 0.0
    %1224 = vmatpush1.msra.mxu0 0.0
    %1225 = vmatprep.subr.mxu0 0.0
    %1226 = vmatpush1.msra.mxu0 0.0
    %1227 = vmatprep.subr.mxu0 0.0
    %1228 = vmatpush1.msra.mxu0 0.0
    %1229 = vmatprep.subr.mxu0 0.0
    %1230 = vmatpush1.msra.mxu0 0.0
    %1231 = vmatprep.subr.mxu0 0.0
    %1232 = vmatpush1.msra.mxu0 0.0
    %1233 = vmatprep.subr.mxu0 0.0
    %1234 = vmatpush1.msra.mxu0 0.0
    %1235 = vmatprep.subr.mxu0 0.0
    %1236 = vmatpush1.msra.mxu0 0.0
    %1237 = vmatprep.subr.mxu0 0.0
    %1238 = vmatpush1.msra.mxu0 0.0
    %1239 = vmatprep.subr.mxu0 0.0
    %1240 = vmatpush1.msra.mxu0 0.0
    %1241 = vmatprep.subr.mxu0 0.0
    %1242 = vmatpush1.msra.mxu0 0.0
    %1243 = vmatprep.subr.mxu0 0.0
    %1244 = vmatpush1.msra.mxu0 0.0
    %1245 = vmatprep.subr.mxu0 0.0
    %1246 = vmatpush1.msra.mxu0 0.0
    %1247 = vmatprep.subr.mxu0 0.0
    %1248 = vmatpush1.msra.mxu0 0.0
    %1249 = vmatprep.subr.mxu0 0.0
    %1250 = vmatpush1.msra.mxu0 0.0
    %1251 = vmatprep.subr.mxu0 0.0
    %1252 = vmatpush1.msra.mxu0 0.0
    %1253 = vmatprep.subr.mxu0 0.0
    %1254 = vmatpush1.msra.mxu0 0.0
    %1255 = vmatprep.subr.mxu0 0.0
    %1256 = vmatpush1.msra.mxu0 0.0
    %1257 = vmatprep.subr.mxu0 0.0
    %1258 = vmatpush1.msra.mxu0 0.0
    %1259 = vmatprep.subr.mxu0 0.0
    %1260 = vmatpush1.msra.mxu0 0.0
    %1261 = vmatprep.subr.mxu0 0.0
    %1262 = vmatpush1.msra.mxu0 0.0
    %1263 = vmatprep.subr.mxu0 0.0
    %1264 = vmatpush1.msra.mxu0 0.0
    %1265 = vmatprep.subr.mxu0 0.0
    %1266 = vmatpush1.msra.mxu0 0.0
    %1267 = vmatprep.subr.mxu0 0.0
    %1268 = vmatpush1.msra.mxu0 0.0
    %1269 = vmatprep.mubr.f32.mxu0 0.0
    %1270 = vmatmul.mubr.f32.gmra.mrb[0].mxu0 %v399
    %v1271 = vpop.f32.mrb[0].mxu0
    %v1272 = vadd.f32 %v1201, %v1271
    %v1273 = vpop.f32.mrb[0].mxu0
    %v1274 = vadd.f32 %v1203, %v1273
    %1275 = vdwg.mxu0
    %v1277 = vlaneseq
    %v1278 = vshrl.u32 %v1277, 7
    %v1279 = vsub.s32 0, %v1278
    %v1280 = vrot.slane %v1128, %v1279
    %v1281 = vlaneseq
    %v1282 = vshrl.u32 %v1281, 7
    %v1283 = vsub.s32 1, %v1282
    %v1284 = vrot.slane %v1128, %v1283
    %v1287 = vadd.f32 %v1272, %v1280
    %v1288 = vadd.f32 %v1274, %v1284
    %1289 = vmatprep.subr.mxu0 %v1113
    %1290 = vmatpush1.msra.mxu0 %v1112
    %1291 = vmatprep.subr.mxu0 %v1115
    %1292 = vmatpush1.msra.mxu0 %v1114
    %1293 = vmatprep.subr.mxu0 %v1117
    %1294 = vmatpush1.msra.mxu0 %v1116
    %1295 = vmatprep.subr.mxu0 %v1119
    %1296 = vmatpush1.msra.mxu0 %v1118
    %1297 = vmatprep.subr.mxu0 %v1121
    %1298 = vmatpush1.msra.mxu0 %v1120
    %1299 = vmatprep.subr.mxu0 %v1123
    %1300 = vmatpush1.msra.mxu0 %v1122
    %1301 = vmatprep.subr.mxu0 %v1125
    %1302 = vmatpush1.msra.mxu0 %v1124
    %1303 = vmatprep.subr.mxu0 %v1127
    %1304 = vmatpush1.msra.mxu0 %v1126
    %1305 = vmatprep.subr.mxu0 0.0
    %1306 = vmatpush1.msra.mxu0 0.0
    %1307 = vmatprep.subr.mxu0 0.0
    %1308 = vmatpush1.msra.mxu0 0.0
    %1309 = vmatprep.subr.mxu0 0.0
    %1310 = vmatpush1.msra.mxu0 0.0
    %1311 = vmatprep.subr.mxu0 0.0
    %1312 = vmatpush1.msra.mxu0 0.0
    %1313 = vmatprep.subr.mxu0 0.0
    %1314 = vmatpush1.msra.mxu0 0.0
    %1315 = vmatprep.subr.mxu0 0.0
    %1316 = vmatpush1.msra.mxu0 0.0
    %1317 = vmatprep.subr.mxu0 0.0
    %1318 = vmatpush1.msra.mxu0 0.0
    %1319 = vmatprep.subr.mxu0 0.0
    %1320 = vmatpush1.msra.mxu0 0.0
    %1321 = vmatprep.subr.mxu0 0.0
    %1322 = vmatpush1.msra.mxu0 0.0
    %1323 = vmatprep.subr.mxu0 0.0
    %1324 = vmatpush1.msra.mxu0 0.0
    %1325 = vmatprep.subr.mxu0 0.0
    %1326 = vmatpush1.msra.mxu0 0.0
    %1327 = vmatprep.subr.mxu0 0.0
    %1328 = vmatpush1.msra.mxu0 0.0
    %1329 = vmatprep.subr.mxu0 0.0
    %1330 = vmatpush1.msra.mxu0 0.0
    %1331 = vmatprep.subr.mxu0 0.0
    %1332 = vmatpush1.msra.mxu0 0.0
    %1333 = vmatprep.subr.mxu0 0.0
    %1334 = vmatpush1.msra.mxu0 0.0
    %1335 = vmatprep.subr.mxu0 0.0
    %1336 = vmatpush1.msra.mxu0 0.0
    %1337 = vmatprep.subr.mxu0 0.0
    %1338 = vmatpush1.msra.mxu0 0.0
    %1339 = vmatprep.subr.mxu0 0.0
    %1340 = vmatpush1.msra.mxu0 0.0
    %1341 = vmatprep.subr.mxu0 0.0
    %1342 = vmatpush1.msra.mxu0 0.0
    %1343 = vmatprep.subr.mxu0 0.0
    %1344 = vmatpush1.msra.mxu0 0.0
    %1345 = vmatprep.subr.mxu0 0.0
    %1346 = vmatpush1.msra.mxu0 0.0
    %1347 = vmatprep.subr.mxu0 0.0
    %1348 = vmatpush1.msra.mxu0 0.0
    %1349 = vmatprep.subr.mxu0 0.0
    %1350 = vmatpush1.msra.mxu0 0.0
    %1351 = vmatprep.subr.mxu0 0.0
    %1352 = vmatpush1.msra.mxu0 0.0
    %1353 = vmatprep.mubr.f32.mxu0 0.0
    %1354 = vmatmul.mubr.f32.gmra.mrb[0].mxu0 %v999
    %v1355 = vpop.f32.mrb[0].mxu0
    %v1356 = vadd.f32 0.0, %v1355
    %v1357 = vpop.f32.mrb[0].mxu0
    %v1358 = vadd.f32 0.0, %v1357
    %1359 = vdwg.mxu0
    %1360 = vmatprep.subr.mxu0 %v1097
    %1361 = vmatpush1.msra.mxu0 %v1096
    %1362 = vmatprep.subr.mxu0 %v1099
    %1363 = vmatpush1.msra.mxu0 %v1098
    %1364 = vmatprep.subr.mxu0 %v1101
    %1365 = vmatpush1.msra.mxu0 %v1100
    %1366 = vmatprep.subr.mxu0 %v1103
    %1367 = vmatpush1.msra.mxu0 %v1102
    %1368 = vmatprep.subr.mxu0 %v1105
    %1369 = vmatpush1.msra.mxu0 %v1104
    %1370 = vmatprep.subr.mxu0 %v1107
    %1371 = vmatpush1.msra.mxu0 %v1106
    %1372 = vmatprep.subr.mxu0 %v1109
    %1373 = vmatpush1.msra.mxu0 %v1108
    %1374 = vmatprep.subr.mxu0 %v1111
    %1375 = vmatpush1.msra.mxu0 %v1110
    %1376 = vmatprep.subr.mxu0 0.0
    %1377 = vmatpush1.msra.mxu0 0.0
    %1378 = vmatprep.subr.mxu0 0.0
    %1379 = vmatpush1.msra.mxu0 0.0
    %1380 = vmatprep.subr.mxu0 0.0
    %1381 = vmatpush1.msra.mxu0 0.0
    %1382 = vmatprep.subr.mxu0 0.0
    %1383 = vmatpush1.msra.mxu0 0.0
    %1384 = vmatprep.subr.mxu0 0.0
    %1385 = vmatpush1.msra.mxu0 0.0
    %1386 = vmatprep.subr.mxu0 0.0
    %1387 = vmatpush1.msra.mxu0 0.0
    %1388 = vmatprep.subr.mxu0 0.0
    %1389 = vmatpush1.msra.mxu0 0.0
    %1390 = vmatprep.subr.mxu0 0.0
    %1391 = vmatpush1.msra.mxu0 0.0
    %1392 = vmatprep.subr.mxu0 0.0
    %1393 = vmatpush1.msra.mxu0 0.0
    %1394 = vmatprep.subr.mxu0 0.0
    %1395 = vmatpush1.msra.mxu0 0.0
    %1396 = vmatprep.subr.mxu0 0.0
    %1397 = vmatpush1.msra.mxu0 0.0
    %1398 = vmatprep.subr.mxu0 0.0
    %1399 = vmatpush1.msra.mxu0 0.0
    %1400 = vmatprep.subr.mxu0 0.0
    %1401 = vmatpush1.msra.mxu0 0.0
    %1402 = vmatprep.subr.mxu0 0.0
    %1403 = vmatpush1.msra.mxu0 0.0
    %1404 = vmatprep.subr.mxu0 0.0
    %1405 = vmatpush1.msra.mxu0 0.0
    %1406 = vmatprep.subr.mxu0 0.0
    %1407 = vmatpush1.msra.mxu0 0.0
    %1408 = vmatprep.subr.mxu0 0.0
    %1409 = vmatpush1.msra.mxu0 0.0
    %1410 = vmatprep.subr.mxu0 0.0
    %1411 = vmatpush1.msra.mxu0 0.0
    %1412 = vmatprep.subr.mxu0 0.0
    %1413 = vmatpush1.msra.mxu0 0.0
    %1414 = vmatprep.subr.mxu0 0.0
    %1415 = vmatpush1.msra.mxu0 0.0
    %1416 = vmatprep.subr.mxu0 0.0
    %1417 = vmatpush1.msra.mxu0 0.0
    %1418 = vmatprep.subr.mxu0 0.0
    %1419 = vmatpush1.msra.mxu0 0.0
    %1420 = vmatprep.subr.mxu0 0.0
    %1421 = vmatpush1.msra.mxu0 0.0
    %1422 = vmatprep.subr.mxu0 0.0
    %1423 = vmatpush1.msra.mxu0 0.0
    %1424 = vmatprep.mubr.f32.mxu0 0.0
    %1425 = vmatmul.mubr.f32.gmra.mrb[0].mxu0 %v499
    %v1426 = vpop.f32.mrb[0].mxu0
    %v1427 = vadd.f32 %v1356, %v1426
    %v1428 = vpop.f32.mrb[0].mxu0
    %v1429 = vadd.f32 %v1358, %v1428
    %1430 = vdwg.mxu0
    %v1431 = vadd.f32 %v1427, %v1280
    %v1432 = vadd.f32 %v1429, %v1284
    %1433 = vmatprep.subr.mxu0 %v1113
    %1434 = vmatpush1.msra.mxu0 %v1112
    %1435 = vmatprep.subr.mxu0 %v1115
    %1436 = vmatpush1.msra.mxu0 %v1114
    %1437 = vmatprep.subr.mxu0 %v1117
    %1438 = vmatpush1.msra.mxu0 %v1116
    %1439 = vmatprep.subr.mxu0 %v1119
    %1440 = vmatpush1.msra.mxu0 %v1118
    %1441 = vmatprep.subr.mxu0 %v1121
    %1442 = vmatpush1.msra.mxu0 %v1120
    %1443 = vmatprep.subr.mxu0 %v1123
    %1444 = vmatpush1.msra.mxu0 %v1122
    %1445 = vmatprep.subr.mxu0 %v1125
    %1446 = vmatpush1.msra.mxu0 %v1124
    %1447 = vmatprep.subr.mxu0 %v1127
    %1448 = vmatpush1.msra.mxu0 %v1126
    %1449 = vmatprep.subr.mxu0 0.0
    %1450 = vmatpush1.msra.mxu0 0.0
    %1451 = vmatprep.subr.mxu0 0.0
    %1452 = vmatpush1.msra.mxu0 0.0
    %1453 = vmatprep.subr.mxu0 0.0
    %1454 = vmatpush1.msra.mxu0 0.0
    %1455 = vmatprep.subr.mxu0 0.0
    %1456 = vmatpush1.msra.mxu0 0.0
    %1457 = vmatprep.subr.mxu0 0.0
    %1458 = vmatpush1.msra.mxu0 0.0
    %1459 = vmatprep.subr.mxu0 0.0
    %1460 = vmatpush1.msra.mxu0 0.0
    %1461 = vmatprep.subr.mxu0 0.0
    %1462 = vmatpush1.msra.mxu0 0.0
    %1463 = vmatprep.subr.mxu0 0.0
    %1464 = vmatpush1.msra.mxu0 0.0
    %1465 = vmatprep.subr.mxu0 0.0
    %1466 = vmatpush1.msra.mxu0 0.0
    %1467 = vmatprep.subr.mxu0 0.0
    %1468 = vmatpush1.msra.mxu0 0.0
    %1469 = vmatprep.subr.mxu0 0.0
    %1470 = vmatpush1.msra.mxu0 0.0
    %1471 = vmatprep.subr.mxu0 0.0
    %1472 = vmatpush1.msra.mxu0 0.0
    %1473 = vmatprep.subr.mxu0 0.0
    %1474 = vmatpush1.msra.mxu0 0.0
    %1475 = vmatprep.subr.mxu0 0.0
    %1476 = vmatpush1.msra.mxu0 0.0
    %1477 = vmatprep.subr.mxu0 0.0
    %1478 = vmatpush1.msra.mxu0 0.0
    %1479 = vmatprep.subr.mxu0 0.0
    %1480 = vmatpush1.msra.mxu0 0.0
    %1481 = vmatprep.subr.mxu0 0.0
    %1482 = vmatpush1.msra.mxu0 0.0
    %1483 = vmatprep.subr.mxu0 0.0
    %1484 = vmatpush1.msra.mxu0 0.0
    %1485 = vmatprep.subr.mxu0 0.0
    %1486 = vmatpush1.msra.mxu0 0.0
    %1487 = vmatprep.subr.mxu0 0.0
    %1488 = vmatpush1.msra.mxu0 0.0
    %1489 = vmatprep.subr.mxu0 0.0
    %1490 = vmatpush1.msra.mxu0 0.0
    %1491 = vmatprep.subr.mxu0 0.0
    %1492 = vmatpush1.msra.mxu0 0.0
    %1493 = vmatprep.subr.mxu0 0.0
    %1494 = vmatpush1.msra.mxu0 0.0
    %1495 = vmatprep.subr.mxu0 0.0
    %1496 = vmatpush1.msra.mxu0 0.0
    %1497 = vmatprep.mubr.f32.mxu0 0.0
    %1498 = vmatmul.mubr.f32.gmra.mrb[0].mxu0 %v899
    %v1499 = vpop.f32.mrb[0].mxu0
    %v1500 = vadd.f32 0.0, %v1499
    %v1501 = vpop.f32.mrb[0].mxu0
    %v1502 = vadd.f32 0.0, %v1501
    %1503 = vdwg.mxu0
    %1504 = vmatprep.subr.mxu0 %v1097
    %1505 = vmatpush1.msra.mxu0 %v1096
    %1506 = vmatprep.subr.mxu0 %v1099
    %1507 = vmatpush1.msra.mxu0 %v1098
    %1508 = vmatprep.subr.mxu0 %v1101
    %1509 = vmatpush1.msra.mxu0 %v1100
    %1510 = vmatprep.subr.mxu0 %v1103
    %1511 = vmatpush1.msra.mxu0 %v1102
    %1512 = vmatprep.subr.mxu0 %v1105
    %1513 = vmatpush1.msra.mxu0 %v1104
    %1514 = vmatprep.subr.mxu0 %v1107
    %1515 = vmatpush1.msra.mxu0 %v1106
    %1516 = vmatprep.subr.mxu0 %v1109
    %1517 = vmatpush1.msra.mxu0 %v1108
    %1518 = vmatprep.subr.mxu0 %v1111
    %1519 = vmatpush1.msra.mxu0 %v1110
    %1520 = vmatprep.subr.mxu0 0.0
    %1521 = vmatpush1.msra.mxu0 0.0
    %1522 = vmatprep.subr.mxu0 0.0
    %1523 = vmatpush1.msra.mxu0 0.0
    %1524 = vmatprep.subr.mxu0 0.0
    %1525 = vmatpush1.msra.mxu0 0.0
    %1526 = vmatprep.subr.mxu0 0.0
    %1527 = vmatpush1.msra.mxu0 0.0
    %1528 = vmatprep.subr.mxu0 0.0
    %1529 = vmatpush1.msra.mxu0 0.0
    %1530 = vmatprep.subr.mxu0 0.0
    %1531 = vmatpush1.msra.mxu0 0.0
    %1532 = vmatprep.subr.mxu0 0.0
    %1533 = vmatpush1.msra.mxu0 0.0
    %1534 = vmatprep.subr.mxu0 0.0
    %1535 = vmatpush1.msra.mxu0 0.0
    %1536 = vmatprep.subr.mxu0 0.0
    %1537 = vmatpush1.msra.mxu0 0.0
    %1538 = vmatprep.subr.mxu0 0.0
    %1539 = vmatpush1.msra.mxu0 0.0
    %1540 = vmatprep.subr.mxu0 0.0
    %1541 = vmatpush1.msra.mxu0 0.0
    %1542 = vmatprep.subr.mxu0 0.0
    %1543 = vmatpush1.msra.mxu0 0.0
    %1544 = vmatprep.subr.mxu0 0.0
    %1545 = vmatpush1.msra.mxu0 0.0
    %1546 = vmatprep.subr.mxu0 0.0
    %1547 = vmatpush1.msra.mxu0 0.0
    %1548 = vmatprep.subr.mxu0 0.0
    %1549 = vmatpush1.msra.mxu0 0.0
    %1550 = vmatprep.subr.mxu0 0.0
    %1551 = vmatpush1.msra.mxu0 0.0
    %1552 = vmatprep.subr.mxu0 0.0
    %1553 = vmatpush1.msra.mxu0 0.0
    %1554 = vmatprep.subr.mxu0 0.0
    %1555 = vmatpush1.msra.mxu0 0.0
    %1556 = vmatprep.subr.mxu0 0.0
    %1557 = vmatpush1.msra.mxu0 0.0
    %1558 = vmatprep.subr.mxu0 0.0
    %1559 = vmatpush1.msra.mxu0 0.0
    %1560 = vmatprep.subr.mxu0 0.0
    %1561 = vmatpush1.msra.mxu0 0.0
    %1562 = vmatprep.subr.mxu0 0.0
    %1563 = vmatpush1.msra.mxu0 0.0
    %1564 = vmatprep.subr.mxu0 0.0
    %1565 = vmatpush1.msra.mxu0 0.0
    %1566 = vmatprep.subr.mxu0 0.0
    %1567 = vmatpush1.msra.mxu0 0.0
    %1568 = vmatprep.mubr.f32.mxu0 0.0
    %1569 = vmatmul.mubr.f32.gmra.mrb[0].mxu0 %v599
    %v1570 = vpop.f32.mrb[0].mxu0
    %v1571 = vadd.f32 %v1500, %v1570
    %v1572 = vpop.f32.mrb[0].mxu0
    %v1573 = vadd.f32 %v1502, %v1572
    %1574 = vdwg.mxu0
    %v1575 = vadd.f32 %v1571, %v1280
    %v1576 = vadd.f32 %v1573, %v1284
    %1577 = vmatprep.subr.mxu0 %v1113
    %1578 = vmatpush1.msra.mxu0 %v1112
    %1579 = vmatprep.subr.mxu0 %v1115
    %1580 = vmatpush1.msra.mxu0 %v1114
    %1581 = vmatprep.subr.mxu0 %v1117
    %1582 = vmatpush1.msra.mxu0 %v1116
    %1583 = vmatprep.subr.mxu0 %v1119
    %1584 = vmatpush1.msra.mxu0 %v1118
    %1585 = vmatprep.subr.mxu0 %v1121
    %1586 = vmatpush1.msra.mxu0 %v1120
    %1587 = vmatprep.subr.mxu0 %v1123
    %1588 = vmatpush1.msra.mxu0 %v1122
    %1589 = vmatprep.subr.mxu0 %v1125
    %1590 = vmatpush1.msra.mxu0 %v1124
    %1591 = vmatprep.subr.mxu0 %v1127
    %1592 = vmatpush1.msra.mxu0 %v1126
    %1593 = vmatprep.subr.mxu0 0.0
    %1594 = vmatpush1.msra.mxu0 0.0
    %1595 = vmatprep.subr.mxu0 0.0
    %1596 = vmatpush1.msra.mxu0 0.0
    %1597 = vmatprep.subr.mxu0 0.0
    %1598 = vmatpush1.msra.mxu0 0.0
    %1599 = vmatprep.subr.mxu0 0.0
    %1600 = vmatpush1.msra.mxu0 0.0
    %1601 = vmatprep.subr.mxu0 0.0
    %1602 = vmatpush1.msra.mxu0 0.0
    %1603 = vmatprep.subr.mxu0 0.0
    %1604 = vmatpush1.msra.mxu0 0.0
    %1605 = vmatprep.subr.mxu0 0.0
    %1606 = vmatpush1.msra.mxu0 0.0
    %1607 = vmatprep.subr.mxu0 0.0
    %1608 = vmatpush1.msra.mxu0 0.0
    %1609 = vmatprep.subr.mxu0 0.0
    %1610 = vmatpush1.msra.mxu0 0.0
    %1611 = vmatprep.subr.mxu0 0.0
    %1612 = vmatpush1.msra.mxu0 0.0
    %1613 = vmatprep.subr.mxu0 0.0
    %1614 = vmatpush1.msra.mxu0 0.0
    %1615 = vmatprep.subr.mxu0 0.0
    %1616 = vmatpush1.msra.mxu0 0.0
    %1617 = vmatprep.subr.mxu0 0.0
    %1618 = vmatpush1.msra.mxu0 0.0
    %1619 = vmatprep.subr.mxu0 0.0
    %1620 = vmatpush1.msra.mxu0 0.0
    %1621 = vmatprep.subr.mxu0 0.0
    %1622 = vmatpush1.msra.mxu0 0.0
    %1623 = vmatprep.subr.mxu0 0.0
    %1624 = vmatpush1.msra.mxu0 0.0
    %1625 = vmatprep.subr.mxu0 0.0
    %1626 = vmatpush1.msra.mxu0 0.0
    %1627 = vmatprep.subr.mxu0 0.0
    %1628 = vmatpush1.msra.mxu0 0.0
    %1629 = vmatprep.subr.mxu0 0.0
    %1630 = vmatpush1.msra.mxu0 0.0
    %1631 = vmatprep.subr.mxu0 0.0
    %1632 = vmatpush1.msra.mxu0 0.0
    %1633 = vmatprep.subr.mxu0 0.0
    %1634 = vmatpush1.msra.mxu0 0.0
    %1635 = vmatprep.subr.mxu0 0.0
    %1636 = vmatpush1.msra.mxu0 0.0
    %1637 = vmatprep.subr.mxu0 0.0
    %1638 = vmatpush1.msra.mxu0 0.0
    %1639 = vmatprep.subr.mxu0 0.0
    %1640 = vmatpush1.msra.mxu0 0.0
    %1641 = vmatprep.mubr.f32.mxu0 0.0
    %1642 = vmatmul.mubr.f32.gmra.mrb[0].mxu0 %v799
    %v1643 = vpop.f32.mrb[0].mxu0
    %v1644 = vadd.f32 0.0, %v1643
    %v1645 = vpop.f32.mrb[0].mxu0
    %v1646 = vadd.f32 0.0, %v1645
    %1647 = vdwg.mxu0
    %1648 = vmatprep.subr.mxu0 %v1097
    %1649 = vmatpush1.msra.mxu0 %v1096
    %1650 = vmatprep.subr.mxu0 %v1099
    %1651 = vmatpush1.msra.mxu0 %v1098
    %1652 = vmatprep.subr.mxu0 %v1101
    %1653 = vmatpush1.msra.mxu0 %v1100
    %1654 = vmatprep.subr.mxu0 %v1103
    %1655 = vmatpush1.msra.mxu0 %v1102
    %1656 = vmatprep.subr.mxu0 %v1105
    %1657 = vmatpush1.msra.mxu0 %v1104
    %1658 = vmatprep.subr.mxu0 %v1107
    %1659 = vmatpush1.msra.mxu0 %v1106
    %1660 = vmatprep.subr.mxu0 %v1109
    %1661 = vmatpush1.msra.mxu0 %v1108
    %1662 = vmatprep.subr.mxu0 %v1111
    %1663 = vmatpush1.msra.mxu0 %v1110
    %1664 = vmatprep.subr.mxu0 0.0
    %1665 = vmatpush1.msra.mxu0 0.0
    %1666 = vmatprep.subr.mxu0 0.0
    %1667 = vmatpush1.msra.mxu0 0.0
    %1668 = vmatprep.subr.mxu0 0.0
    %1669 = vmatpush1.msra.mxu0 0.0
    %1670 = vmatprep.subr.mxu0 0.0
    %1671 = vmatpush1.msra.mxu0 0.0
    %1672 = vmatprep.subr.mxu0 0.0
    %1673 = vmatpush1.msra.mxu0 0.0
    %1674 = vmatprep.subr.mxu0 0.0
    %1675 = vmatpush1.msra.mxu0 0.0
    %1676 = vmatprep.subr.mxu0 0.0
    %1677 = vmatpush1.msra.mxu0 0.0
    %1678 = vmatprep.subr.mxu0 0.0
    %1679 = vmatpush1.msra.mxu0 0.0
    %1680 = vmatprep.subr.mxu0 0.0
    %1681 = vmatpush1.msra.mxu0 0.0
    %1682 = vmatprep.subr.mxu0 0.0
    %1683 = vmatpush1.msra.mxu0 0.0
    %1684 = vmatprep.subr.mxu0 0.0
    %1685 = vmatpush1.msra.mxu0 0.0
    %1686 = vmatprep.subr.mxu0 0.0
    %1687 = vmatpush1.msra.mxu0 0.0
    %1688 = vmatprep.subr.mxu0 0.0
    %1689 = vmatpush1.msra.mxu0 0.0
    %1690 = vmatprep.subr.mxu0 0.0
    %1691 = vmatpush1.msra.mxu0 0.0
    %1692 = vmatprep.subr.mxu0 0.0
    %1693 = vmatpush1.msra.mxu0 0.0
    %1694 = vmatprep.subr.mxu0 0.0
    %1695 = vmatpush1.msra.mxu0 0.0
    %1696 = vmatprep.subr.mxu0 0.0
    %1697 = vmatpush1.msra.mxu0 0.0
    %1698 = vmatprep.subr.mxu0 0.0
    %1699 = vmatpush1.msra.mxu0 0.0
    %1700 = vmatprep.subr.mxu0 0.0
    %1701 = vmatpush1.msra.mxu0 0.0
    %1702 = vmatprep.subr.mxu0 0.0
    %1703 = vmatpush1.msra.mxu0 0.0
    %1704 = vmatprep.subr.mxu0 0.0
    %1705 = vmatpush1.msra.mxu0 0.0
    %1706 = vmatprep.subr.mxu0 0.0
    %1707 = vmatpush1.msra.mxu0 0.0
    %1708 = vmatprep.subr.mxu0 0.0
    %1709 = vmatpush1.msra.mxu0 0.0
    %1710 = vmatprep.subr.mxu0 0.0
    %1711 = vmatpush1.msra.mxu0 0.0
    %1712 = vmatprep.mubr.f32.mxu0 0.0
    %1713 = vmatmul.mubr.f32.gmra.mrb[0].mxu0 %v699
    %v1714 = vpop.f32.mrb[0].mxu0
    %v1715 = vadd.f32 %v1644, %v1714
    %v1716 = vpop.f32.mrb[0].mxu0
    %v1717 = vadd.f32 %v1646, %v1716
    %1718 = vdwg.mxu0
    %v1719 = vadd.f32 %v1715, %v1280
    %v1720 = vadd.f32 %v1717, %v1284
    %1721 = vmatprep.subr.mxu0 %v1113
    %1722 = vmatpush1.msra.mxu0 %v1112
    %1723 = vmatprep.subr.mxu0 %v1115
    %1724 = vmatpush1.msra.mxu0 %v1114
    %1725 = vmatprep.subr.mxu0 %v1117
    %1726 = vmatpush1.msra.mxu0 %v1116
    %1727 = vmatprep.subr.mxu0 %v1119
    %1728 = vmatpush1.msra.mxu0 %v1118
    %1729 = vmatprep.subr.mxu0 %v1121
    %1730 = vmatpush1.msra.mxu0 %v1120
    %1731 = vmatprep.subr.mxu0 %v1123
    %1732 = vmatpush1.msra.mxu0 %v1122
    %1733 = vmatprep.subr.mxu0 %v1125
    %1734 = vmatpush1.msra.mxu0 %v1124
    %1735 = vmatprep.subr.mxu0 %v1127
    %1736 = vmatpush1.msra.mxu0 %v1126
    %1737 = vmatprep.subr.mxu0 0.0
    %1738 = vmatpush1.msra.mxu0 0.0
    %1739 = vmatprep.subr.mxu0 0.0
    %1740 = vmatpush1.msra.mxu0 0.0
    %1741 = vmatprep.subr.mxu0 0.0
    %1742 = vmatpush1.msra.mxu0 0.0
    %1743 = vmatprep.subr.mxu0 0.0
    %1744 = vmatpush1.msra.mxu0 0.0
    %1745 = vmatprep.subr.mxu0 0.0
    %1746 = vmatpush1.msra.mxu0 0.0
    %1747 = vmatprep.subr.mxu0 0.0
    %1748 = vmatpush1.msra.mxu0 0.0
    %1749 = vmatprep.subr.mxu0 0.0
    %1750 = vmatpush1.msra.mxu0 0.0
    %1751 = vmatprep.subr.mxu0 0.0
    %1752 = vmatpush1.msra.mxu0 0.0
    %1753 = vmatprep.subr.mxu0 0.0
    %1754 = vmatpush1.msra.mxu0 0.0
    %1755 = vmatprep.subr.mxu0 0.0
    %1756 = vmatpush1.msra.mxu0 0.0
    %1757 = vmatprep.subr.mxu0 0.0
    %1758 = vmatpush1.msra.mxu0 0.0
    %1759 = vmatprep.subr.mxu0 0.0
    %1760 = vmatpush1.msra.mxu0 0.0
    %1761 = vmatprep.subr.mxu0 0.0
    %1762 = vmatpush1.msra.mxu0 0.0
    %1763 = vmatprep.subr.mxu0 0.0
    %1764 = vmatpush1.msra.mxu0 0.0
    %1765 = vmatprep.subr.mxu0 0.0
    %1766 = vmatpush1.msra.mxu0 0.0
    %1767 = vmatprep.subr.mxu0 0.0
    %1768 = vmatpush1.msra.mxu0 0.0
    %1769 = vmatprep.subr.mxu0 0.0
    %1770 = vmatpush1.msra.mxu0 0.0
    %1771 = vmatprep.subr.mxu0 0.0
    %1772 = vmatpush1.msra.mxu0 0.0
    %1773 = vmatprep.subr.mxu0 0.0
    %1774 = vmatpush1.msra.mxu0 0.0
    %1775 = vmatprep.subr.mxu0 0.0
    %1776 = vmatpush1.msra.mxu0 0.0
    %1777 = vmatprep.subr.mxu0 0.0
    %1778 = vmatpush1.msra.mxu0 0.0
    %1779 = vmatprep.subr.mxu0 0.0
    %1780 = vmatpush1.msra.mxu0 0.0
    %1781 = vmatprep.subr.mxu0 0.0
    %1782 = vmatpush1.msra.mxu0 0.0
    %1783 = vmatprep.subr.mxu0 0.0
    %1784 = vmatpush1.msra.mxu0 0.0
    %1785 = vmatprep.mubr.f32.mxu0 0.0
    %1786 = vmatmul.mubr.f32.gmra.mrb[0].mxu0 %v699
    %v1787 = vpop.f32.mrb[0].mxu0
    %v1788 = vadd.f32 0.0, %v1787
    %v1789 = vpop.f32.mrb[0].mxu0
    %v1790 = vadd.f32 0.0, %v1789
    %1791 = vdwg.mxu0
    %1792 = vmatprep.subr.mxu0 %v1097
    %1793 = vmatpush1.msra.mxu0 %v1096
    %1794 = vmatprep.subr.mxu0 %v1099
    %1795 = vmatpush1.msra.mxu0 %v1098
    %1796 = vmatprep.subr.mxu0 %v1101
    %1797 = vmatpush1.msra.mxu0 %v1100
    %1798 = vmatprep.subr.mxu0 %v1103
    %1799 = vmatpush1.msra.mxu0 %v1102
    %1800 = vmatprep.subr.mxu0 %v1105
    %1801 = vmatpush1.msra.mxu0 %v1104
    %1802 = vmatprep.subr.mxu0 %v1107
    %1803 = vmatpush1.msra.mxu0 %v1106
    %1804 = vmatprep.subr.mxu0 %v1109
    %1805 = vmatpush1.msra.mxu0 %v1108
    %1806 = vmatprep.subr.mxu0 %v1111
    %1807 = vmatpush1.msra.mxu0 %v1110
    %1808 = vmatprep.subr.mxu0 0.0
    %1809 = vmatpush1.msra.mxu0 0.0
    %1810 = vmatprep.subr.mxu0 0.0
    %1811 = vmatpush1.msra.mxu0 0.0
    %1812 = vmatprep.subr.mxu0 0.0
    %1813 = vmatpush1.msra.mxu0 0.0
    %1814 = vmatprep.subr.mxu0 0.0
    %1815 = vmatpush1.msra.mxu0 0.0
    %1816 = vmatprep.subr.mxu0 0.0
    %1817 = vmatpush1.msra.mxu0 0.0
    %1818 = vmatprep.subr.mxu0 0.0
    %1819 = vmatpush1.msra.mxu0 0.0
    %1820 = vmatprep.subr.mxu0 0.0
    %1821 = vmatpush1.msra.mxu0 0.0
    %1822 = vmatprep.subr.mxu0 0.0
    %1823 = vmatpush1.msra.mxu0 0.0
    %1824 = vmatprep.subr.mxu0 0.0
    %1825 = vmatpush1.msra.mxu0 0.0
    %1826 = vmatprep.subr.mxu0 0.0
    %1827 = vmatpush1.msra.mxu0 0.0
    %1828 = vmatprep.subr.mxu0 0.0
    %1829 = vmatpush1.msra.mxu0 0.0
    %1830 = vmatprep.subr.mxu0 0.0
    %1831 = vmatpush1.msra.mxu0 0.0
    %1832 = vmatprep.subr.mxu0 0.0
    %1833 = vmatpush1.msra.mxu0 0.0
    %1834 = vmatprep.subr.mxu0 0.0
    %1835 = vmatpush1.msra.mxu0 0.0
    %1836 = vmatprep.subr.mxu0 0.0
    %1837 = vmatpush1.msra.mxu0 0.0
    %1838 = vmatprep.subr.mxu0 0.0
    %1839 = vmatpush1.msra.mxu0 0.0
    %1840 = vmatprep.subr.mxu0 0.0
    %1841 = vmatpush1.msra.mxu0 0.0
    %1842 = vmatprep.subr.mxu0 0.0
    %1843 = vmatpush1.msra.mxu0 0.0
    %1844 = vmatprep.subr.mxu0 0.0
    %1845 = vmatpush1.msra.mxu0 0.0
    %1846 = vmatprep.subr.mxu0 0.0
    %1847 = vmatpush1.msra.mxu0 0.0
    %1848 = vmatprep.subr.mxu0 0.0
    %1849 = vmatpush1.msra.mxu0 0.0
    %1850 = vmatprep.subr.mxu0 0.0
    %1851 = vmatpush1.msra.mxu0 0.0
    %1852 = vmatprep.subr.mxu0 0.0
    %1853 = vmatpush1.msra.mxu0 0.0
    %1854 = vmatprep.subr.mxu0 0.0
    %1855 = vmatpush1.msra.mxu0 0.0
    %1856 = vmatprep.mubr.f32.mxu0 0.0
    %1857 = vmatmul.mubr.f32.gmra.mrb[0].mxu0 %v799
    %v1858 = vpop.f32.mrb[0].mxu0
    %v1859 = vadd.f32 %v1788, %v1858
    %v1860 = vpop.f32.mrb[0].mxu0
    %v1861 = vadd.f32 %v1790, %v1860
    %1862 = vdwg.mxu0
    %v1863 = vadd.f32 %v1859, %v1280
    %v1864 = vadd.f32 %v1861, %v1284
    %1865 = vmatprep.subr.mxu0 %v1113
    %1866 = vmatpush1.msra.mxu0 %v1112
    %1867 = vmatprep.subr.mxu0 %v1115
    %1868 = vmatpush1.msra.mxu0 %v1114
    %1869 = vmatprep.subr.mxu0 %v1117
    %1870 = vmatpush1.msra.mxu0 %v1116
    %1871 = vmatprep.subr.mxu0 %v1119
    %1872 = vmatpush1.msra.mxu0 %v1118
    %1873 = vmatprep.subr.mxu0 %v1121
    %1874 = vmatpush1.msra.mxu0 %v1120
    %1875 = vmatprep.subr.mxu0 %v1123
    %1876 = vmatpush1.msra.mxu0 %v1122
    %1877 = vmatprep.subr.mxu0 %v1125
    %1878 = vmatpush1.msra.mxu0 %v1124
    %1879 = vmatprep.subr.mxu0 %v1127
    %1880 = vmatpush1.msra.mxu0 %v1126
    %1881 = vmatprep.subr.mxu0 0.0
    %1882 = vmatpush1.msra.mxu0 0.0
    %1883 = vmatprep.subr.mxu0 0.0
    %1884 = vmatpush1.msra.mxu0 0.0
    %1885 = vmatprep.subr.mxu0 0.0
    %1886 = vmatpush1.msra.mxu0 0.0
    %1887 = vmatprep.subr.mxu0 0.0
    %1888 = vmatpush1.msra.mxu0 0.0
    %1889 = vmatprep.subr.mxu0 0.0
    %1890 = vmatpush1.msra.mxu0 0.0
    %1891 = vmatprep.subr.mxu0 0.0
    %1892 = vmatpush1.msra.mxu0 0.0
    %1893 = vmatprep.subr.mxu0 0.0
    %1894 = vmatpush1.msra.mxu0 0.0
    %1895 = vmatprep.subr.mxu0 0.0
    %1896 = vmatpush1.msra.mxu0 0.0
    %1897 = vmatprep.subr.mxu0 0.0
    %1898 = vmatpush1.msra.mxu0 0.0
    %1899 = vmatprep.subr.mxu0 0.0
    %1900 = vmatpush1.msra.mxu0 0.0
    %1901 = vmatprep.subr.mxu0 0.0
    %1902 = vmatpush1.msra.mxu0 0.0
    %1903 = vmatprep.subr.mxu0 0.0
    %1904 = vmatpush1.msra.mxu0 0.0
    %1905 = vmatprep.subr.mxu0 0.0
    %1906 = vmatpush1.msra.mxu0 0.0
    %1907 = vmatprep.subr.mxu0 0.0
    %1908 = vmatpush1.msra.mxu0 0.0
    %1909 = vmatprep.subr.mxu0 0.0
    %1910 = vmatpush1.msra.mxu0 0.0
    %1911 = vmatprep.subr.mxu0 0.0
    %1912 = vmatpush1.msra.mxu0 0.0
    %1913 = vmatprep.subr.mxu0 0.0
    %1914 = vmatpush1.msra.mxu0 0.0
    %1915 = vmatprep.subr.mxu0 0.0
    %1916 = vmatpush1.msra.mxu0 0.0
    %1917 = vmatprep.subr.mxu0 0.0
    %1918 = vmatpush1.msra.mxu0 0.0
    %1919 = vmatprep.subr.mxu0 0.0
    %1920 = vmatpush1.msra.mxu0 0.0
    %1921 = vmatprep.subr.mxu0 0.0
    %1922 = vmatpush1.msra.mxu0 0.0
    %1923 = vmatprep.subr.mxu0 0.0
    %1924 = vmatpush1.msra.mxu0 0.0
    %1925 = vmatprep.subr.mxu0 0.0
    %1926 = vmatpush1.msra.mxu0 0.0
    %1927 = vmatprep.subr.mxu0 0.0
    %1928 = vmatpush1.msra.mxu0 0.0
    %1929 = vmatprep.mubr.f32.mxu0 0.0
    %1930 = vmatmul.mubr.f32.gmra.mrb[0].mxu0 %v599
    %v1931 = vpop.f32.mrb[0].mxu0
    %v1932 = vadd.f32 0.0, %v1931
    %v1933 = vpop.f32.mrb[0].mxu0
    %v1934 = vadd.f32 0.0, %v1933
    %1935 = vdwg.mxu0
    %1936 = vmatprep.subr.mxu0 %v1097
    %1937 = vmatpush1.msra.mxu0 %v1096
    %1938 = vmatprep.subr.mxu0 %v1099
    %1939 = vmatpush1.msra.mxu0 %v1098
    %1940 = vmatprep.subr.mxu0 %v1101
    %1941 = vmatpush1.msra.mxu0 %v1100
    %1942 = vmatprep.subr.mxu0 %v1103
    %1943 = vmatpush1.msra.mxu0 %v1102
    %1944 = vmatprep.subr.mxu0 %v1105
    %1945 = vmatpush1.msra.mxu0 %v1104
    %1946 = vmatprep.subr.mxu0 %v1107
    %1947 = vmatpush1.msra.mxu0 %v1106
    %1948 = vmatprep.subr.mxu0 %v1109
    %1949 = vmatpush1.msra.mxu0 %v1108
    %1950 = vmatprep.subr.mxu0 %v1111
    %1951 = vmatpush1.msra.mxu0 %v1110
    %1952 = vmatprep.subr.mxu0 0.0
    %1953 = vmatpush1.msra.mxu0 0.0
    %1954 = vmatprep.subr.mxu0 0.0
    %1955 = vmatpush1.msra.mxu0 0.0
    %1956 = vmatprep.subr.mxu0 0.0
    %1957 = vmatpush1.msra.mxu0 0.0
    %1958 = vmatprep.subr.mxu0 0.0
    %1959 = vmatpush1.msra.mxu0 0.0
    %1960 = vmatprep.subr.mxu0 0.0
    %1961 = vmatpush1.msra.mxu0 0.0
    %1962 = vmatprep.subr.mxu0 0.0
    %1963 = vmatpush1.msra.mxu0 0.0
    %1964 = vmatprep.subr.mxu0 0.0
    %1965 = vmatpush1.msra.mxu0 0.0
    %1966 = vmatprep.subr.mxu0 0.0
    %1967 = vmatpush1.msra.mxu0 0.0
    %1968 = vmatprep.subr.mxu0 0.0
    %1969 = vmatpush1.msra.mxu0 0.0
    %1970 = vmatprep.subr.mxu0 0.0
    %1971 = vmatpush1.msra.mxu0 0.0
    %1972 = vmatprep.subr.mxu0 0.0
    %1973 = vmatpush1.msra.mxu0 0.0
    %1974 = vmatprep.subr.mxu0 0.0
    %1975 = vmatpush1.msra.mxu0 0.0
    %1976 = vmatprep.subr.mxu0 0.0
    %1977 = vmatpush1.msra.mxu0 0.0
    %1978 = vmatprep.subr.mxu0 0.0
    %1979 = vmatpush1.msra.mxu0 0.0
    %1980 = vmatprep.subr.mxu0 0.0
    %1981 = vmatpush1.msra.mxu0 0.0
    %1982 = vmatprep.subr.mxu0 0.0
    %1983 = vmatpush1.msra.mxu0 0.0
    %1984 = vmatprep.subr.mxu0 0.0
    %1985 = vmatpush1.msra.mxu0 0.0
    %1986 = vmatprep.subr.mxu0 0.0
    %1987 = vmatpush1.msra.mxu0 0.0
    %1988 = vmatprep.subr.mxu0 0.0
    %1989 = vmatpush1.msra.mxu0 0.0
    %1990 = vmatprep.subr.mxu0 0.0
    %1991 = vmatpush1.msra.mxu0 0.0
    %1992 = vmatprep.subr.mxu0 0.0
    %1993 = vmatpush1.msra.mxu0 0.0
    %1994 = vmatprep.subr.mxu0 0.0
    %1995 = vmatpush1.msra.mxu0 0.0
    %1996 = vmatprep.subr.mxu0 0.0
    %1997 = vmatpush1.msra.mxu0 0.0
    %1998 = vmatprep.subr.mxu0 0.0
    %1999 = vmatpush1.msra.mxu0 0.0
    %2000 = vmatprep.mubr.f32.mxu0 0.0
    %2001 = vmatmul.mubr.f32.gmra.mrb[0].mxu0 %v899
    %v2002 = vpop.f32.mrb[0].mxu0
    %v2003 = vadd.f32 %v1932, %v2002
    %v2004 = vpop.f32.mrb[0].mxu0
    %v2005 = vadd.f32 %v1934, %v2004
    %2006 = vdwg.mxu0
    %v2007 = vadd.f32 %v2003, %v1280
    %v2008 = vadd.f32 %v2005, %v1284
    %2009 = vmatprep.subr.mxu0 %v1113
    %2010 = vmatpush1.msra.mxu0 %v1112
    %2011 = vmatprep.subr.mxu0 %v1115
    %2012 = vmatpush1.msra.mxu0 %v1114
    %2013 = vmatprep.subr.mxu0 %v1117
    %2014 = vmatpush1.msra.mxu0 %v1116
    %2015 = vmatprep.subr.mxu0 %v1119
    %2016 = vmatpush1.msra.mxu0 %v1118
    %2017 = vmatprep.subr.mxu0 %v1121
    %2018 = vmatpush1.msra.mxu0 %v1120
    %2019 = vmatprep.subr.mxu0 %v1123
    %2020 = vmatpush1.msra.mxu0 %v1122
    %2021 = vmatprep.subr.mxu0 %v1125
    %2022 = vmatpush1.msra.mxu0 %v1124
    %2023 = vmatprep.subr.mxu0 %v1127
    %2024 = vmatpush1.msra.mxu0 %v1126
    %2025 = vmatprep.subr.mxu0 0.0
    %2026 = vmatpush1.msra.mxu0 0.0
    %2027 = vmatprep.subr.mxu0 0.0
    %2028 = vmatpush1.msra.mxu0 0.0
    %2029 = vmatprep.subr.mxu0 0.0
    %2030 = vmatpush1.msra.mxu0 0.0
    %2031 = vmatprep.subr.mxu0 0.0
    %2032 = vmatpush1.msra.mxu0 0.0
    %2033 = vmatprep.subr.mxu0 0.0
    %2034 = vmatpush1.msra.mxu0 0.0
    %2035 = vmatprep.subr.mxu0 0.0
    %2036 = vmatpush1.msra.mxu0 0.0
    %2037 = vmatprep.subr.mxu0 0.0
    %2038 = vmatpush1.msra.mxu0 0.0
    %2039 = vmatprep.subr.mxu0 0.0
    %2040 = vmatpush1.msra.mxu0 0.0
    %2041 = vmatprep.subr.mxu0 0.0
    %2042 = vmatpush1.msra.mxu0 0.0
    %2043 = vmatprep.subr.mxu0 0.0
    %2044 = vmatpush1.msra.mxu0 0.0
    %2045 = vmatprep.subr.mxu0 0.0
    %2046 = vmatpush1.msra.mxu0 0.0
    %2047 = vmatprep.subr.mxu0 0.0
    %2048 = vmatpush1.msra.mxu0 0.0
    %2049 = vmatprep.subr.mxu0 0.0
    %2050 = vmatpush1.msra.mxu0 0.0
    %2051 = vmatprep.subr.mxu0 0.0
    %2052 = vmatpush1.msra.mxu0 0.0
    %2053 = vmatprep.subr.mxu0 0.0
    %2054 = vmatpush1.msra.mxu0 0.0
    %2055 = vmatprep.subr.mxu0 0.0
    %2056 = vmatpush1.msra.mxu0 0.0
    %2057 = vmatprep.subr.mxu0 0.0
    %2058 = vmatpush1.msra.mxu0 0.0
    %2059 = vmatprep.subr.mxu0 0.0
    %2060 = vmatpush1.msra.mxu0 0.0
    %2061 = vmatprep.subr.mxu0 0.0
    %2062 = vmatpush1.msra.mxu0 0.0
    %2063 = vmatprep.subr.mxu0 0.0
    %2064 = vmatpush1.msra.mxu0 0.0
    %2065 = vmatprep.subr.mxu0 0.0
    %2066 = vmatpush1.msra.mxu0 0.0
    %2067 = vmatprep.subr.mxu0 0.0
    %2068 = vmatpush1.msra.mxu0 0.0
    %2069 = vmatprep.subr.mxu0 0.0
    %2070 = vmatpush1.msra.mxu0 0.0
    %2071 = vmatprep.subr.mxu0 0.0
    %2072 = vmatpush1.msra.mxu0 0.0
    %2073 = vmatprep.mubr.f32.mxu0 0.0
    %2074 = vmatmul.mubr.f32.gmra.mrb[0].mxu0 %v499
    %v2075 = vpop.f32.mrb[0].mxu0
    %v2076 = vadd.f32 0.0, %v2075
    %v2077 = vpop.f32.mrb[0].mxu0
    %v2078 = vadd.f32 0.0, %v2077
    %2079 = vdwg.mxu0
    %2080 = vmatprep.subr.mxu0 %v1097
    %2081 = vmatpush1.msra.mxu0 %v1096
    %2082 = vmatprep.subr.mxu0 %v1099
    %2083 = vmatpush1.msra.mxu0 %v1098
    %2084 = vmatprep.subr.mxu0 %v1101
    %2085 = vmatpush1.msra.mxu0 %v1100
    %2086 = vmatprep.subr.mxu0 %v1103
    %2087 = vmatpush1.msra.mxu0 %v1102
    %2088 = vmatprep.subr.mxu0 %v1105
    %2089 = vmatpush1.msra.mxu0 %v1104
    %2090 = vmatprep.subr.mxu0 %v1107
    %2091 = vmatpush1.msra.mxu0 %v1106
    %2092 = vmatprep.subr.mxu0 %v1109
    %2093 = vmatpush1.msra.mxu0 %v1108
    %2094 = vmatprep.subr.mxu0 %v1111
    %2095 = vmatpush1.msra.mxu0 %v1110
    %2096 = vmatprep.subr.mxu0 0.0
    %2097 = vmatpush1.msra.mxu0 0.0
    %2098 = vmatprep.subr.mxu0 0.0
    %2099 = vmatpush1.msra.mxu0 0.0
    %2100 = vmatprep.subr.mxu0 0.0
    %2101 = vmatpush1.msra.mxu0 0.0
    %2102 = vmatprep.subr.mxu0 0.0
    %2103 = vmatpush1.msra.mxu0 0.0
    %2104 = vmatprep.subr.mxu0 0.0
    %2105 = vmatpush1.msra.mxu0 0.0
    %2106 = vmatprep.subr.mxu0 0.0
    %2107 = vmatpush1.msra.mxu0 0.0
    %2108 = vmatprep.subr.mxu0 0.0
    %2109 = vmatpush1.msra.mxu0 0.0
    %2110 = vmatprep.subr.mxu0 0.0
    %2111 = vmatpush1.msra.mxu0 0.0
    %2112 = vmatprep.subr.mxu0 0.0
    %2113 = vmatpush1.msra.mxu0 0.0
    %2114 = vmatprep.subr.mxu0 0.0
    %2115 = vmatpush1.msra.mxu0 0.0
    %2116 = vmatprep.subr.mxu0 0.0
    %2117 = vmatpush1.msra.mxu0 0.0
    %2118 = vmatprep.subr.mxu0 0.0
    %2119 = vmatpush1.msra.mxu0 0.0
    %2120 = vmatprep.subr.mxu0 0.0
    %2121 = vmatpush1.msra.mxu0 0.0
    %2122 = vmatprep.subr.mxu0 0.0
    %2123 = vmatpush1.msra.mxu0 0.0
    %2124 = vmatprep.subr.mxu0 0.0
    %2125 = vmatpush1.msra.mxu0 0.0
    %2126 = vmatprep.subr.mxu0 0.0
    %2127 = vmatpush1.msra.mxu0 0.0
    %2128 = vmatprep.subr.mxu0 0.0
    %2129 = vmatpush1.msra.mxu0 0.0
    %2130 = vmatprep.subr.mxu0 0.0
    %2131 = vmatpush1.msra.mxu0 0.0
    %2132 = vmatprep.subr.mxu0 0.0
    %2133 = vmatpush1.msra.mxu0 0.0
    %2134 = vmatprep.subr.mxu0 0.0
    %2135 = vmatpush1.msra.mxu0 0.0
    %2136 = vmatprep.subr.mxu0 0.0
    %2137 = vmatpush1.msra.mxu0 0.0
    %2138 = vmatprep.subr.mxu0 0.0
    %2139 = vmatpush1.msra.mxu0 0.0
    %2140 = vmatprep.subr.mxu0 0.0
    %2141 = vmatpush1.msra.mxu0 0.0
    %2142 = vmatprep.subr.mxu0 0.0
    %2143 = vmatpush1.msra.mxu0 0.0
    %2144 = vmatprep.mubr.f32.mxu0 0.0
    %2145 = vmatmul.mubr.f32.gmra.mrb[0].mxu0 %v999
    %v2146 = vpop.f32.mrb[0].mxu0
    %v2147 = vadd.f32 %v2076, %v2146
    %v2148 = vpop.f32.mrb[0].mxu0
    %v2149 = vadd.f32 %v2078, %v2148
    %2150 = vdwg.mxu0
    %v2151 = vadd.f32 %v2147, %v1280
    %v2152 = vadd.f32 %v2149, %v1284
    %2153 = vmatprep.subr.mxu0 %v1113
    %2154 = vmatpush1.msra.mxu0 %v1112
    %2155 = vmatprep.subr.mxu0 %v1115
    %2156 = vmatpush1.msra.mxu0 %v1114
    %2157 = vmatprep.subr.mxu0 %v1117
    %2158 = vmatpush1.msra.mxu0 %v1116
    %2159 = vmatprep.subr.mxu0 %v1119
    %2160 = vmatpush1.msra.mxu0 %v1118
    %2161 = vmatprep.subr.mxu0 %v1121
    %2162 = vmatpush1.msra.mxu0 %v1120
    %2163 = vmatprep.subr.mxu0 %v1123
    %2164 = vmatpush1.msra.mxu0 %v1122
    %2165 = vmatprep.subr.mxu0 %v1125
    %2166 = vmatpush1.msra.mxu0 %v1124
    %2167 = vmatprep.subr.mxu0 %v1127
    %2168 = vmatpush1.msra.mxu0 %v1126
    %2169 = vmatprep.subr.mxu0 0.0
    %2170 = vmatpush1.msra.mxu0 0.0
    %2171 = vmatprep.subr.mxu0 0.0
    %2172 = vmatpush1.msra.mxu0 0.0
    %2173 = vmatprep.subr.mxu0 0.0
    %2174 = vmatpush1.msra.mxu0 0.0
    %2175 = vmatprep.subr.mxu0 0.0
    %2176 = vmatpush1.msra.mxu0 0.0
    %2177 = vmatprep.subr.mxu0 0.0
    %2178 = vmatpush1.msra.mxu0 0.0
    %2179 = vmatprep.subr.mxu0 0.0
    %2180 = vmatpush1.msra.mxu0 0.0
    %2181 = vmatprep.subr.mxu0 0.0
    %2182 = vmatpush1.msra.mxu0 0.0
    %2183 = vmatprep.subr.mxu0 0.0
    %2184 = vmatpush1.msra.mxu0 0.0
    %2185 = vmatprep.subr.mxu0 0.0
    %2186 = vmatpush1.msra.mxu0 0.0
    %2187 = vmatprep.subr.mxu0 0.0
    %2188 = vmatpush1.msra.mxu0 0.0
    %2189 = vmatprep.subr.mxu0 0.0
    %2190 = vmatpush1.msra.mxu0 0.0
    %2191 = vmatprep.subr.mxu0 0.0
    %2192 = vmatpush1.msra.mxu0 0.0
    %2193 = vmatprep.subr.mxu0 0.0
    %2194 = vmatpush1.msra.mxu0 0.0
    %2195 = vmatprep.subr.mxu0 0.0
    %2196 = vmatpush1.msra.mxu0 0.0
    %2197 = vmatprep.subr.mxu0 0.0
    %2198 = vmatpush1.msra.mxu0 0.0
    %2199 = vmatprep.subr.mxu0 0.0
    %2200 = vmatpush1.msra.mxu0 0.0
    %2201 = vmatprep.subr.mxu0 0.0
    %2202 = vmatpush1.msra.mxu0 0.0
    %2203 = vmatprep.subr.mxu0 0.0
    %2204 = vmatpush1.msra.mxu0 0.0
    %2205 = vmatprep.subr.mxu0 0.0
    %2206 = vmatpush1.msra.mxu0 0.0
    %2207 = vmatprep.subr.mxu0 0.0
    %2208 = vmatpush1.msra.mxu0 0.0
    %2209 = vmatprep.subr.mxu0 0.0
    %2210 = vmatpush1.msra.mxu0 0.0
    %2211 = vmatprep.subr.mxu0 0.0
    %2212 = vmatpush1.msra.mxu0 0.0
    %2213 = vmatprep.subr.mxu0 0.0
    %2214 = vmatpush1.msra.mxu0 0.0
    %2215 = vmatprep.subr.mxu0 0.0
    %2216 = vmatpush1.msra.mxu0 0.0
    %2217 = vmatprep.mubr.f32.mxu0 0.0
    %2218 = vmatmul.mubr.f32.gmra.mrb[0].mxu0 %v399
    %v2219 = vpop.f32.mrb[0].mxu0
    %v2220 = vadd.f32 0.0, %v2219
    %v2221 = vpop.f32.mrb[0].mxu0
    %v2222 = vadd.f32 0.0, %v2221
    %2223 = vdwg.mxu0
    %2224 = vmatprep.subr.mxu0 %v1097
    %2225 = vmatpush1.msra.mxu0 %v1096
    %2226 = vmatprep.subr.mxu0 %v1099
    %2227 = vmatpush1.msra.mxu0 %v1098
    %2228 = vmatprep.subr.mxu0 %v1101
    %2229 = vmatpush1.msra.mxu0 %v1100
    %2230 = vmatprep.subr.mxu0 %v1103
    %2231 = vmatpush1.msra.mxu0 %v1102
    %2232 = vmatprep.subr.mxu0 %v1105
    %2233 = vmatpush1.msra.mxu0 %v1104
    %2234 = vmatprep.subr.mxu0 %v1107
    %2235 = vmatpush1.msra.mxu0 %v1106
    %2236 = vmatprep.subr.mxu0 %v1109
    %2237 = vmatpush1.msra.mxu0 %v1108
    %2238 = vmatprep.subr.mxu0 %v1111
    %2239 = vmatpush1.msra.mxu0 %v1110
    %2240 = vmatprep.subr.mxu0 0.0
    %2241 = vmatpush1.msra.mxu0 0.0
    %2242 = vmatprep.subr.mxu0 0.0
    %2243 = vmatpush1.msra.mxu0 0.0
    %2244 = vmatprep.subr.mxu0 0.0
    %2245 = vmatpush1.msra.mxu0 0.0
    %2246 = vmatprep.subr.mxu0 0.0
    %2247 = vmatpush1.msra.mxu0 0.0
    %2248 = vmatprep.subr.mxu0 0.0
    %2249 = vmatpush1.msra.mxu0 0.0
    %2250 = vmatprep.subr.mxu0 0.0
    %2251 = vmatpush1.msra.mxu0 0.0
    %2252 = vmatprep.subr.mxu0 0.0
    %2253 = vmatpush1.msra.mxu0 0.0
    %2254 = vmatprep.subr.mxu0 0.0
    %2255 = vmatpush1.msra.mxu0 0.0
    %2256 = vmatprep.subr.mxu0 0.0
    %2257 = vmatpush1.msra.mxu0 0.0
    %2258 = vmatprep.subr.mxu0 0.0
    %2259 = vmatpush1.msra.mxu0 0.0
    %2260 = vmatprep.subr.mxu0 0.0
    %2261 = vmatpush1.msra.mxu0 0.0
    %2262 = vmatprep.subr.mxu0 0.0
    %2263 = vmatpush1.msra.mxu0 0.0
    %2264 = vmatprep.subr.mxu0 0.0
    %2265 = vmatpush1.msra.mxu0 0.0
    %2266 = vmatprep.subr.mxu0 0.0
    %2267 = vmatpush1.msra.mxu0 0.0
    %2268 = vmatprep.subr.mxu0 0.0
    %2269 = vmatpush1.msra.mxu0 0.0
    %2270 = vmatprep.subr.mxu0 0.0
    %2271 = vmatpush1.msra.mxu0 0.0
    %2272 = vmatprep.subr.mxu0 0.0
    %2273 = vmatpush1.msra.mxu0 0.0
    %2274 = vmatprep.subr.mxu0 0.0
    %2275 = vmatpush1.msra.mxu0 0.0
    %2276 = vmatprep.subr.mxu0 0.0
    %2277 = vmatpush1.msra.mxu0 0.0
    %2278 = vmatprep.subr.mxu0 0.0
    %2279 = vmatpush1.msra.mxu0 0.0
    %2280 = vmatprep.subr.mxu0 0.0
    %2281 = vmatpush1.msra.mxu0 0.0
    %2282 = vmatprep.subr.mxu0 0.0
    %2283 = vmatpush1.msra.mxu0 0.0
    %2284 = vmatprep.subr.mxu0 0.0
    %2285 = vmatpush1.msra.mxu0 0.0
    %2286 = vmatprep.subr.mxu0 0.0
    %2287 = vmatpush1.msra.mxu0 0.0
    %2288 = vmatprep.mubr.f32.mxu0 0.0
    %2289 = vmatmul.mubr.f32.gmra.mrb[0].mxu0 %v1132
    %v2290 = vpop.f32.mrb[0].mxu0
    %v2291 = vadd.f32 %v2220, %v2290
    %v2292 = vpop.f32.mrb[0].mxu0
    %v2293 = vadd.f32 %v2222, %v2292
    %2294 = vdwg.mxu0
    %v2295 = vadd.f32 %v2291, %v1280
    %v2296 = vadd.f32 %v2293, %v1284
    %v2297 = vld [vmem:[#allocation10] sm:$0xff]
    %v2298 = vld [vmem:[#allocation10 + $0x8] sm:$0xff]
    %v2299 = vld [vmem:[#allocation10 + $0x10] sm:$0xff]
    %v2300 = vld [vmem:[#allocation10 + $0x18] sm:$0xff]
    %v2301 = vld [vmem:[#allocation10 + $0x20] sm:$0xff]
    %v2302 = vld [vmem:[#allocation10 + $0x28] sm:$0xff]
    %v2303 = vld [vmem:[#allocation10 + $0x30] sm:$0xff]
    %v2304 = vld [vmem:[#allocation10 + $0x38] sm:$0xff]
    %v2305 = vld [vmem:[#allocation10 + $0x40] sm:$0xff]
    %v2306 = vld [vmem:[#allocation10 + $0x48] sm:$0xff]
    %v2307 = vld [vmem:[#allocation10 + $0x50] sm:$0xff]
    %v2308 = vld [vmem:[#allocation10 + $0x58] sm:$0xff]
    %v2309 = vld [vmem:[#allocation10 + $0x60] sm:$0xff]
    %v2310 = vld [vmem:[#allocation10 + $0x68] sm:$0xff]
    %v2311 = vld [vmem:[#allocation10 + $0x70] sm:$0xff]
    %v2312 = vld [vmem:[#allocation10 + $0x78] sm:$0xff]
    %2313 = vmatprep.subr.mxu0 %v2298
    %2314 = vmatpush1.msra.mxu0 %v2297
    %2315 = vmatprep.subr.mxu0 %v2300
    %2316 = vmatpush1.msra.mxu0 %v2299
    %2317 = vmatprep.subr.mxu0 %v2302
    %2318 = vmatpush1.msra.mxu0 %v2301
    %2319 = vmatprep.subr.mxu0 %v2304
    %2320 = vmatpush1.msra.mxu0 %v2303
    %2321 = vmatprep.subr.mxu0 %v2306
    %2322 = vmatpush1.msra.mxu0 %v2305
    %2323 = vmatprep.subr.mxu0 %v2308
    %2324 = vmatpush1.msra.mxu0 %v2307
    %2325 = vmatprep.subr.mxu0 %v2310
    %2326 = vmatpush1.msra.mxu0 %v2309
    %2327 = vmatprep.subr.mxu0 %v2312
    %2328 = vmatpush1.msra.mxu0 %v2311
    %2329 = vmatprep.subr.mxu0 0.0
    %2330 = vmatpush1.msra.mxu0 0.0
    %2331 = vmatprep.subr.mxu0 0.0
    %2332 = vmatpush1.msra.mxu0 0.0
    %2333 = vmatprep.subr.mxu0 0.0
    %2334 = vmatpush1.msra.mxu0 0.0
    %2335 = vmatprep.subr.mxu0 0.0
    %2336 = vmatpush1.msra.mxu0 0.0
    %2337 = vmatprep.subr.mxu0 0.0
    %2338 = vmatpush1.msra.mxu0 0.0
    %2339 = vmatprep.subr.mxu0 0.0
    %2340 = vmatpush1.msra.mxu0 0.0
    %2341 = vmatprep.subr.mxu0 0.0
    %2342 = vmatpush1.msra.mxu0 0.0
    %2343 = vmatprep.subr.mxu0 0.0
    %2344 = vmatpush1.msra.mxu0 0.0
    %2345 = vmatprep.subr.mxu0 0.0
    %2346 = vmatpush1.msra.mxu0 0.0
    %2347 = vmatprep.subr.mxu0 0.0
    %2348 = vmatpush1.msra.mxu0 0.0
    %2349 = vmatprep.subr.mxu0 0.0
    %2350 = vmatpush1.msra.mxu0 0.0
    %2351 = vmatprep.subr.mxu0 0.0
    %2352 = vmatpush1.msra.mxu0 0.0
    %2353 = vmatprep.subr.mxu0 0.0
    %2354 = vmatpush1.msra.mxu0 0.0
    %2355 = vmatprep.subr.mxu0 0.0
    %2356 = vmatpush1.msra.mxu0 0.0
    %2357 = vmatprep.subr.mxu0 0.0
    %2358 = vmatpush1.msra.mxu0 0.0
    %2359 = vmatprep.subr.mxu0 0.0
    %2360 = vmatpush1.msra.mxu0 0.0
    %2361 = vmatprep.subr.mxu0 0.0
    %2362 = vmatpush1.msra.mxu0 0.0
    %2363 = vmatprep.subr.mxu0 0.0
    %2364 = vmatpush1.msra.mxu0 0.0
    %2365 = vmatprep.subr.mxu0 0.0
    %2366 = vmatpush1.msra.mxu0 0.0
    %2367 = vmatprep.subr.mxu0 0.0
    %2368 = vmatpush1.msra.mxu0 0.0
    %2369 = vmatprep.subr.mxu0 0.0
    %2370 = vmatpush1.msra.mxu0 0.0
    %2371 = vmatprep.subr.mxu0 0.0
    %2372 = vmatpush1.msra.mxu0 0.0
    %2373 = vmatprep.subr.mxu0 0.0
    %2374 = vmatpush1.msra.mxu0 0.0
    %2375 = vmatprep.subr.mxu0 0.0
    %2376 = vmatpush1.msra.mxu0 0.0
    %2377 = vmatprep.mubr.f32.mxu0 0.0
    %2378 = vmatmul.mubr.f32.gmra.mrb[0].mxu0 %v299
    %v2379 = vpop.f32.mrb[0].mxu0
    %v2380 = vadd.f32 0.0, %v2379
    %v2381 = vpop.f32.mrb[0].mxu0
    %v2382 = vadd.f32 0.0, %v2381
    %2383 = vdwg.mxu0
    %v2384 = vadd.f32 %v1287, %v2380
    %v2385 = vadd.f32 %v1288, %v2382
    %v2386 = vxor.u32 %v2384, 2147483648
    %v2387 = vmul.f32 %v2386, 1.442695
    %v2388 = vpow.pop %v2387
    %v2389 = vadd.f32 %v2388, 1.0
    %v2390 = vrcp.pop %v2389
    %v2391 = vmul.f32 1.0, %v2390
    %v2392 = vtanh.pop %v2385
    %v2393 = vxor.u32 %v2385, 2147483648
    %v2394 = vmul.f32 %v2393, 1.442695
    %v2395 = vpow.pop %v2394
    %v2396 = vadd.f32 %v2395, 1.0
    %v2397 = vrcp.pop %v2396
    %v2398 = vmul.f32 1.0, %v2397
    %v2399 = vmul.f32 %v2391, 0.0
    %v2400 = vmul.f32 %v2391, %v2392
    %2402 = vrot.lane.b32.xlu0 %v2400, 64
    %v2403 = vpop.permute.xlu0 %2402
    %v2405 = vadd.f32 %v2399, %v2403
    %v2406 = vtanh.pop %v2405
    %v2407 = vmul.f32 %v2398, %v2406
    %2409 = vrot.lane.b32.xlu0 %v2407, 64
    %v2410 = vpop.permute.xlu0 %2409
    %v2411 = vsel %vm297, %v2410, 0
    %2413 = vmatprep.subr.mxu0 %v2298
    %2414 = vmatpush1.msra.mxu0 %v2297
    %2415 = vmatprep.subr.mxu0 %v2300
    %2416 = vmatpush1.msra.mxu0 %v2299
    %2417 = vmatprep.subr.mxu0 %v2302
    %2418 = vmatpush1.msra.mxu0 %v2301
    %2419 = vmatprep.subr.mxu0 %v2304
    %2420 = vmatpush1.msra.mxu0 %v2303
    %2421 = vmatprep.subr.mxu0 %v2306
    %2422 = vmatpush1.msra.mxu0 %v2305
    %2423 = vmatprep.subr.mxu0 %v2308
    %2424 = vmatpush1.msra.mxu0 %v2307
    %2425 = vmatprep.subr.mxu0 %v2310
    %2426 = vmatpush1.msra.mxu0 %v2309
    %2427 = vmatprep.subr.mxu0 %v2312
    %2428 = vmatpush1.msra.mxu0 %v2311
    %2429 = vmatprep.subr.mxu0 0.0
    %2430 = vmatpush1.msra.mxu0 0.0
    %2431 = vmatprep.subr.mxu0 0.0
    %2432 = vmatpush1.msra.mxu0 0.0
    %2433 = vmatprep.subr.mxu0 0.0
    %2434 = vmatpush1.msra.mxu0 0.0
    %2435 = vmatprep.subr.mxu0 0.0
    %2436 = vmatpush1.msra.mxu0 0.0
    %2437 = vmatprep.subr.mxu0 0.0
    %2438 = vmatpush1.msra.mxu0 0.0
    %2439 = vmatprep.subr.mxu0 0.0
    %2440 = vmatpush1.msra.mxu0 0.0
    %2441 = vmatprep.subr.mxu0 0.0
    %2442 = vmatpush1.msra.mxu0 0.0
    %2443 = vmatprep.subr.mxu0 0.0
    %2444 = vmatpush1.msra.mxu0 0.0
    %2445 = vmatprep.subr.mxu0 0.0
    %2446 = vmatpush1.msra.mxu0 0.0
    %2447 = vmatprep.subr.mxu0 0.0
    %2448 = vmatpush1.msra.mxu0 0.0
    %2449 = vmatprep.subr.mxu0 0.0
    %2450 = vmatpush1.msra.mxu0 0.0
    %2451 = vmatprep.subr.mxu0 0.0
    %2452 = vmatpush1.msra.mxu0 0.0
    %2453 = vmatprep.subr.mxu0 0.0
    %2454 = vmatpush1.msra.mxu0 0.0
    %2455 = vmatprep.subr.mxu0 0.0
    %2456 = vmatpush1.msra.mxu0 0.0
    %2457 = vmatprep.subr.mxu0 0.0
    %2458 = vmatpush1.msra.mxu0 0.0
    %2459 = vmatprep.subr.mxu0 0.0
    %2460 = vmatpush1.msra.mxu0 0.0
    %2461 = vmatprep.subr.mxu0 0.0
    %2462 = vmatpush1.msra.mxu0 0.0
    %2463 = vmatprep.subr.mxu0 0.0
    %2464 = vmatpush1.msra.mxu0 0.0
    %2465 = vmatprep.subr.mxu0 0.0
    %2466 = vmatpush1.msra.mxu0 0.0
    %2467 = vmatprep.subr.mxu0 0.0
    %2468 = vmatpush1.msra.mxu0 0.0
    %2469 = vmatprep.subr.mxu0 0.0
    %2470 = vmatpush1.msra.mxu0 0.0
    %2471 = vmatprep.subr.mxu0 0.0
    %2472 = vmatpush1.msra.mxu0 0.0
    %2473 = vmatprep.subr.mxu0 0.0
    %2474 = vmatpush1.msra.mxu0 0.0
    %2475 = vmatprep.subr.mxu0 0.0
    %2476 = vmatpush1.msra.mxu0 0.0
    %2477 = vmatprep.mubr.f32.mxu0 0.0
    %2478 = vmatmul.mubr.f32.gmra.mrb[0].mxu0 %v2411
    %v2479 = vpop.f32.mrb[0].mxu0
    %v2480 = vadd.f32 0.0, %v2479
    %v2481 = vpop.f32.mrb[0].mxu0
    %v2482 = vadd.f32 0.0, %v2481
    %2483 = vdwg.mxu0
    %v2484 = vadd.f32 %v1431, %v2480
    %v2485 = vadd.f32 %v1432, %v2482
    %v2486 = vxor.u32 %v2484, 2147483648
    %v2487 = vmul.f32 %v2486, 1.442695
    %v2488 = vpow.pop %v2487
    %v2489 = vadd.f32 %v2488, 1.0
    %v2490 = vrcp.pop %v2489
    %v2491 = vmul.f32 1.0, %v2490
    %v2492 = vtanh.pop %v2485
    %v2493 = vxor.u32 %v2485, 2147483648
    %v2494 = vmul.f32 %v2493, 1.442695
    %v2495 = vpow.pop %v2494
    %v2496 = vadd.f32 %v2495, 1.0
    %v2497 = vrcp.pop %v2496
    %v2498 = vmul.f32 1.0, %v2497
    %v2499 = vmul.f32 %v2491, %v2405
    %v2500 = vmul.f32 %v2491, %v2492
    %2502 = vrot.lane.b32.xlu0 %v2500, 64
    %v2503 = vpop.permute.xlu0 %2502
    %v2505 = vadd.f32 %v2499, %v2503
    %v2506 = vtanh.pop %v2505
    %v2507 = vmul.f32 %v2498, %v2506
    %2509 = vrot.lane.b32.xlu0 %v2507, 64
    %v2510 = vpop.permute.xlu0 %2509
    %v2511 = vsel %vm297, %v2510, 0
    %2513 = vmatprep.subr.mxu0 %v2298
    %2514 = vmatpush1.msra.mxu0 %v2297
    %2515 = vmatprep.subr.mxu0 %v2300
    %2516 = vmatpush1.msra.mxu0 %v2299
    %2517 = vmatprep.subr.mxu0 %v2302
    %2518 = vmatpush1.msra.mxu0 %v2301
    %2519 = vmatprep.subr.mxu0 %v2304
    %2520 = vmatpush1.msra.mxu0 %v2303
    %2521 = vmatprep.subr.mxu0 %v2306
    %2522 = vmatpush1.msra.mxu0 %v2305
    %2523 = vmatprep.subr.mxu0 %v2308
    %2524 = vmatpush1.msra.mxu0 %v2307
    %2525 = vmatprep.subr.mxu0 %v2310
    %2526 = vmatpush1.msra.mxu0 %v2309
    %2527 = vmatprep.subr.mxu0 %v2312
    %2528 = vmatpush1.msra.mxu0 %v2311
    %2529 = vmatprep.subr.mxu0 0.0
    %2530 = vmatpush1.msra.mxu0 0.0
    %2531 = vmatprep.subr.mxu0 0.0
    %2532 = vmatpush1.msra.mxu0 0.0
    %2533 = vmatprep.subr.mxu0 0.0
    %2534 = vmatpush1.msra.mxu0 0.0
    %2535 = vmatprep.subr.mxu0 0.0
    %2536 = vmatpush1.msra.mxu0 0.0
    %2537 = vmatprep.subr.mxu0 0.0
    %2538 = vmatpush1.msra.mxu0 0.0
    %2539 = vmatprep.subr.mxu0 0.0
    %2540 = vmatpush1.msra.mxu0 0.0
    %2541 = vmatprep.subr.mxu0 0.0
    %2542 = vmatpush1.msra.mxu0 0.0
    %2543 = vmatprep.subr.mxu0 0.0
    %2544 = vmatpush1.msra.mxu0 0.0
    %2545 = vmatprep.subr.mxu0 0.0
    %2546 = vmatpush1.msra.mxu0 0.0
    %2547 = vmatprep.subr.mxu0 0.0
    %2548 = vmatpush1.msra.mxu0 0.0
    %2549 = vmatprep.subr.mxu0 0.0
    %2550 = vmatpush1.msra.mxu0 0.0
    %2551 = vmatprep.subr.mxu0 0.0
    %2552 = vmatpush1.msra.mxu0 0.0
    %2553 = vmatprep.subr.mxu0 0.0
    %2554 = vmatpush1.msra.mxu0 0.0
    %2555 = vmatprep.subr.mxu0 0.0
    %2556 = vmatpush1.msra.mxu0 0.0
    %2557 = vmatprep.subr.mxu0 0.0
    %2558 = vmatpush1.msra.mxu0 0.0
    %2559 = vmatprep.subr.mxu0 0.0
    %2560 = vmatpush1.msra.mxu0 0.0
    %2561 = vmatprep.subr.mxu0 0.0
    %2562 = vmatpush1.msra.mxu0 0.0
    %2563 = vmatprep.subr.mxu0 0.0
    %2564 = vmatpush1.msra.mxu0 0.0
    %2565 = vmatprep.subr.mxu0 0.0
    %2566 = vmatpush1.msra.mxu0 0.0
    %2567 = vmatprep.subr.mxu0 0.0
    %2568 = vmatpush1.msra.mxu0 0.0
    %2569 = vmatprep.subr.mxu0 0.0
    %2570 = vmatpush1.msra.mxu0 0.0
    %2571 = vmatprep.subr.mxu0 0.0
    %2572 = vmatpush1.msra.mxu0 0.0
    %2573 = vmatprep.subr.mxu0 0.0
    %2574 = vmatpush1.msra.mxu0 0.0
    %2575 = vmatprep.subr.mxu0 0.0
    %2576 = vmatpush1.msra.mxu0 0.0
    %2577 = vmatprep.mubr.f32.mxu0 0.0
    %2578 = vmatmul.mubr.f32.gmra.mrb[0].mxu0 %v2511
    %v2579 = vpop.f32.mrb[0].mxu0
    %v2580 = vadd.f32 0.0, %v2579
    %v2581 = vpop.f32.mrb[0].mxu0
    %v2582 = vadd.f32 0.0, %v2581
    %2583 = vdwg.mxu0
    %v2584 = vadd.f32 %v1575, %v2580
    %v2585 = vadd.f32 %v1576, %v2582
    %v2586 = vxor.u32 %v2584, 2147483648
    %v2587 = vmul.f32 %v2586, 1.442695
    %v2588 = vpow.pop %v2587
    %v2589 = vadd.f32 %v2588, 1.0
    %v2590 = vrcp.pop %v2589
    %v2591 = vmul.f32 1.0, %v2590
    %v2592 = vtanh.pop %v2585
    %v2593 = vxor.u32 %v2585, 2147483648
    %v2594 = vmul.f32 %v2593, 1.442695
    %v2595 = vpow.pop %v2594
    %v2596 = vadd.f32 %v2595, 1.0
    %v2597 = vrcp.pop %v2596
    %v2598 = vmul.f32 1.0, %v2597
    %v2599 = vmul.f32 %v2591, %v2505
    %v2600 = vmul.f32 %v2591, %v2592
    %2602 = vrot.lane.b32.xlu0 %v2600, 64
    %v2603 = vpop.permute.xlu0 %2602
    %v2605 = vadd.f32 %v2599, %v2603
    %v2606 = vtanh.pop %v2605
    %v2607 = vmul.f32 %v2598, %v2606
    %2609 = vrot.lane.b32.xlu0 %v2607, 64
    %v2610 = vpop.permute.xlu0 %2609
    %v2611 = vsel %vm297, %v2610, 0
    %2613 = vmatprep.subr.mxu0 %v2298
    %2614 = vmatpush1.msra.mxu0 %v2297
    %2615 = vmatprep.subr.mxu0 %v2300
    %2616 = vmatpush1.msra.mxu0 %v2299
    %2617 = vmatprep.subr.mxu0 %v2302
    %2618 = vmatpush1.msra.mxu0 %v2301
    %2619 = vmatprep.subr.mxu0 %v2304
    %2620 = vmatpush1.msra.mxu0 %v2303
    %2621 = vmatprep.subr.mxu0 %v2306
    %2622 = vmatpush1.msra.mxu0 %v2305
    %2623 = vmatprep.subr.mxu0 %v2308
    %2624 = vmatpush1.msra.mxu0 %v2307
    %2625 = vmatprep.subr.mxu0 %v2310
    %2626 = vmatpush1.msra.mxu0 %v2309
    %2627 = vmatprep.subr.mxu0 %v2312
    %2628 = vmatpush1.msra.mxu0 %v2311
    %2629 = vmatprep.subr.mxu0 0.0
    %2630 = vmatpush1.msra.mxu0 0.0
    %2631 = vmatprep.subr.mxu0 0.0
    %2632 = vmatpush1.msra.mxu0 0.0
    %2633 = vmatprep.subr.mxu0 0.0
    %2634 = vmatpush1.msra.mxu0 0.0
    %2635 = vmatprep.subr.mxu0 0.0
    %2636 = vmatpush1.msra.mxu0 0.0
    %2637 = vmatprep.subr.mxu0 0.0
    %2638 = vmatpush1.msra.mxu0 0.0
    %2639 = vmatprep.subr.mxu0 0.0
    %2640 = vmatpush1.msra.mxu0 0.0
    %2641 = vmatprep.subr.mxu0 0.0
    %2642 = vmatpush1.msra.mxu0 0.0
    %2643 = vmatprep.subr.mxu0 0.0
    %2644 = vmatpush1.msra.mxu0 0.0
    %2645 = vmatprep.subr.mxu0 0.0
    %2646 = vmatpush1.msra.mxu0 0.0
    %2647 = vmatprep.subr.mxu0 0.0
    %2648 = vmatpush1.msra.mxu0 0.0
    %2649 = vmatprep.subr.mxu0 0.0
    %2650 = vmatpush1.msra.mxu0 0.0
    %2651 = vmatprep.subr.mxu0 0.0
    %2652 = vmatpush1.msra.mxu0 0.0
    %2653 = vmatprep.subr.mxu0 0.0
    %2654 = vmatpush1.msra.mxu0 0.0
    %2655 = vmatprep.subr.mxu0 0.0
    %2656 = vmatpush1.msra.mxu0 0.0
    %2657 = vmatprep.subr.mxu0 0.0
    %2658 = vmatpush1.msra.mxu0 0.0
    %2659 = vmatprep.subr.mxu0 0.0
    %2660 = vmatpush1.msra.mxu0 0.0
    %2661 = vmatprep.subr.mxu0 0.0
    %2662 = vmatpush1.msra.mxu0 0.0
    %2663 = vmatprep.subr.mxu0 0.0
    %2664 = vmatpush1.msra.mxu0 0.0
    %2665 = vmatprep.subr.mxu0 0.0
    %2666 = vmatpush1.msra.mxu0 0.0
    %2667 = vmatprep.subr.mxu0 0.0
    %2668 = vmatpush1.msra.mxu0 0.0
    %2669 = vmatprep.subr.mxu0 0.0
    %2670 = vmatpush1.msra.mxu0 0.0
    %2671 = vmatprep.subr.mxu0 0.0
    %2672 = vmatpush1.msra.mxu0 0.0
    %2673 = vmatprep.subr.mxu0 0.0
    %2674 = vmatpush1.msra.mxu0 0.0
    %2675 = vmatprep.subr.mxu0 0.0
    %2676 = vmatpush1.msra.mxu0 0.0
    %2677 = vmatprep.mubr.f32.mxu0 0.0
    %2678 = vmatmul.mubr.f32.gmra.mrb[0].mxu0 %v2611
    %v2679 = vpop.f32.mrb[0].mxu0
    %v2680 = vadd.f32 0.0, %v2679
    %v2681 = vpop.f32.mrb[0].mxu0
    %v2682 = vadd.f32 0.0, %v2681
    %2683 = vdwg.mxu0
    %v2684 = vadd.f32 %v1719, %v2680
    %v2685 = vadd.f32 %v1720, %v2682
    %v2686 = vxor.u32 %v2684, 2147483648
    %v2687 = vmul.f32 %v2686, 1.442695
    %v2688 = vpow.pop %v2687
    %v2689 = vadd.f32 %v2688, 1.0
    %v2690 = vrcp.pop %v2689
    %v2691 = vmul.f32 1.0, %v2690
    %v2692 = vtanh.pop %v2685
    %v2693 = vxor.u32 %v2685, 2147483648
    %v2694 = vmul.f32 %v2693, 1.442695
    %v2695 = vpow.pop %v2694
    %v2696 = vadd.f32 %v2695, 1.0
    %v2697 = vrcp.pop %v2696
    %v2698 = vmul.f32 1.0, %v2697
    %v2699 = vmul.f32 %v2691, %v2605
    %v2700 = vmul.f32 %v2691, %v2692
    %2702 = vrot.lane.b32.xlu0 %v2700, 64
    %v2703 = vpop.permute.xlu0 %2702
    %v2705 = vadd.f32 %v2699, %v2703
    %v2706 = vtanh.pop %v2705
    %v2707 = vmul.f32 %v2698, %v2706
    %2709 = vrot.lane.b32.xlu0 %v2707, 64
    %v2710 = vpop.permute.xlu0 %2709
    %v2711 = vsel %vm297, %v2710, 0
    %2713 = vmatprep.subr.mxu0 %v2298
    %2714 = vmatpush1.msra.mxu0 %v2297
    %2715 = vmatprep.subr.mxu0 %v2300
    %2716 = vmatpush1.msra.mxu0 %v2299
    %2717 = vmatprep.subr.mxu0 %v2302
    %2718 = vmatpush1.msra.mxu0 %v2301
    %2719 = vmatprep.subr.mxu0 %v2304
    %2720 = vmatpush1.msra.mxu0 %v2303
    %2721 = vmatprep.subr.mxu0 %v2306
    %2722 = vmatpush1.msra.mxu0 %v2305
    %2723 = vmatprep.subr.mxu0 %v2308
    %2724 = vmatpush1.msra.mxu0 %v2307
    %2725 = vmatprep.subr.mxu0 %v2310
    %2726 = vmatpush1.msra.mxu0 %v2309
    %2727 = vmatprep.subr.mxu0 %v2312
    %2728 = vmatpush1.msra.mxu0 %v2311
    %2729 = vmatprep.subr.mxu0 0.0
    %2730 = vmatpush1.msra.mxu0 0.0
    %2731 = vmatprep.subr.mxu0 0.0
    %2732 = vmatpush1.msra.mxu0 0.0
    %2733 = vmatprep.subr.mxu0 0.0
    %2734 = vmatpush1.msra.mxu0 0.0
    %2735 = vmatprep.subr.mxu0 0.0
    %2736 = vmatpush1.msra.mxu0 0.0
    %2737 = vmatprep.subr.mxu0 0.0
    %2738 = vmatpush1.msra.mxu0 0.0
    %2739 = vmatprep.subr.mxu0 0.0
    %2740 = vmatpush1.msra.mxu0 0.0
    %2741 = vmatprep.subr.mxu0 0.0
    %2742 = vmatpush1.msra.mxu0 0.0
    %2743 = vmatprep.subr.mxu0 0.0
    %2744 = vmatpush1.msra.mxu0 0.0
    %2745 = vmatprep.subr.mxu0 0.0
    %2746 = vmatpush1.msra.mxu0 0.0
    %2747 = vmatprep.subr.mxu0 0.0
    %2748 = vmatpush1.msra.mxu0 0.0
    %2749 = vmatprep.subr.mxu0 0.0
    %2750 = vmatpush1.msra.mxu0 0.0
    %2751 = vmatprep.subr.mxu0 0.0
    %2752 = vmatpush1.msra.mxu0 0.0
    %2753 = vmatprep.subr.mxu0 0.0
    %2754 = vmatpush1.msra.mxu0 0.0
    %2755 = vmatprep.subr.mxu0 0.0
    %2756 = vmatpush1.msra.mxu0 0.0
    %2757 = vmatprep.subr.mxu0 0.0
    %2758 = vmatpush1.msra.mxu0 0.0
    %2759 = vmatprep.subr.mxu0 0.0
    %2760 = vmatpush1.msra.mxu0 0.0
    %2761 = vmatprep.subr.mxu0 0.0
    %2762 = vmatpush1.msra.mxu0 0.0
    %2763 = vmatprep.subr.mxu0 0.0
    %2764 = vmatpush1.msra.mxu0 0.0
    %2765 = vmatprep.subr.mxu0 0.0
    %2766 = vmatpush1.msra.mxu0 0.0
    %2767 = vmatprep.subr.mxu0 0.0
    %2768 = vmatpush1.msra.mxu0 0.0
    %2769 = vmatprep.subr.mxu0 0.0
    %2770 = vmatpush1.msra.mxu0 0.0
    %2771 = vmatprep.subr.mxu0 0.0
    %2772 = vmatpush1.msra.mxu0 0.0
    %2773 = vmatprep.subr.mxu0 0.0
    %2774 = vmatpush1.msra.mxu0 0.0
    %2775 = vmatprep.subr.mxu0 0.0
    %2776 = vmatpush1.msra.mxu0 0.0
    %2777 = vmatprep.mubr.f32.mxu0 0.0
    %2778 = vmatmul.mubr.f32.gmra.mrb[0].mxu0 %v2711
    %v2779 = vpop.f32.mrb[0].mxu0
    %v2780 = vadd.f32 0.0, %v2779
    %v2781 = vpop.f32.mrb[0].mxu0
    %v2782 = vadd.f32 0.0, %v2781
    %2783 = vdwg.mxu0
    %v2784 = vadd.f32 %v1863, %v2780
    %v2785 = vadd.f32 %v1864, %v2782
    %v2786 = vxor.u32 %v2784, 2147483648
    %v2787 = vmul.f32 %v2786, 1.442695
    %v2788 = vpow.pop %v2787
    %v2789 = vadd.f32 %v2788, 1.0
    %v2790 = vrcp.pop %v2789
    %v2791 = vmul.f32 1.0, %v2790
    %v2792 = vtanh.pop %v2785
    %v2793 = vxor.u32 %v2785, 2147483648
    %v2794 = vmul.f32 %v2793, 1.442695
    %v2795 = vpow.pop %v2794
    %v2796 = vadd.f32 %v2795, 1.0
    %v2797 = vrcp.pop %v2796
    %v2798 = vmul.f32 1.0, %v2797
    %v2799 = vmul.f32 %v2791, %v2705
    %v2800 = vmul.f32 %v2791, %v2792
    %2802 = vrot.lane.b32.xlu0 %v2800, 64
    %v2803 = vpop.permute.xlu0 %2802
    %v2805 = vadd.f32 %v2799, %v2803
    %v2806 = vtanh.pop %v2805
    %v2807 = vmul.f32 %v2798, %v2806
    %2809 = vrot.lane.b32.xlu0 %v2807, 64
    %v2810 = vpop.permute.xlu0 %2809
    %v2811 = vsel %vm297, %v2810, 0
    %2813 = vmatprep.subr.mxu0 %v2298
    %2814 = vmatpush1.msra.mxu0 %v2297
    %2815 = vmatprep.subr.mxu0 %v2300
    %2816 = vmatpush1.msra.mxu0 %v2299
    %2817 = vmatprep.subr.mxu0 %v2302
    %2818 = vmatpush1.msra.mxu0 %v2301
    %2819 = vmatprep.subr.mxu0 %v2304
    %2820 = vmatpush1.msra.mxu0 %v2303
    %2821 = vmatprep.subr.mxu0 %v2306
    %2822 = vmatpush1.msra.mxu0 %v2305
    %2823 = vmatprep.subr.mxu0 %v2308
    %2824 = vmatpush1.msra.mxu0 %v2307
    %2825 = vmatprep.subr.mxu0 %v2310
    %2826 = vmatpush1.msra.mxu0 %v2309
    %2827 = vmatprep.subr.mxu0 %v2312
    %2828 = vmatpush1.msra.mxu0 %v2311
    %2829 = vmatprep.subr.mxu0 0.0
    %2830 = vmatpush1.msra.mxu0 0.0
    %2831 = vmatprep.subr.mxu0 0.0
    %2832 = vmatpush1.msra.mxu0 0.0
    %2833 = vmatprep.subr.mxu0 0.0
    %2834 = vmatpush1.msra.mxu0 0.0
    %2835 = vmatprep.subr.mxu0 0.0
    %2836 = vmatpush1.msra.mxu0 0.0
    %2837 = vmatprep.subr.mxu0 0.0
    %2838 = vmatpush1.msra.mxu0 0.0
    %2839 = vmatprep.subr.mxu0 0.0
    %2840 = vmatpush1.msra.mxu0 0.0
    %2841 = vmatprep.subr.mxu0 0.0
    %2842 = vmatpush1.msra.mxu0 0.0
    %2843 = vmatprep.subr.mxu0 0.0
    %2844 = vmatpush1.msra.mxu0 0.0
    %2845 = vmatprep.subr.mxu0 0.0
    %2846 = vmatpush1.msra.mxu0 0.0
    %2847 = vmatprep.subr.mxu0 0.0
    %2848 = vmatpush1.msra.mxu0 0.0
    %2849 = vmatprep.subr.mxu0 0.0
    %2850 = vmatpush1.msra.mxu0 0.0
    %2851 = vmatprep.subr.mxu0 0.0
    %2852 = vmatpush1.msra.mxu0 0.0
    %2853 = vmatprep.subr.mxu0 0.0
    %2854 = vmatpush1.msra.mxu0 0.0
    %2855 = vmatprep.subr.mxu0 0.0
    %2856 = vmatpush1.msra.mxu0 0.0
    %2857 = vmatprep.subr.mxu0 0.0
    %2858 = vmatpush1.msra.mxu0 0.0
    %2859 = vmatprep.subr.mxu0 0.0
    %2860 = vmatpush1.msra.mxu0 0.0
    %2861 = vmatprep.subr.mxu0 0.0
    %2862 = vmatpush1.msra.mxu0 0.0
    %2863 = vmatprep.subr.mxu0 0.0
    %2864 = vmatpush1.msra.mxu0 0.0
    %2865 = vmatprep.subr.mxu0 0.0
    %2866 = vmatpush1.msra.mxu0 0.0
    %2867 = vmatprep.subr.mxu0 0.0
    %2868 = vmatpush1.msra.mxu0 0.0
    %2869 = vmatprep.subr.mxu0 0.0
    %2870 = vmatpush1.msra.mxu0 0.0
    %2871 = vmatprep.subr.mxu0 0.0
    %2872 = vmatpush1.msra.mxu0 0.0
    %2873 = vmatprep.subr.mxu0 0.0
    %2874 = vmatpush1.msra.mxu0 0.0
    %2875 = vmatprep.subr.mxu0 0.0
    %2876 = vmatpush1.msra.mxu0 0.0
    %2877 = vmatprep.mubr.f32.mxu0 0.0
    %2878 = vmatmul.mubr.f32.gmra.mrb[0].mxu0 %v2811
    %v2879 = vpop.f32.mrb[0].mxu0
    %v2880 = vadd.f32 0.0, %v2879
    %v2881 = vpop.f32.mrb[0].mxu0
    %v2882 = vadd.f32 0.0, %v2881
    %2883 = vdwg.mxu0
    %v2884 = vadd.f32 %v2007, %v2880
    %v2885 = vadd.f32 %v2008, %v2882
    %v2886 = vxor.u32 %v2884, 2147483648
    %v2887 = vmul.f32 %v2886, 1.442695
    %v2888 = vpow.pop %v2887
    %v2889 = vadd.f32 %v2888, 1.0
    %v2890 = vrcp.pop %v2889
    %v2891 = vmul.f32 1.0, %v2890
    %v2892 = vtanh.pop %v2885
    %v2893 = vxor.u32 %v2885, 2147483648
    %v2894 = vmul.f32 %v2893, 1.442695
    %v2895 = vpow.pop %v2894
    %v2896 = vadd.f32 %v2895, 1.0
    %v2897 = vrcp.pop %v2896
    %v2898 = vmul.f32 1.0, %v2897
    %v2899 = vmul.f32 %v2891, %v2805
    %v2900 = vmul.f32 %v2891, %v2892
    %2902 = vrot.lane.b32.xlu0 %v2900, 64
    %v2903 = vpop.permute.xlu0 %2902
    %v2905 = vadd.f32 %v2899, %v2903
    %v2906 = vtanh.pop %v2905
    %v2907 = vmul.f32 %v2898, %v2906
    %2909 = vrot.lane.b32.xlu0 %v2907, 64
    %v2910 = vpop.permute.xlu0 %2909
    %v2911 = vsel %vm297, %v2910, 0
    %2913 = vmatprep.subr.mxu0 %v2298
    %2914 = vmatpush1.msra.mxu0 %v2297
    %2915 = vmatprep.subr.mxu0 %v2300
    %2916 = vmatpush1.msra.mxu0 %v2299
    %2917 = vmatprep.subr.mxu0 %v2302
    %2918 = vmatpush1.msra.mxu0 %v2301
    %2919 = vmatprep.subr.mxu0 %v2304
    %2920 = vmatpush1.msra.mxu0 %v2303
    %2921 = vmatprep.subr.mxu0 %v2306
    %2922 = vmatpush1.msra.mxu0 %v2305
    %2923 = vmatprep.subr.mxu0 %v2308
    %2924 = vmatpush1.msra.mxu0 %v2307
    %2925 = vmatprep.subr.mxu0 %v2310
    %2926 = vmatpush1.msra.mxu0 %v2309
    %2927 = vmatprep.subr.mxu0 %v2312
    %2928 = vmatpush1.msra.mxu0 %v2311
    %2929 = vmatprep.subr.mxu0 0.0
    %2930 = vmatpush1.msra.mxu0 0.0
    %2931 = vmatprep.subr.mxu0 0.0
    %2932 = vmatpush1.msra.mxu0 0.0
    %2933 = vmatprep.subr.mxu0 0.0
    %2934 = vmatpush1.msra.mxu0 0.0
    %2935 = vmatprep.subr.mxu0 0.0
    %2936 = vmatpush1.msra.mxu0 0.0
    %2937 = vmatprep.subr.mxu0 0.0
    %2938 = vmatpush1.msra.mxu0 0.0
    %2939 = vmatprep.subr.mxu0 0.0
    %2940 = vmatpush1.msra.mxu0 0.0
    %2941 = vmatprep.subr.mxu0 0.0
    %2942 = vmatpush1.msra.mxu0 0.0
    %2943 = vmatprep.subr.mxu0 0.0
    %2944 = vmatpush1.msra.mxu0 0.0
    %2945 = vmatprep.subr.mxu0 0.0
    %2946 = vmatpush1.msra.mxu0 0.0
    %2947 = vmatprep.subr.mxu0 0.0
    %2948 = vmatpush1.msra.mxu0 0.0
    %2949 = vmatprep.subr.mxu0 0.0
    %2950 = vmatpush1.msra.mxu0 0.0
    %2951 = vmatprep.subr.mxu0 0.0
    %2952 = vmatpush1.msra.mxu0 0.0
    %2953 = vmatprep.subr.mxu0 0.0
    %2954 = vmatpush1.msra.mxu0 0.0
    %2955 = vmatprep.subr.mxu0 0.0
    %2956 = vmatpush1.msra.mxu0 0.0
    %2957 = vmatprep.subr.mxu0 0.0
    %2958 = vmatpush1.msra.mxu0 0.0
    %2959 = vmatprep.subr.mxu0 0.0
    %2960 = vmatpush1.msra.mxu0 0.0
    %2961 = vmatprep.subr.mxu0 0.0
    %2962 = vmatpush1.msra.mxu0 0.0
    %2963 = vmatprep.subr.mxu0 0.0
    %2964 = vmatpush1.msra.mxu0 0.0
    %2965 = vmatprep.subr.mxu0 0.0
    %2966 = vmatpush1.msra.mxu0 0.0
    %2967 = vmatprep.subr.mxu0 0.0
    %2968 = vmatpush1.msra.mxu0 0.0
    %2969 = vmatprep.subr.mxu0 0.0
    %2970 = vmatpush1.msra.mxu0 0.0
    %2971 = vmatprep.subr.mxu0 0.0
    %2972 = vmatpush1.msra.mxu0 0.0
    %2973 = vmatprep.subr.mxu0 0.0
    %2974 = vmatpush1.msra.mxu0 0.0
    %2975 = vmatprep.subr.mxu0 0.0
    %2976 = vmatpush1.msra.mxu0 0.0
    %2977 = vmatprep.mubr.f32.mxu0 0.0
    %2978 = vmatmul.mubr.f32.gmra.mrb[0].mxu0 %v2911
    %v2979 = vpop.f32.mrb[0].mxu0
    %v2980 = vadd.f32 0.0, %v2979
    %v2981 = vpop.f32.mrb[0].mxu0
    %v2982 = vadd.f32 0.0, %v2981
    %2983 = vdwg.mxu0
    %v2984 = vadd.f32 %v2151, %v2980
    %v2985 = vadd.f32 %v2152, %v2982
    %v2986 = vxor.u32 %v2984, 2147483648
    %v2987 = vmul.f32 %v2986, 1.442695
    %v2988 = vpow.pop %v2987
    %v2989 = vadd.f32 %v2988, 1.0
    %v2990 = vrcp.pop %v2989
    %v2991 = vmul.f32 1.0, %v2990
    %v2992 = vtanh.pop %v2985
    %v2993 = vxor.u32 %v2985, 2147483648
    %v2994 = vmul.f32 %v2993, 1.442695
    %v2995 = vpow.pop %v2994
    %v2996 = vadd.f32 %v2995, 1.0
    %v2997 = vrcp.pop %v2996
    %v2998 = vmul.f32 1.0, %v2997
    %v2999 = vmul.f32 %v2991, %v2905
    %v3000 = vmul.f32 %v2991, %v2992
    %3002 = vrot.lane.b32.xlu0 %v3000, 64
    %v3003 = vpop.permute.xlu0 %3002
    %v3005 = vadd.f32 %v2999, %v3003
    %v3006 = vtanh.pop %v3005
    %v3007 = vmul.f32 %v2998, %v3006
    %3009 = vrot.lane.b32.xlu0 %v3007, 64
    %v3010 = vpop.permute.xlu0 %3009
    %v3011 = vsel %vm297, %v3010, 0
    %3013 = vmatprep.subr.mxu0 %v2298
    %3014 = vmatpush1.msra.mxu0 %v2297
    %3015 = vmatprep.subr.mxu0 %v2300
    %3016 = vmatpush1.msra.mxu0 %v2299
    %3017 = vmatprep.subr.mxu0 %v2302
    %3018 = vmatpush1.msra.mxu0 %v2301
    %3019 = vmatprep.subr.mxu0 %v2304
    %3020 = vmatpush1.msra.mxu0 %v2303
    %3021 = vmatprep.subr.mxu0 %v2306
    %3022 = vmatpush1.msra.mxu0 %v2305
    %3023 = vmatprep.subr.mxu0 %v2308
    %3024 = vmatpush1.msra.mxu0 %v2307
    %3025 = vmatprep.subr.mxu0 %v2310
    %3026 = vmatpush1.msra.mxu0 %v2309
    %3027 = vmatprep.subr.mxu0 %v2312
    %3028 = vmatpush1.msra.mxu0 %v2311
    %3029 = vmatprep.subr.mxu0 0.0
    %3030 = vmatpush1.msra.mxu0 0.0
    %3031 = vmatprep.subr.mxu0 0.0
    %3032 = vmatpush1.msra.mxu0 0.0
    %3033 = vmatprep.subr.mxu0 0.0
    %3034 = vmatpush1.msra.mxu0 0.0
    %3035 = vmatprep.subr.mxu0 0.0
    %3036 = vmatpush1.msra.mxu0 0.0
    %3037 = vmatprep.subr.mxu0 0.0
    %3038 = vmatpush1.msra.mxu0 0.0
    %3039 = vmatprep.subr.mxu0 0.0
    %3040 = vmatpush1.msra.mxu0 0.0
    %3041 = vmatprep.subr.mxu0 0.0
    %3042 = vmatpush1.msra.mxu0 0.0
    %3043 = vmatprep.subr.mxu0 0.0
    %3044 = vmatpush1.msra.mxu0 0.0
    %3045 = vmatprep.subr.mxu0 0.0
    %3046 = vmatpush1.msra.mxu0 0.0
    %3047 = vmatprep.subr.mxu0 0.0
    %3048 = vmatpush1.msra.mxu0 0.0
    %3049 = vmatprep.subr.mxu0 0.0
    %3050 = vmatpush1.msra.mxu0 0.0
    %3051 = vmatprep.subr.mxu0 0.0
    %3052 = vmatpush1.msra.mxu0 0.0
    %3053 = vmatprep.subr.mxu0 0.0
    %3054 = vmatpush1.msra.mxu0 0.0
    %3055 = vmatprep.subr.mxu0 0.0
    %3056 = vmatpush1.msra.mxu0 0.0
    %3057 = vmatprep.subr.mxu0 0.0
    %3058 = vmatpush1.msra.mxu0 0.0
    %3059 = vmatprep.subr.mxu0 0.0
    %3060 = vmatpush1.msra.mxu0 0.0
    %3061 = vmatprep.subr.mxu0 0.0
    %3062 = vmatpush1.msra.mxu0 0.0
    %3063 = vmatprep.subr.mxu0 0.0
    %3064 = vmatpush1.msra.mxu0 0.0
    %3065 = vmatprep.subr.mxu0 0.0
    %3066 = vmatpush1.msra.mxu0 0.0
    %3067 = vmatprep.subr.mxu0 0.0
    %3068 = vmatpush1.msra.mxu0 0.0
    %3069 = vmatprep.subr.mxu0 0.0
    %3070 = vmatpush1.msra.mxu0 0.0
    %3071 = vmatprep.subr.mxu0 0.0
    %3072 = vmatpush1.msra.mxu0 0.0
    %3073 = vmatprep.subr.mxu0 0.0
    %3074 = vmatpush1.msra.mxu0 0.0
    %3075 = vmatprep.subr.mxu0 0.0
    %3076 = vmatpush1.msra.mxu0 0.0
    %3077 = vmatprep.mubr.f32.mxu0 0.0
    %3078 = vmatmul.mubr.f32.gmra.mrb[0].mxu0 %v3011
    %v3079 = vpop.f32.mrb[0].mxu0
    %v3080 = vadd.f32 0.0, %v3079
    %v3081 = vpop.f32.mrb[0].mxu0
    %v3082 = vadd.f32 0.0, %v3081
    %3083 = vdwg.mxu0
    %v3084 = vadd.f32 %v2295, %v3080
    %v3085 = vadd.f32 %v2296, %v3082
    %v3086 = vxor.u32 %v3084, 2147483648
    %v3087 = vmul.f32 %v3086, 1.442695
    %v3088 = vpow.pop %v3087
    %v3089 = vadd.f32 %v3088, 1.0
    %v3090 = vrcp.pop %v3089
    %v3091 = vmul.f32 1.0, %v3090
    %v3092 = vtanh.pop %v3085
    %v3093 = vxor.u32 %v3085, 2147483648
    %v3094 = vmul.f32 %v3093, 1.442695
    %v3095 = vpow.pop %v3094
    %v3096 = vadd.f32 %v3095, 1.0
    %v3097 = vrcp.pop %v3096
    %v3098 = vmul.f32 1.0, %v3097
    %v3099 = vmul.f32 %v3091, %v3005
    %v3100 = vmul.f32 %v3091, %v3092
    %3102 = vrot.lane.b32.xlu0 %v3100, 64
    %v3103 = vpop.permute.xlu0 %3102
    %v3105 = vadd.f32 %v3099, %v3103
    %v3106 = vtanh.pop %v3105
    %v3107 = vmul.f32 %v3098, %v3106
    %v3108 = vld [vmem:[%s9] sm:$0xff]
    %v3109 = vld [vmem:[%s9 + $0x8] sm:$0xff]
    %v3110 = vld [vmem:[%s9 + $0x10] sm:$0xff]
    %v3111 = vld [vmem:[%s9 + $0x18] sm:$0xff]
    %v3112 = vld [vmem:[%s9 + $0x20] sm:$0xff]
    %v3113 = vld [vmem:[%s9 + $0x28] sm:$0xff]
    %v3114 = vld [vmem:[%s9 + $0x30] sm:$0xff]
    %v3115 = vld [vmem:[%s9 + $0x38] sm:$0xff]
    %v3116 = vld [vmem:[#allocation13] sm:$0x1]
    %v3118 = vlaneseq
    %v3119 = vshrl.u32 %v3118, 7
    %v3120 = vsub.s32 0, %v3119
    %v3121 = vrot.slane %v3116, %v3120
    %3124 = vrot.lane.b32.xlu0 %v3107, 64
    %v3125 = vpop.permute.xlu0 %3124
    %v3126 = vsel %vm297, %v3125, 0
    %3128 = vmatprep.subr.mxu0 0.0
    %3129 = vmatpush1.msra.mxu0 %v3108
    %3130 = vmatprep.subr.mxu0 0.0
    %3131 = vmatpush1.msra.mxu0 %v3109
    %3132 = vmatprep.subr.mxu0 0.0
    %3133 = vmatpush1.msra.mxu0 %v3110
    %3134 = vmatprep.subr.mxu0 0.0
    %3135 = vmatpush1.msra.mxu0 %v3111
    %3136 = vmatprep.subr.mxu0 0.0
    %3137 = vmatpush1.msra.mxu0 %v3112
    %3138 = vmatprep.subr.mxu0 0.0
    %3139 = vmatpush1.msra.mxu0 %v3113
    %3140 = vmatprep.subr.mxu0 0.0
    %3141 = vmatpush1.msra.mxu0 %v3114
    %3142 = vmatprep.subr.mxu0 0.0
    %3143 = vmatpush1.msra.mxu0 %v3115
    %3144 = vmatprep.subr.mxu0 0.0
    %3145 = vmatpush1.msra.mxu0 0.0
    %3146 = vmatprep.subr.mxu0 0.0
    %3147 = vmatpush1.msra.mxu0 0.0
    %3148 = vmatprep.subr.mxu0 0.0
    %3149 = vmatpush1.msra.mxu0 0.0
    %3150 = vmatprep.subr.mxu0 0.0
    %3151 = vmatpush1.msra.mxu0 0.0
    %3152 = vmatprep.subr.mxu0 0.0
    %3153 = vmatpush1.msra.mxu0 0.0
    %3154 = vmatprep.subr.mxu0 0.0
    %3155 = vmatpush1.msra.mxu0 0.0
    %3156 = vmatprep.subr.mxu0 0.0
    %3157 = vmatpush1.msra.mxu0 0.0
    %3158 = vmatprep.subr.mxu0 0.0
    %3159 = vmatpush1.msra.mxu0 0.0
    %3160 = vmatprep.subr.mxu0 0.0
    %3161 = vmatpush1.msra.mxu0 0.0
    %3162 = vmatprep.subr.mxu0 0.0
    %3163 = vmatpush1.msra.mxu0 0.0
    %3164 = vmatprep.subr.mxu0 0.0
    %3165 = vmatpush1.msra.mxu0 0.0
    %3166 = vmatprep.subr.mxu0 0.0
    %3167 = vmatpush1.msra.mxu0 0.0
    %3168 = vmatprep.subr.mxu0 0.0
    %3169 = vmatpush1.msra.mxu0 0.0
    %3170 = vmatprep.subr.mxu0 0.0
    %3171 = vmatpush1.msra.mxu0 0.0
    %3172 = vmatprep.subr.mxu0 0.0
    %3173 = vmatpush1.msra.mxu0 0.0
    %3174 = vmatprep.subr.mxu0 0.0
    %3175 = vmatpush1.msra.mxu0 0.0
    %3176 = vmatprep.subr.mxu0 0.0
    %3177 = vmatpush1.msra.mxu0 0.0
    %3178 = vmatprep.subr.mxu0 0.0
    %3179 = vmatpush1.msra.mxu0 0.0
    %3180 = vmatprep.subr.mxu0 0.0
    %3181 = vmatpush1.msra.mxu0 0.0
    %3182 = vmatprep.subr.mxu0 0.0
    %3183 = vmatpush1.msra.mxu0 0.0
    %3184 = vmatprep.subr.mxu0 0.0
    %3185 = vmatpush1.msra.mxu0 0.0
    %3186 = vmatprep.subr.mxu0 0.0
    %3187 = vmatpush1.msra.mxu0 0.0
    %3188 = vmatprep.subr.mxu0 0.0
    %3189 = vmatpush1.msra.mxu0 0.0
    %3190 = vmatprep.subr.mxu0 0.0
    %3191 = vmatpush1.msra.mxu0 0.0
    %3192 = vmatprep.mubr.f32.mxu0 0.0
    %3193 = vmatmul.mubr.f32.gmra.mrb[0].mxu0 %v3126
    %v3194 = vpop.f32.mrb[0].mxu0
    %v3195 = vadd.f32 %v3121, %v3194
    %v3196 = vpop.f32.mrb[0].mxu0
    %3197 = vdwg.mxu0
    %vm3198 = vcmask 35840
    %3199 = vst.msk [vmem:[#allocation14] sm:$0xf] %vm3198, %v3195
    // Predicated region
    $region74: #{bilstm_forward.1} parent=1 // pred_check
      _
    $region75: #{bilstm_forward.1} parent=1 // pred_check_branch
      %3201 = sbr.rel (0) target = $region77
    $region76: #{bilstm_forward.1} parent=1 // pred_region
      %s3203 = ssub.s32 64, 64
      %3204 = vsyncadd [#allocation4], %s3203
      %s3206 = sshll.u32 [#allocation14], 4
      %s3207 = int_to_ptr.vmem [resolvable:$true] %s3206
      %3209 = dma.vmem_to_hbm [thread:$0]  %s3207, 64, %s11, [#allocation4]
    $region77: #{bilstm_forward.1} parent=1 // pred_fallthru
      _
    // Predicated region
    $region78: #{bilstm_forward.1} parent=1 // pred_check
      _
    $region79: #{bilstm_forward.1} parent=1 // pred_check_branch
      %3211 = sbr.rel (0) target = $region81
    $region80: #{bilstm_forward.1} parent=1 // pred_region
      %3212 = dma.done [#allocation4], 64
    $region81: #{bilstm_forward.1} parent=1 // pred_fallthru
      _
    %3213 = vsyncpa [#allocation3], 1
    %3214 = vsyncpa [#allocation6], 1
    %3215 = vsyncpa [#allocation9], 1
    %3216 = vsyncpa [#allocation12], 1
    %3217 = vsyncpa [#allocation4], 1

</llo_original>
